<compile_context>
chip_gen: v5e
topology: v5e:2x2
jax: 0.10.0
libtpu: 0.0.40
codegen_flags: <defaults>
</compile_context>

<pallas_src>
import functools

import jax
import jax.numpy as jnp
from jax.experimental import pallas as pl
from jax.experimental.pallas import tpu as pltpu

EMBED_DIMENSION = 300
EMBED_MAX_NORM = 1.0


def _round_up(x, m):
    return (x + m - 1) // m * m


def cbow_kernel(ids_ref, emb_ref, wt_ref, b_ref, out_ref, gbuf_ref, mean_ref,
                *, tb, ctx):
    """Grid = (batch tiles, vocab tiles). At vt == 0 the CBOW mean for the
    current batch tile is built (gather + vectorized renorm + mean) into a
    persistent VMEM scratch; every (bt, vt) step then runs one batched MXU
    matmul against the streamed (Dp, TV) weight tile."""
    bt = pl.program_id(0)   # batch tile ("parallel")
    vt = pl.program_id(1)   # vocab tile (innermost, "arbitrary")

    @pl.when(vt == 0)
    def _():
        # Gather all tb*ctx context embedding rows into a VMEM scratch
        # (dynamic row reads from the resident table, driven by SMEM ids).
        for i in range(tb):
            for c in range(ctx):
                idx = ids_ref[bt * tb + i, c]
                gbuf_ref[pl.ds(i * ctx + c, 1), :] = emb_ref[pl.ds(idx, 1), :]

        g = gbuf_ref[...]                                   # (tb*ctx, Dp) f32
        # Vectorized max_norm renorm: batched lane-reduce + rsqrt (EUP).
        sq = jnp.sum(g * g, axis=-1, keepdims=True)         # (tb*ctx, 1)
        inv_norm = jax.lax.rsqrt(jnp.maximum(sq, 1e-30))
        scale = jnp.where(sq > EMBED_MAX_NORM * EMBED_MAX_NORM,
                          EMBED_MAX_NORM * inv_norm, 1.0)
        g = g * scale

        # Mean over the context axis (static, sublane-aligned slices).
        inv_c = 1.0 / ctx
        for i in range(tb):
            blk = g[i * ctx:(i + 1) * ctx, :]               # (ctx, Dp)
            mean_ref[pl.ds(i, 1), :] = jnp.sum(blk, axis=0, keepdims=True) * inv_c

    # Batched, canonical (M,K)x(K,N) matmul on the MXU for this vocab tile.
    logits = jnp.dot(mean_ref[...], wt_ref[...],
                     preferred_element_type=jnp.float32)     # (tb, tv)
    out_ref[...] = (logits + b_ref[...]).astype(out_ref.dtype)


def cbow_forward(ids, emb_table, weight, bias, *, tb=8, tv=128):
    """ids (B, C) int32; emb_table (V, D) f32; weight (V, D) f32 (nn.Linear
    layout, y = x @ W.T + b); bias (V,) f32. Returns (B, V) f32 logits."""
    B, C = ids.shape
    V, D = emb_table.shape

    Dp = _round_up(D, 128)          # 300 -> 384 (lane-dim padding, zeros)
    Vp = _round_up(V, tv)
    Bp = _round_up(B, tb)

    emb_p = jnp.pad(emb_table.astype(jnp.float32), ((0, 0), (0, Dp - D)))
    # Pre-transpose once in the wrapper so the kernel matmul is (M,K)x(K,N).
    wt_p = jnp.pad(jnp.transpose(weight.astype(jnp.float32)),
                   ((0, Dp - D), (0, Vp - V)))
    b_p = jnp.pad(bias.astype(jnp.float32).reshape(1, V), ((0, 0), (0, Vp - V)))
    ids_p = jnp.pad(ids.astype(jnp.int32), ((0, Bp - B), (0, 0)))

    kernel = functools.partial(cbow_kernel, tb=tb, ctx=C)

    out = pl.pallas_call(
        kernel,
        out_shape=jax.ShapeDtypeStruct((Bp, Vp), jnp.float32),
        grid_spec=pltpu.PrefetchScalarGridSpec(
            num_scalar_prefetch=1,
            grid=(Bp // tb, Vp // tv),
            in_specs=[
                # Full embedding table resident in VMEM (constant block index).
                # TODO(synk): for very large vocabs the table itself should be
                # gathered from HBM instead of held resident.
                pl.BlockSpec((V, Dp), lambda b, v, ids: (0, 0)),
                # Linear weight (Dp, Vp), streamed one vocab tile at a time.
                pl.BlockSpec((Dp, tv), lambda b, v, ids: (0, v)),
                pl.BlockSpec((1, tv), lambda b, v, ids: (0, v)),
            ],
            out_specs=pl.BlockSpec((tb, tv), lambda b, v, ids: (b, v)),
            scratch_shapes=[
                pltpu.VMEM((tb * C, Dp), jnp.float32),   # gathered context rows
                pltpu.VMEM((tb, Dp), jnp.float32),       # per-batch-tile mean
            ],
        ),
        compiler_params=pltpu.CompilerParams(
            dimension_semantics=("parallel", "arbitrary")),
    )(ids_p, emb_p, wt_p, b_p)

    return out[:B, :V]


def cbow_reference(ids, emb_table, weight, bias):
    e = emb_table[ids]                                            # (B, C, D)
    norms = jnp.sqrt(jnp.sum(e * e, axis=-1, keepdims=True))
    scale = jnp.where(norms > EMBED_MAX_NORM,
                      EMBED_MAX_NORM / (norms + 1e-7), 1.0)
    e = e * scale
    mean = jnp.mean(e, axis=1)                                    # (B, D)
    return mean @ weight.T + bias.reshape(1, -1)                  # (B, V)


if __name__ == "__main__":
    VOCAB_SIZE = 256   # small synthetic vocab (2 vocab tiles of 128)
    D = EMBED_DIMENSION
    B, C = 16, 8       # batch, context window (2 batch tiles of 8)

    key = jax.random.PRNGKey(0)
    k_ids, k_emb, k_w, k_b = jax.random.split(key, 4)

    ids = jax.random.randint(k_ids, (B, C), 0, VOCAB_SIZE, dtype=jnp.int32)
    # Mix of rows above / below max_norm so both renorm branches are exercised.
    emb_table = jax.random.normal(k_emb, (VOCAB_SIZE, D), jnp.float32) * 0.08
    emb_table = emb_table.at[::3].multiply(0.2)
    weight = jax.random.normal(k_w, (VOCAB_SIZE, D), jnp.float32) * 0.05
    bias = jax.random.normal(k_b, (VOCAB_SIZE,), jnp.float32) * 0.01

    out = jax.block_until_ready(cbow_forward(ids, emb_table, weight, bias))
    ref = cbow_reference(ids, emb_table, weight, bias)

    assert out.shape == (B, VOCAB_SIZE)
    assert jnp.allclose(out, ref, atol=1e-4, rtol=1e-4), "mismatch vs JAX reference"
    print("KERNEL_OK")
</pallas_src>

<mosaic_0001>
module attributes {stable_mosaic.version = 11 : i64} {
  func.func @cbow_kernel(%arg0: i32, %arg1: i32, %arg2: memref<16x8xi32, #tpu.memory_space<smem>>, %arg3: memref<256x384xf32, #tpu.memory_space<vmem>>, %arg4: memref<384x128xf32, #tpu.memory_space<vmem>>, %arg5: memref<1x128xf32, #tpu.memory_space<vmem>>, %arg6: memref<8x128xf32, #tpu.memory_space<vmem>>, %arg7: memref<64x384xf32, #tpu.memory_space<vmem>>, %arg8: memref<8x384xf32, #tpu.memory_space<vmem>>) attributes {dimension_semantics = [#tpu.dimension_semantics<parallel>, #tpu.dimension_semantics<arbitrary>], iteration_bounds = array<i64: 2, 2>, scalar_prefetch = 1 : i64, scratch_operands = 2 : i64, tpu.core_type = #tpu.core_type<tc>, window_params = [{pipeline_mode = #tpu.pipeline_mode<synchronous>, transform_indices = @transform_0, window_bounds = array<i64: 256, 384>}, {transform_indices = @transform_1, window_bounds = array<i64: 384, 128>}, {transform_indices = @transform_2, window_bounds = array<i64: 1, 128>}, {transform_indices = @transform_3, window_bounds = array<i64: 8, 128>}]} {
    %c0_i32 = arith.constant 0 : i32
    %0 = arith.cmpi eq, %arg1, %c0_i32 : i32
    %1 = arith.extui %0 : i1 to i32
    %c0_i32_0 = arith.constant 0 : i32
    %2 = arith.cmpi ne, %1, %c0_i32_0 : i32
    scf.if %2 {
      %c8_i32 = arith.constant 8 : i32
      %10 = arith.muli %arg0, %c8_i32 : i32
      %c0_i32_8 = arith.constant 0 : i32
      %11 = arith.addi %10, %c0_i32_8 : i32
      %12 = arith.index_cast %11 : i32 to index
      %c0_9 = arith.constant 0 : index
      %13 = memref.load %arg2[%12, %c0_9] : memref<16x8xi32, #tpu.memory_space<smem>>
      %14 = arith.index_cast %13 : i32 to index
      %c0_10 = arith.constant 0 : index
      %15 = vector.load %arg3[%14, %c0_10] : memref<256x384xf32, #tpu.memory_space<vmem>>, vector<1x384xf32>
      %c0_11 = arith.constant 0 : index
      %c0_12 = arith.constant 0 : index
      %16 = vector.load %arg7[%c0_11, %c0_12] : memref<64x384xf32, #tpu.memory_space<vmem>>, vector<1x384xf32>
      tpu.vector_store %arg7[%c0_11, %c0_12], %15 {strides = array<i32>} : memref<64x384xf32, #tpu.memory_space<vmem>>, vector<1x384xf32>,
      %c8_i32_13 = arith.constant 8 : i32
      %17 = arith.muli %arg0, %c8_i32_13 : i32
      %c0_i32_14 = arith.constant 0 : i32
      %18 = arith.addi %17, %c0_i32_14 : i32
      %19 = arith.index_cast %18 : i32 to index
      %c1 = arith.constant 1 : index
      %20 = memref.load %arg2[%19, %c1] : memref<16x8xi32, #tpu.memory_space<smem>>
      %21 = arith.index_cast %20 : i32 to index
      %c0_15 = arith.constant 0 : index
      %22 = vector.load %arg3[%21, %c0_15] : memref<256x384xf32, #tpu.memory_space<vmem>>, vector<1x384xf32>
      %c1_16 = arith.constant 1 : index
      %c0_17 = arith.constant 0 : index
      %23 = vector.load %arg7[%c1_16, %c0_17] : memref<64x384xf32, #tpu.memory_space<vmem>>, vector<1x384xf32>
      tpu.vector_store %arg7[%c1_16, %c0_17], %22 {strides = array<i32>} : memref<64x384xf32, #tpu.memory_space<vmem>>, vector<1x384xf32>,
      %c8_i32_18 = arith.constant 8 : i32
      %24 = arith.muli %arg0, %c8_i32_18 : i32
      %c0_i32_19 = arith.constant 0 : i32
      %25 = arith.addi %24, %c0_i32_19 : i32
      %26 = arith.index_cast %25 : i32 to index
      %c2 = arith.constant 2 : index
      %27 = memref.load %arg2[%26, %c2] : memref<16x8xi32, #tpu.memory_space<smem>>
      %28 = arith.index_cast %27 : i32 to index
      %c0_20 = arith.constant 0 : index
      %29 = vector.load %arg3[%28, %c0_20] : memref<256x384xf32, #tpu.memory_space<vmem>>, vector<1x384xf32>
      %c2_21 = arith.constant 2 : index
      %c0_22 = arith.constant 0 : index
      %30 = vector.load %arg7[%c2_21, %c0_22] : memref<64x384xf32, #tpu.memory_space<vmem>>, vector<1x384xf32>
      tpu.vector_store %arg7[%c2_21, %c0_22], %29 {strides = array<i32>} : memref<64x384xf32, #tpu.memory_space<vmem>>, vector<1x384xf32>,
      %c8_i32_23 = arith.constant 8 : i32
      %31 = arith.muli %arg0, %c8_i32_23 : i32
      %c0_i32_24 = arith.constant 0 : i32
      %32 = arith.addi %31, %c0_i32_24 : i32
      %33 = arith.index_cast %32 : i32 to index
      %c3 = arith.constant 3 : index
      %34 = memref.load %arg2[%33, %c3] : memref<16x8xi32, #tpu.memory_space<smem>>
      %35 = arith.index_cast %34 : i32 to index
      %c0_25 = arith.constant 0 : index
      %36 = vector.load %arg3[%35, %c0_25] : memref<256x384xf32, #tpu.memory_space<vmem>>, vector<1x384xf32>
      %c3_26 = arith.constant 3 : index
      %c0_27 = arith.constant 0 : index
      %37 = vector.load %arg7[%c3_26, %c0_27] : memref<64x384xf32, #tpu.memory_space<vmem>>, vector<1x384xf32>
      tpu.vector_store %arg7[%c3_26, %c0_27], %36 {strides = array<i32>} : memref<64x384xf32, #tpu.memory_space<vmem>>, vector<1x384xf32>,
      %c8_i32_28 = arith.constant 8 : i32
      %38 = arith.muli %arg0, %c8_i32_28 : i32
      %c0_i32_29 = arith.constant 0 : i32
      %39 = arith.addi %38, %c0_i32_29 : i32
      %40 = arith.index_cast %39 : i32 to index
      %c4 = arith.constant 4 : index
      %41 = memref.load %arg2[%40, %c4] : memref<16x8xi32, #tpu.memory_space<smem>>
      %42 = arith.index_cast %41 : i32 to index
      %c0_30 = arith.constant 0 : index
      %43 = vector.load %arg3[%42, %c0_30] : memref<256x384xf32, #tpu.memory_space<vmem>>, vector<1x384xf32>
      %c4_31 = arith.constant 4 : index
      %c0_32 = arith.constant 0 : index
      %44 = vector.load %arg7[%c4_31, %c0_32] : memref<64x384xf32, #tpu.memory_space<vmem>>, vector<1x384xf32>
      tpu.vector_store %arg7[%c4_31, %c0_32], %43 {strides = array<i32>} : memref<64x384xf32, #tpu.memory_space<vmem>>, vector<1x384xf32>,
      %c8_i32_33 = arith.constant 8 : i32
      %45 = arith.muli %arg0, %c8_i32_33 : i32
      %c0_i32_34 = arith.constant 0 : i32
      %46 = arith.addi %45, %c0_i32_34 : i32
      %47 = arith.index_cast %46 : i32 to index
      %c5 = arith.constant 5 : index
      %48 = memref.load %arg2[%47, %c5] : memref<16x8xi32, #tpu.memory_space<smem>>
      %49 = arith.index_cast %48 : i32 to index
      %c0_35 = arith.constant 0 : index
      %50 = vector.load %arg3[%49, %c0_35] : memref<256x384xf32, #tpu.memory_space<vmem>>, vector<1x384xf32>
      %c5_36 = arith.constant 5 : index
      %c0_37 = arith.constant 0 : index
      %51 = vector.load %arg7[%c5_36, %c0_37] : memref<64x384xf32, #tpu.memory_space<vmem>>, vector<1x384xf32>
      tpu.vector_store %arg7[%c5_36, %c0_37], %50 {strides = array<i32>} : memref<64x384xf32, #tpu.memory_space<vmem>>, vector<1x384xf32>,
      %c8_i32_38 = arith.constant 8 : i32
      %52 = arith.muli %arg0, %c8_i32_38 : i32
      %c0_i32_39 = arith.constant 0 : i32
      %53 = arith.addi %52, %c0_i32_39 : i32
      %54 = arith.index_cast %53 : i32 to index
      %c6 = arith.constant 6 : index
      %55 = memref.load %arg2[%54, %c6] : memref<16x8xi32, #tpu.memory_space<smem>>
      %56 = arith.index_cast %55 : i32 to index
      %c0_40 = arith.constant 0 : index
      %57 = vector.load %arg3[%56, %c0_40] : memref<256x384xf32, #tpu.memory_space<vmem>>, vector<1x384xf32>
      %c6_41 = arith.constant 6 : index
      %c0_42 = arith.constant 0 : index
      %58 = vector.load %arg7[%c6_41, %c0_42] : memref<64x384xf32, #tpu.memory_space<vmem>>, vector<1x384xf32>
      tpu.vector_store %arg7[%c6_41, %c0_42], %57 {strides = array<i32>} : memref<64x384xf32, #tpu.memory_space<vmem>>, vector<1x384xf32>,
      %c8_i32_43 = arith.constant 8 : i32
      %59 = arith.muli %arg0, %c8_i32_43 : i32
      %c0_i32_44 = arith.constant 0 : i32
      %60 = arith.addi %59, %c0_i32_44 : i32
      %61 = arith.index_cast %60 : i32 to index
      %c7 = arith.constant 7 : index
      %62 = memref.load %arg2[%61, %c7] : memref<16x8xi32, #tpu.memory_space<smem>>
      %63 = arith.index_cast %62 : i32 to index
      %c0_45 = arith.constant 0 : index
      %64 = vector.load %arg3[%63, %c0_45] : memref<256x384xf32, #tpu.memory_space<vmem>>, vector<1x384xf32>
      %c7_46 = arith.constant 7 : index
      %c0_47 = arith.constant 0 : index
      %65 = vector.load %arg7[%c7_46, %c0_47] : memref<64x384xf32, #tpu.memory_space<vmem>>, vector<1x384xf32>
      tpu.vector_store %arg7[%c7_46, %c0_47], %64 {strides = array<i32>} : memref<64x384xf32, #tpu.memory_space<vmem>>, vector<1x384xf32>,
      %c8_i32_48 = arith.constant 8 : i32
      %66 = arith.muli %arg0, %c8_i32_48 : i32
      %c1_i32 = arith.constant 1 : i32
      %67 = arith.addi %66, %c1_i32 : i32
      %68 = arith.index_cast %67 : i32 to index
      %c0_49 = arith.constant 0 : index
      %69 = memref.load %arg2[%68, %c0_49] : memref<16x8xi32, #tpu.memory_space<smem>>
      %70 = arith.index_cast %69 : i32 to index
      %c0_50 = arith.constant 0 : index
      %71 = vector.load %arg3[%70, %c0_50] : memref<256x384xf32, #tpu.memory_space<vmem>>, vector<1x384xf32>
      %c8 = arith.constant 8 : index
      %c0_51 = arith.constant 0 : index
      %72 = vector.load %arg7[%c8, %c0_51] : memref<64x384xf32, #tpu.memory_space<vmem>>, vector<1x384xf32>
      tpu.vector_store %arg7[%c8, %c0_51], %71 {strides = array<i32>} : memref<64x384xf32, #tpu.memory_space<vmem>>, vector<1x384xf32>,
      %c8_i32_52 = arith.constant 8 : i32
      %73 = arith.muli %arg0, %c8_i32_52 : i32
      %c1_i32_53 = arith.constant 1 : i32
      %74 = arith.addi %73, %c1_i32_53 : i32
      %75 = arith.index_cast %74 : i32 to index
      %c1_54 = arith.constant 1 : index
      %76 = memref.load %arg2[%75, %c1_54] : memref<16x8xi32, #tpu.memory_space<smem>>
      %77 = arith.index_cast %76 : i32 to index
      %c0_55 = arith.constant 0 : index
      %78 = vector.load %arg3[%77, %c0_55] : memref<256x384xf32, #tpu.memory_space<vmem>>, vector<1x384xf32>
      %c9 = arith.constant 9 : index
      %c0_56 = arith.constant 0 : index
      %79 = vector.load %arg7[%c9, %c0_56] : memref<64x384xf32, #tpu.memory_space<vmem>>, vector<1x384xf32>
      tpu.vector_store %arg7[%c9, %c0_56], %78 {strides = array<i32>} : memref<64x384xf32, #tpu.memory_space<vmem>>, vector<1x384xf32>,
      %c8_i32_57 = arith.constant 8 : i32
      %80 = arith.muli %arg0, %c8_i32_57 : i32
      %c1_i32_58 = arith.constant 1 : i32
      %81 = arith.addi %80, %c1_i32_58 : i32
      %82 = arith.index_cast %81 : i32 to index
      %c2_59 = arith.constant 2 : index
      %83 = memref.load %arg2[%82, %c2_59] : memref<16x8xi32, #tpu.memory_space<smem>>
      %84 = arith.index_cast %83 : i32 to index
      %c0_60 = arith.constant 0 : index
      %85 = vector.load %arg3[%84, %c0_60] : memref<256x384xf32, #tpu.memory_space<vmem>>, vector<1x384xf32>
      %c10 = arith.constant 10 : index
      %c0_61 = arith.constant 0 : index
      %86 = vector.load %arg7[%c10, %c0_61] : memref<64x384xf32, #tpu.memory_space<vmem>>, vector<1x384xf32>
      tpu.vector_store %arg7[%c10, %c0_61], %85 {strides = array<i32>} : memref<64x384xf32, #tpu.memory_space<vmem>>, vector<1x384xf32>,
      %c8_i32_62 = arith.constant 8 : i32
      %87 = arith.muli %arg0, %c8_i32_62 : i32
      %c1_i32_63 = arith.constant 1 : i32
      %88 = arith.addi %87, %c1_i32_63 : i32
      %89 = arith.index_cast %88 : i32 to index
      %c3_64 = arith.constant 3 : index
      %90 = memref.load %arg2[%89, %c3_64] : memref<16x8xi32, #tpu.memory_space<smem>>
      %91 = arith.index_cast %90 : i32 to index
      %c0_65 = arith.constant 0 : index
      %92 = vector.load %arg3[%91, %c0_65] : memref<256x384xf32, #tpu.memory_space<vmem>>, vector<1x384xf32>
      %c11 = arith.constant 11 : index
      %c0_66 = arith.constant 0 : index
      %93 = vector.load %arg7[%c11, %c0_66] : memref<64x384xf32, #tpu.memory_space<vmem>>, vector<1x384xf32>
      tpu.vector_store %arg7[%c11, %c0_66], %92 {strides = array<i32>} : memref<64x384xf32, #tpu.memory_space<vmem>>, vector<1x384xf32>,
      %c8_i32_67 = arith.constant 8 : i32
      %94 = arith.muli %arg0, %c8_i32_67 : i32
      %c1_i32_68 = arith.constant 1 : i32
      %95 = arith.addi %94, %c1_i32_68 : i32
      %96 = arith.index_cast %95 : i32 to index
      %c4_69 = arith.constant 4 : index
      %97 = memref.load %arg2[%96, %c4_69] : memref<16x8xi32, #tpu.memory_space<smem>>
      %98 = arith.index_cast %97 : i32 to index
      %c0_70 = arith.constant 0 : index
      %99 = vector.load %arg3[%98, %c0_70] : memref<256x384xf32, #tpu.memory_space<vmem>>, vector<1x384xf32>
      %c12 = arith.constant 12 : index
      %c0_71 = arith.constant 0 : index
      %100 = vector.load %arg7[%c12, %c0_71] : memref<64x384xf32, #tpu.memory_space<vmem>>, vector<1x384xf32>
      tpu.vector_store %arg7[%c12, %c0_71], %99 {strides = array<i32>} : memref<64x384xf32, #tpu.memory_space<vmem>>, vector<1x384xf32>,
      %c8_i32_72 = arith.constant 8 : i32
      %101 = arith.muli %arg0, %c8_i32_72 : i32
      %c1_i32_73 = arith.constant 1 : i32
      %102 = arith.addi %101, %c1_i32_73 : i32
      %103 = arith.index_cast %102 : i32 to index
      %c5_74 = arith.constant 5 : index
      %104 = memref.load %arg2[%103, %c5_74] : memref<16x8xi32, #tpu.memory_space<smem>>
      %105 = arith.index_cast %104 : i32 to index
      %c0_75 = arith.constant 0 : index
      %106 = vector.load %arg3[%105, %c0_75] : memref<256x384xf32, #tpu.memory_space<vmem>>, vector<1x384xf32>
      %c13 = arith.constant 13 : index
      %c0_76 = arith.constant 0 : index
      %107 = vector.load %arg7[%c13, %c0_76] : memref<64x384xf32, #tpu.memory_space<vmem>>, vector<1x384xf32>
      tpu.vector_store %arg7[%c13, %c0_76], %106 {strides = array<i32>} : memref<64x384xf32, #tpu.memory_space<vmem>>, vector<1x384xf32>,
      %c8_i32_77 = arith.constant 8 : i32
      %108 = arith.muli %arg0, %c8_i32_77 : i32
      %c1_i32_78 = arith.constant 1 : i32
      %109 = arith.addi %108, %c1_i32_78 : i32
      %110 = arith.index_cast %109 : i32 to index
      %c6_79 = arith.constant 6 : index
      %111 = memref.load %arg2[%110, %c6_79] : memref<16x8xi32, #tpu.memory_space<smem>>
      %112 = arith.index_cast %111 : i32 to index
      %c0_80 = arith.constant 0 : index
      %113 = vector.load %arg3[%112, %c0_80] : memref<256x384xf32, #tpu.memory_space<vmem>>, vector<1x384xf32>
      %c14 = arith.constant 14 : index
      %c0_81 = arith.constant 0 : index
      %114 = vector.load %arg7[%c14, %c0_81] : memref<64x384xf32, #tpu.memory_space<vmem>>, vector<1x384xf32>
      tpu.vector_store %arg7[%c14, %c0_81], %113 {strides = array<i32>} : memref<64x384xf32, #tpu.memory_space<vmem>>, vector<1x384xf32>,
      %c8_i32_82 = arith.constant 8 : i32
      %115 = arith.muli %arg0, %c8_i32_82 : i32
      %c1_i32_83 = arith.constant 1 : i32
      %116 = arith.addi %115, %c1_i32_83 : i32
      %117 = arith.index_cast %116 : i32 to index
      %c7_84 = arith.constant 7 : index
      %118 = memref.load %arg2[%117, %c7_84] : memref<16x8xi32, #tpu.memory_space<smem>>
      %119 = arith.index_cast %118 : i32 to index
      %c0_85 = arith.constant 0 : index
      %120 = vector.load %arg3[%119, %c0_85] : memref<256x384xf32, #tpu.memory_space<vmem>>, vector<1x384xf32>
      %c15 = arith.constant 15 : index
      %c0_86 = arith.constant 0 : index
      %121 = vector.load %arg7[%c15, %c0_86] : memref<64x384xf32, #tpu.memory_space<vmem>>, vector<1x384xf32>
      tpu.vector_store %arg7[%c15, %c0_86], %120 {strides = array<i32>} : memref<64x384xf32, #tpu.memory_space<vmem>>, vector<1x384xf32>,
      %c8_i32_87 = arith.constant 8 : i32
      %122 = arith.muli %arg0, %c8_i32_87 : i32
      %c2_i32 = arith.constant 2 : i32
      %123 = arith.addi %122, %c2_i32 : i32
      %124 = arith.index_cast %123 : i32 to index
      %c0_88 = arith.constant 0 : index
      %125 = memref.load %arg2[%124, %c0_88] : memref<16x8xi32, #tpu.memory_space<smem>>
      %126 = arith.index_cast %125 : i32 to index
      %c0_89 = arith.constant 0 : index
      %127 = vector.load %arg3[%126, %c0_89] : memref<256x384xf32, #tpu.memory_space<vmem>>, vector<1x384xf32>
      %c16 = arith.constant 16 : index
      %c0_90 = arith.constant 0 : index
      %128 = vector.load %arg7[%c16, %c0_90] : memref<64x384xf32, #tpu.memory_space<vmem>>, vector<1x384xf32>
      tpu.vector_store %arg7[%c16, %c0_90], %127 {strides = array<i32>} : memref<64x384xf32, #tpu.memory_space<vmem>>, vector<1x384xf32>,
      %c8_i32_91 = arith.constant 8 : i32
      %129 = arith.muli %arg0, %c8_i32_91 : i32
      %c2_i32_92 = arith.constant 2 : i32
      %130 = arith.addi %129, %c2_i32_92 : i32
      %131 = arith.index_cast %130 : i32 to index
      %c1_93 = arith.constant 1 : index
      %132 = memref.load %arg2[%131, %c1_93] : memref<16x8xi32, #tpu.memory_space<smem>>
      %133 = arith.index_cast %132 : i32 to index
      %c0_94 = arith.constant 0 : index
      %134 = vector.load %arg3[%133, %c0_94] : memref<256x384xf32, #tpu.memory_space<vmem>>, vector<1x384xf32>
      %c17 = arith.constant 17 : index
      %c0_95 = arith.constant 0 : index
      %135 = vector.load %arg7[%c17, %c0_95] : memref<64x384xf32, #tpu.memory_space<vmem>>, vector<1x384xf32>
      tpu.vector_store %arg7[%c17, %c0_95], %134 {strides = array<i32>} : memref<64x384xf32, #tpu.memory_space<vmem>>, vector<1x384xf32>,
      %c8_i32_96 = arith.constant 8 : i32
      %136 = arith.muli %arg0, %c8_i32_96 : i32
      %c2_i32_97 = arith.constant 2 : i32
      %137 = arith.addi %136, %c2_i32_97 : i32
      %138 = arith.index_cast %137 : i32 to index
      %c2_98 = arith.constant 2 : index
      %139 = memref.load %arg2[%138, %c2_98] : memref<16x8xi32, #tpu.memory_space<smem>>
      %140 = arith.index_cast %139 : i32 to index
      %c0_99 = arith.constant 0 : index
      %141 = vector.load %arg3[%140, %c0_99] : memref<256x384xf32, #tpu.memory_space<vmem>>, vector<1x384xf32>
      %c18 = arith.constant 18 : index
      %c0_100 = arith.constant 0 : index
      %142 = vector.load %arg7[%c18, %c0_100] : memref<64x384xf32, #tpu.memory_space<vmem>>, vector<1x384xf32>
      tpu.vector_store %arg7[%c18, %c0_100], %141 {strides = array<i32>} : memref<64x384xf32, #tpu.memory_space<vmem>>, vector<1x384xf32>,
      %c8_i32_101 = arith.constant 8 : i32
      %143 = arith.muli %arg0, %c8_i32_101 : i32
      %c2_i32_102 = arith.constant 2 : i32
      %144 = arith.addi %143, %c2_i32_102 : i32
      %145 = arith.index_cast %144 : i32 to index
      %c3_103 = arith.constant 3 : index
      %146 = memref.load %arg2[%145, %c3_103] : memref<16x8xi32, #tpu.memory_space<smem>>
      %147 = arith.index_cast %146 : i32 to index
      %c0_104 = arith.constant 0 : index
      %148 = vector.load %arg3[%147, %c0_104] : memref<256x384xf32, #tpu.memory_space<vmem>>, vector<1x384xf32>
      %c19 = arith.constant 19 : index
      %c0_105 = arith.constant 0 : index
      %149 = vector.load %arg7[%c19, %c0_105] : memref<64x384xf32, #tpu.memory_space<vmem>>, vector<1x384xf32>
      tpu.vector_store %arg7[%c19, %c0_105], %148 {strides = array<i32>} : memref<64x384xf32, #tpu.memory_space<vmem>>, vector<1x384xf32>,
      %c8_i32_106 = arith.constant 8 : i32
      %150 = arith.muli %arg0, %c8_i32_106 : i32
      %c2_i32_107 = arith.constant 2 : i32
      %151 = arith.addi %150, %c2_i32_107 : i32
      %152 = arith.index_cast %151 : i32 to index
      %c4_108 = arith.constant 4 : index
      %153 = memref.load %arg2[%152, %c4_108] : memref<16x8xi32, #tpu.memory_space<smem>>
      %154 = arith.index_cast %153 : i32 to index
      %c0_109 = arith.constant 0 : index
      %155 = vector.load %arg3[%154, %c0_109] : memref<256x384xf32, #tpu.memory_space<vmem>>, vector<1x384xf32>
      %c20 = arith.constant 20 : index
      %c0_110 = arith.constant 0 : index
      %156 = vector.load %arg7[%c20, %c0_110] : memref<64x384xf32, #tpu.memory_space<vmem>>, vector<1x384xf32>
      tpu.vector_store %arg7[%c20, %c0_110], %155 {strides = array<i32>} : memref<64x384xf32, #tpu.memory_space<vmem>>, vector<1x384xf32>,
      %c8_i32_111 = arith.constant 8 : i32
      %157 = arith.muli %arg0, %c8_i32_111 : i32
      %c2_i32_112 = arith.constant 2 : i32
      %158 = arith.addi %157, %c2_i32_112 : i32
      %159 = arith.index_cast %158 : i32 to index
      %c5_113 = arith.constant 5 : index
      %160 = memref.load %arg2[%159, %c5_113] : memref<16x8xi32, #tpu.memory_space<smem>>
      %161 = arith.index_cast %160 : i32 to index
      %c0_114 = arith.constant 0 : index
      %162 = vector.load %arg3[%161, %c0_114] : memref<256x384xf32, #tpu.memory_space<vmem>>, vector<1x384xf32>
      %c21 = arith.constant 21 : index
      %c0_115 = arith.constant 0 : index
      %163 = vector.load %arg7[%c21, %c0_115] : memref<64x384xf32, #tpu.memory_space<vmem>>, vector<1x384xf32>
      tpu.vector_store %arg7[%c21, %c0_115], %162 {strides = array<i32>} : memref<64x384xf32, #tpu.memory_space<vmem>>, vector<1x384xf32>,
      %c8_i32_116 = arith.constant 8 : i32
      %164 = arith.muli %arg0, %c8_i32_116 : i32
      %c2_i32_117 = arith.constant 2 : i32
      %165 = arith.addi %164, %c2_i32_117 : i32
      %166 = arith.index_cast %165 : i32 to index
      %c6_118 = arith.constant 6 : index
      %167 = memref.load %arg2[%166, %c6_118] : memref<16x8xi32, #tpu.memory_space<smem>>
      %168 = arith.index_cast %167 : i32 to index
      %c0_119 = arith.constant 0 : index
      %169 = vector.load %arg3[%168, %c0_119] : memref<256x384xf32, #tpu.memory_space<vmem>>, vector<1x384xf32>
      %c22 = arith.constant 22 : index
      %c0_120 = arith.constant 0 : index
      %170 = vector.load %arg7[%c22, %c0_120] : memref<64x384xf32, #tpu.memory_space<vmem>>, vector<1x384xf32>
      tpu.vector_store %arg7[%c22, %c0_120], %169 {strides = array<i32>} : memref<64x384xf32, #tpu.memory_space<vmem>>, vector<1x384xf32>,
      %c8_i32_121 = arith.constant 8 : i32
      %171 = arith.muli %arg0, %c8_i32_121 : i32
      %c2_i32_122 = arith.constant 2 : i32
      %172 = arith.addi %171, %c2_i32_122 : i32
      %173 = arith.index_cast %172 : i32 to index
      %c7_123 = arith.constant 7 : index
      %174 = memref.load %arg2[%173, %c7_123] : memref<16x8xi32, #tpu.memory_space<smem>>
      %175 = arith.index_cast %174 : i32 to index
      %c0_124 = arith.constant 0 : index
      %176 = vector.load %arg3[%175, %c0_124] : memref<256x384xf32, #tpu.memory_space<vmem>>, vector<1x384xf32>
      %c23 = arith.constant 23 : index
      %c0_125 = arith.constant 0 : index
      %177 = vector.load %arg7[%c23, %c0_125] : memref<64x384xf32, #tpu.memory_space<vmem>>, vector<1x384xf32>
      tpu.vector_store %arg7[%c23, %c0_125], %176 {strides = array<i32>} : memref<64x384xf32, #tpu.memory_space<vmem>>, vector<1x384xf32>,
      %c8_i32_126 = arith.constant 8 : i32
      %178 = arith.muli %arg0, %c8_i32_126 : i32
      %c3_i32 = arith.constant 3 : i32
      %179 = arith.addi %178, %c3_i32 : i32
      %180 = arith.index_cast %179 : i32 to index
      %c0_127 = arith.constant 0 : index
      %181 = memref.load %arg2[%180, %c0_127] : memref<16x8xi32, #tpu.memory_space<smem>>
      %182 = arith.index_cast %181 : i32 to index
      %c0_128 = arith.constant 0 : index
      %183 = vector.load %arg3[%182, %c0_128] : memref<256x384xf32, #tpu.memory_space<vmem>>, vector<1x384xf32>
      %c24 = arith.constant 24 : index
      %c0_129 = arith.constant 0 : index
      %184 = vector.load %arg7[%c24, %c0_129] : memref<64x384xf32, #tpu.memory_space<vmem>>, vector<1x384xf32>
      tpu.vector_store %arg7[%c24, %c0_129], %183 {strides = array<i32>} : memref<64x384xf32, #tpu.memory_space<vmem>>, vector<1x384xf32>,
      %c8_i32_130 = arith.constant 8 : i32
      %185 = arith.muli %arg0, %c8_i32_130 : i32
      %c3_i32_131 = arith.constant 3 : i32
      %186 = arith.addi %185, %c3_i32_131 : i32
      %187 = arith.index_cast %186 : i32 to index
      %c1_132 = arith.constant 1 : index
      %188 = memref.load %arg2[%187, %c1_132] : memref<16x8xi32, #tpu.memory_space<smem>>
      %189 = arith.index_cast %188 : i32 to index
      %c0_133 = arith.constant 0 : index
      %190 = vector.load %arg3[%189, %c0_133] : memref<256x384xf32, #tpu.memory_space<vmem>>, vector<1x384xf32>
      %c25 = arith.constant 25 : index
      %c0_134 = arith.constant 0 : index
      %191 = vector.load %arg7[%c25, %c0_134] : memref<64x384xf32, #tpu.memory_space<vmem>>, vector<1x384xf32>
      tpu.vector_store %arg7[%c25, %c0_134], %190 {strides = array<i32>} : memref<64x384xf32, #tpu.memory_space<vmem>>, vector<1x384xf32>,
      %c8_i32_135 = arith.constant 8 : i32
      %192 = arith.muli %arg0, %c8_i32_135 : i32
      %c3_i32_136 = arith.constant 3 : i32
      %193 = arith.addi %192, %c3_i32_136 : i32
      %194 = arith.index_cast %193 : i32 to index
      %c2_137 = arith.constant 2 : index
      %195 = memref.load %arg2[%194, %c2_137] : memref<16x8xi32, #tpu.memory_space<smem>>
      %196 = arith.index_cast %195 : i32 to index
      %c0_138 = arith.constant 0 : index
      %197 = vector.load %arg3[%196, %c0_138] : memref<256x384xf32, #tpu.memory_space<vmem>>, vector<1x384xf32>
      %c26 = arith.constant 26 : index
      %c0_139 = arith.constant 0 : index
      %198 = vector.load %arg7[%c26, %c0_139] : memref<64x384xf32, #tpu.memory_space<vmem>>, vector<1x384xf32>
      tpu.vector_store %arg7[%c26, %c0_139], %197 {strides = array<i32>} : memref<64x384xf32, #tpu.memory_space<vmem>>, vector<1x384xf32>,
      %c8_i32_140 = arith.constant 8 : i32
      %199 = arith.muli %arg0, %c8_i32_140 : i32
      %c3_i32_141 = arith.constant 3 : i32
      %200 = arith.addi %199, %c3_i32_141 : i32
      %201 = arith.index_cast %200 : i32 to index
      %c3_142 = arith.constant 3 : index
      %202 = memref.load %arg2[%201, %c3_142] : memref<16x8xi32, #tpu.memory_space<smem>>
      %203 = arith.index_cast %202 : i32 to index
      %c0_143 = arith.constant 0 : index
      %204 = vector.load %arg3[%203, %c0_143] : memref<256x384xf32, #tpu.memory_space<vmem>>, vector<1x384xf32>
      %c27 = arith.constant 27 : index
      %c0_144 = arith.constant 0 : index
      %205 = vector.load %arg7[%c27, %c0_144] : memref<64x384xf32, #tpu.memory_space<vmem>>, vector<1x384xf32>
      tpu.vector_store %arg7[%c27, %c0_144], %204 {strides = array<i32>} : memref<64x384xf32, #tpu.memory_space<vmem>>, vector<1x384xf32>,
      %c8_i32_145 = arith.constant 8 : i32
      %206 = arith.muli %arg0, %c8_i32_145 : i32
      %c3_i32_146 = arith.constant 3 : i32
      %207 = arith.addi %206, %c3_i32_146 : i32
      %208 = arith.index_cast %207 : i32 to index
      %c4_147 = arith.constant 4 : index
      %209 = memref.load %arg2[%208, %c4_147] : memref<16x8xi32, #tpu.memory_space<smem>>
      %210 = arith.index_cast %209 : i32 to index
      %c0_148 = arith.constant 0 : index
      %211 = vector.load %arg3[%210, %c0_148] : memref<256x384xf32, #tpu.memory_space<vmem>>, vector<1x384xf32>
      %c28 = arith.constant 28 : index
      %c0_149 = arith.constant 0 : index
      %212 = vector.load %arg7[%c28, %c0_149] : memref<64x384xf32, #tpu.memory_space<vmem>>, vector<1x384xf32>
      tpu.vector_store %arg7[%c28, %c0_149], %211 {strides = array<i32>} : memref<64x384xf32, #tpu.memory_space<vmem>>, vector<1x384xf32>,
      %c8_i32_150 = arith.constant 8 : i32
      %213 = arith.muli %arg0, %c8_i32_150 : i32
      %c3_i32_151 = arith.constant 3 : i32
      %214 = arith.addi %213, %c3_i32_151 : i32
      %215 = arith.index_cast %214 : i32 to index
      %c5_152 = arith.constant 5 : index
      %216 = memref.load %arg2[%215, %c5_152] : memref<16x8xi32, #tpu.memory_space<smem>>
      %217 = arith.index_cast %216 : i32 to index
      %c0_153 = arith.constant 0 : index
      %218 = vector.load %arg3[%217, %c0_153] : memref<256x384xf32, #tpu.memory_space<vmem>>, vector<1x384xf32>
      %c29 = arith.constant 29 : index
      %c0_154 = arith.constant 0 : index
      %219 = vector.load %arg7[%c29, %c0_154] : memref<64x384xf32, #tpu.memory_space<vmem>>, vector<1x384xf32>
      tpu.vector_store %arg7[%c29, %c0_154], %218 {strides = array<i32>} : memref<64x384xf32, #tpu.memory_space<vmem>>, vector<1x384xf32>,
      %c8_i32_155 = arith.constant 8 : i32
      %220 = arith.muli %arg0, %c8_i32_155 : i32
      %c3_i32_156 = arith.constant 3 : i32
      %221 = arith.addi %220, %c3_i32_156 : i32
      %222 = arith.index_cast %221 : i32 to index
      %c6_157 = arith.constant 6 : index
      %223 = memref.load %arg2[%222, %c6_157] : memref<16x8xi32, #tpu.memory_space<smem>>
      %224 = arith.index_cast %223 : i32 to index
      %c0_158 = arith.constant 0 : index
      %225 = vector.load %arg3[%224, %c0_158] : memref<256x384xf32, #tpu.memory_space<vmem>>, vector<1x384xf32>
      %c30 = arith.constant 30 : index
      %c0_159 = arith.constant 0 : index
      %226 = vector.load %arg7[%c30, %c0_159] : memref<64x384xf32, #tpu.memory_space<vmem>>, vector<1x384xf32>
      tpu.vector_store %arg7[%c30, %c0_159], %225 {strides = array<i32>} : memref<64x384xf32, #tpu.memory_space<vmem>>, vector<1x384xf32>,
      %c8_i32_160 = arith.constant 8 : i32
      %227 = arith.muli %arg0, %c8_i32_160 : i32
      %c3_i32_161 = arith.constant 3 : i32
      %228 = arith.addi %227, %c3_i32_161 : i32
      %229 = arith.index_cast %228 : i32 to index
      %c7_162 = arith.constant 7 : index
      %230 = memref.load %arg2[%229, %c7_162] : memref<16x8xi32, #tpu.memory_space<smem>>
      %231 = arith.index_cast %230 : i32 to index
      %c0_163 = arith.constant 0 : index
      %232 = vector.load %arg3[%231, %c0_163] : memref<256x384xf32, #tpu.memory_space<vmem>>, vector<1x384xf32>
      %c31 = arith.constant 31 : index
      %c0_164 = arith.constant 0 : index
      %233 = vector.load %arg7[%c31, %c0_164] : memref<64x384xf32, #tpu.memory_space<vmem>>, vector<1x384xf32>
      tpu.vector_store %arg7[%c31, %c0_164], %232 {strides = array<i32>} : memref<64x384xf32, #tpu.memory_space<vmem>>, vector<1x384xf32>,
      %c8_i32_165 = arith.constant 8 : i32
      %234 = arith.muli %arg0, %c8_i32_165 : i32
      %c4_i32 = arith.constant 4 : i32
      %235 = arith.addi %234, %c4_i32 : i32
      %236 = arith.index_cast %235 : i32 to index
      %c0_166 = arith.constant 0 : index
      %237 = memref.load %arg2[%236, %c0_166] : memref<16x8xi32, #tpu.memory_space<smem>>
      %238 = arith.index_cast %237 : i32 to index
      %c0_167 = arith.constant 0 : index
      %239 = vector.load %arg3[%238, %c0_167] : memref<256x384xf32, #tpu.memory_space<vmem>>, vector<1x384xf32>
      %c32 = arith.constant 32 : index
      %c0_168 = arith.constant 0 : index
      %240 = vector.load %arg7[%c32, %c0_168] : memref<64x384xf32, #tpu.memory_space<vmem>>, vector<1x384xf32>
      tpu.vector_store %arg7[%c32, %c0_168], %239 {strides = array<i32>} : memref<64x384xf32, #tpu.memory_space<vmem>>, vector<1x384xf32>,
      %c8_i32_169 = arith.constant 8 : i32
      %241 = arith.muli %arg0, %c8_i32_169 : i32
      %c4_i32_170 = arith.constant 4 : i32
      %242 = arith.addi %241, %c4_i32_170 : i32
      %243 = arith.index_cast %242 : i32 to index
      %c1_171 = arith.constant 1 : index
      %244 = memref.load %arg2[%243, %c1_171] : memref<16x8xi32, #tpu.memory_space<smem>>
      %245 = arith.index_cast %244 : i32 to index
      %c0_172 = arith.constant 0 : index
      %246 = vector.load %arg3[%245, %c0_172] : memref<256x384xf32, #tpu.memory_space<vmem>>, vector<1x384xf32>
      %c33 = arith.constant 33 : index
      %c0_173 = arith.constant 0 : index
      %247 = vector.load %arg7[%c33, %c0_173] : memref<64x384xf32, #tpu.memory_space<vmem>>, vector<1x384xf32>
      tpu.vector_store %arg7[%c33, %c0_173], %246 {strides = array<i32>} : memref<64x384xf32, #tpu.memory_space<vmem>>, vector<1x384xf32>,
      %c8_i32_174 = arith.constant 8 : i32
      %248 = arith.muli %arg0, %c8_i32_174 : i32
      %c4_i32_175 = arith.constant 4 : i32
      %249 = arith.addi %248, %c4_i32_175 : i32
      %250 = arith.index_cast %249 : i32 to index
      %c2_176 = arith.constant 2 : index
      %251 = memref.load %arg2[%250, %c2_176] : memref<16x8xi32, #tpu.memory_space<smem>>
      %252 = arith.index_cast %251 : i32 to index
      %c0_177 = arith.constant 0 : index
      %253 = vector.load %arg3[%252, %c0_177] : memref<256x384xf32, #tpu.memory_space<vmem>>, vector<1x384xf32>
      %c34 = arith.constant 34 : index
      %c0_178 = arith.constant 0 : index
      %254 = vector.load %arg7[%c34, %c0_178] : memref<64x384xf32, #tpu.memory_space<vmem>>, vector<1x384xf32>
      tpu.vector_store %arg7[%c34, %c0_178], %253 {strides = array<i32>} : memref<64x384xf32, #tpu.memory_space<vmem>>, vector<1x384xf32>,
      %c8_i32_179 = arith.constant 8 : i32
      %255 = arith.muli %arg0, %c8_i32_179 : i32
      %c4_i32_180 = arith.constant 4 : i32
      %256 = arith.addi %255, %c4_i32_180 : i32
      %257 = arith.index_cast %256 : i32 to index
      %c3_181 = arith.constant 3 : index
      %258 = memref.load %arg2[%257, %c3_181] : memref<16x8xi32, #tpu.memory_space<smem>>
      %259 = arith.index_cast %258 : i32 to index
      %c0_182 = arith.constant 0 : index
      %260 = vector.load %arg3[%259, %c0_182] : memref<256x384xf32, #tpu.memory_space<vmem>>, vector<1x384xf32>
      %c35 = arith.constant 35 : index
      %c0_183 = arith.constant 0 : index
      %261 = vector.load %arg7[%c35, %c0_183] : memref<64x384xf32, #tpu.memory_space<vmem>>, vector<1x384xf32>
      tpu.vector_store %arg7[%c35, %c0_183], %260 {strides = array<i32>} : memref<64x384xf32, #tpu.memory_space<vmem>>, vector<1x384xf32>,
      %c8_i32_184 = arith.constant 8 : i32
      %262 = arith.muli %arg0, %c8_i32_184 : i32
      %c4_i32_185 = arith.constant 4 : i32
      %263 = arith.addi %262, %c4_i32_185 : i32
      %264 = arith.index_cast %263 : i32 to index
      %c4_186 = arith.constant 4 : index
      %265 = memref.load %arg2[%264, %c4_186] : memref<16x8xi32, #tpu.memory_space<smem>>
      %266 = arith.index_cast %265 : i32 to index
      %c0_187 = arith.constant 0 : index
      %267 = vector.load %arg3[%266, %c0_187] : memref<256x384xf32, #tpu.memory_space<vmem>>, vector<1x384xf32>
      %c36 = arith.constant 36 : index
      %c0_188 = arith.constant 0 : index
      %268 = vector.load %arg7[%c36, %c0_188] : memref<64x384xf32, #tpu.memory_space<vmem>>, vector<1x384xf32>
      tpu.vector_store %arg7[%c36, %c0_188], %267 {strides = array<i32>} : memref<64x384xf32, #tpu.memory_space<vmem>>, vector<1x384xf32>,
      %c8_i32_189 = arith.constant 8 : i32
      %269 = arith.muli %arg0, %c8_i32_189 : i32
      %c4_i32_190 = arith.constant 4 : i32
      %270 = arith.addi %269, %c4_i32_190 : i32
      %271 = arith.index_cast %270 : i32 to index
      %c5_191 = arith.constant 5 : index
      %272 = memref.load %arg2[%271, %c5_191] : memref<16x8xi32, #tpu.memory_space<smem>>
      %273 = arith.index_cast %272 : i32 to index
      %c0_192 = arith.constant 0 : index
      %274 = vector.load %arg3[%273, %c0_192] : memref<256x384xf32, #tpu.memory_space<vmem>>, vector<1x384xf32>
      %c37 = arith.constant 37 : index
      %c0_193 = arith.constant 0 : index
      %275 = vector.load %arg7[%c37, %c0_193] : memref<64x384xf32, #tpu.memory_space<vmem>>, vector<1x384xf32>
      tpu.vector_store %arg7[%c37, %c0_193], %274 {strides = array<i32>} : memref<64x384xf32, #tpu.memory_space<vmem>>, vector<1x384xf32>,
      %c8_i32_194 = arith.constant 8 : i32
      %276 = arith.muli %arg0, %c8_i32_194 : i32
      %c4_i32_195 = arith.constant 4 : i32
      %277 = arith.addi %276, %c4_i32_195 : i32
      %278 = arith.index_cast %277 : i32 to index
      %c6_196 = arith.constant 6 : index
      %279 = memref.load %arg2[%278, %c6_196] : memref<16x8xi32, #tpu.memory_space<smem>>
      %280 = arith.index_cast %279 : i32 to index
      %c0_197 = arith.constant 0 : index
      %281 = vector.load %arg3[%280, %c0_197] : memref<256x384xf32, #tpu.memory_space<vmem>>, vector<1x384xf32>
      %c38 = arith.constant 38 : index
      %c0_198 = arith.constant 0 : index
      %282 = vector.load %arg7[%c38, %c0_198] : memref<64x384xf32, #tpu.memory_space<vmem>>, vector<1x384xf32>
      tpu.vector_store %arg7[%c38, %c0_198], %281 {strides = array<i32>} : memref<64x384xf32, #tpu.memory_space<vmem>>, vector<1x384xf32>,
      %c8_i32_199 = arith.constant 8 : i32
      %283 = arith.muli %arg0, %c8_i32_199 : i32
      %c4_i32_200 = arith.constant 4 : i32
      %284 = arith.addi %283, %c4_i32_200 : i32
      %285 = arith.index_cast %284 : i32 to index
      %c7_201 = arith.constant 7 : index
      %286 = memref.load %arg2[%285, %c7_201] : memref<16x8xi32, #tpu.memory_space<smem>>
      %287 = arith.index_cast %286 : i32 to index
      %c0_202 = arith.constant 0 : index
      %288 = vector.load %arg3[%287, %c0_202] : memref<256x384xf32, #tpu.memory_space<vmem>>, vector<1x384xf32>
      %c39 = arith.constant 39 : index
      %c0_203 = arith.constant 0 : index
      %289 = vector.load %arg7[%c39, %c0_203] : memref<64x384xf32, #tpu.memory_space<vmem>>, vector<1x384xf32>
      tpu.vector_store %arg7[%c39, %c0_203], %288 {strides = array<i32>} : memref<64x384xf32, #tpu.memory_space<vmem>>, vector<1x384xf32>,
      %c8_i32_204 = arith.constant 8 : i32
      %290 = arith.muli %arg0, %c8_i32_204 : i32
      %c5_i32 = arith.constant 5 : i32
      %291 = arith.addi %290, %c5_i32 : i32
      %292 = arith.index_cast %291 : i32 to index
      %c0_205 = arith.constant 0 : index
      %293 = memref.load %arg2[%292, %c0_205] : memref<16x8xi32, #tpu.memory_space<smem>>
      %294 = arith.index_cast %293 : i32 to index
      %c0_206 = arith.constant 0 : index
      %295 = vector.load %arg3[%294, %c0_206] : memref<256x384xf32, #tpu.memory_space<vmem>>, vector<1x384xf32>
      %c40 = arith.constant 40 : index
      %c0_207 = arith.constant 0 : index
      %296 = vector.load %arg7[%c40, %c0_207] : memref<64x384xf32, #tpu.memory_space<vmem>>, vector<1x384xf32>
      tpu.vector_store %arg7[%c40, %c0_207], %295 {strides = array<i32>} : memref<64x384xf32, #tpu.memory_space<vmem>>, vector<1x384xf32>,
      %c8_i32_208 = arith.constant 8 : i32
      %297 = arith.muli %arg0, %c8_i32_208 : i32
      %c5_i32_209 = arith.constant 5 : i32
      %298 = arith.addi %297, %c5_i32_209 : i32
      %299 = arith.index_cast %298 : i32 to index
      %c1_210 = arith.constant 1 : index
      %300 = memref.load %arg2[%299, %c1_210] : memref<16x8xi32, #tpu.memory_space<smem>>
      %301 = arith.index_cast %300 : i32 to index
      %c0_211 = arith.constant 0 : index
      %302 = vector.load %arg3[%301, %c0_211] : memref<256x384xf32, #tpu.memory_space<vmem>>, vector<1x384xf32>
      %c41 = arith.constant 41 : index
      %c0_212 = arith.constant 0 : index
      %303 = vector.load %arg7[%c41, %c0_212] : memref<64x384xf32, #tpu.memory_space<vmem>>, vector<1x384xf32>
      tpu.vector_store %arg7[%c41, %c0_212], %302 {strides = array<i32>} : memref<64x384xf32, #tpu.memory_space<vmem>>, vector<1x384xf32>,
      %c8_i32_213 = arith.constant 8 : i32
      %304 = arith.muli %arg0, %c8_i32_213 : i32
      %c5_i32_214 = arith.constant 5 : i32
      %305 = arith.addi %304, %c5_i32_214 : i32
      %306 = arith.index_cast %305 : i32 to index
      %c2_215 = arith.constant 2 : index
      %307 = memref.load %arg2[%306, %c2_215] : memref<16x8xi32, #tpu.memory_space<smem>>
      %308 = arith.index_cast %307 : i32 to index
      %c0_216 = arith.constant 0 : index
      %309 = vector.load %arg3[%308, %c0_216] : memref<256x384xf32, #tpu.memory_space<vmem>>, vector<1x384xf32>
      %c42 = arith.constant 42 : index
      %c0_217 = arith.constant 0 : index
      %310 = vector.load %arg7[%c42, %c0_217] : memref<64x384xf32, #tpu.memory_space<vmem>>, vector<1x384xf32>
      tpu.vector_store %arg7[%c42, %c0_217], %309 {strides = array<i32>} : memref<64x384xf32, #tpu.memory_space<vmem>>, vector<1x384xf32>,
      %c8_i32_218 = arith.constant 8 : i32
      %311 = arith.muli %arg0, %c8_i32_218 : i32
      %c5_i32_219 = arith.constant 5 : i32
      %312 = arith.addi %311, %c5_i32_219 : i32
      %313 = arith.index_cast %312 : i32 to index
      %c3_220 = arith.constant 3 : index
      %314 = memref.load %arg2[%313, %c3_220] : memref<16x8xi32, #tpu.memory_space<smem>>
      %315 = arith.index_cast %314 : i32 to index
      %c0_221 = arith.constant 0 : index
      %316 = vector.load %arg3[%315, %c0_221] : memref<256x384xf32, #tpu.memory_space<vmem>>, vector<1x384xf32>
      %c43 = arith.constant 43 : index
      %c0_222 = arith.constant 0 : index
      %317 = vector.load %arg7[%c43, %c0_222] : memref<64x384xf32, #tpu.memory_space<vmem>>, vector<1x384xf32>
      tpu.vector_store %arg7[%c43, %c0_222], %316 {strides = array<i32>} : memref<64x384xf32, #tpu.memory_space<vmem>>, vector<1x384xf32>,
      %c8_i32_223 = arith.constant 8 : i32
      %318 = arith.muli %arg0, %c8_i32_223 : i32
      %c5_i32_224 = arith.constant 5 : i32
      %319 = arith.addi %318, %c5_i32_224 : i32
      %320 = arith.index_cast %319 : i32 to index
      %c4_225 = arith.constant 4 : index
      %321 = memref.load %arg2[%320, %c4_225] : memref<16x8xi32, #tpu.memory_space<smem>>
      %322 = arith.index_cast %321 : i32 to index
      %c0_226 = arith.constant 0 : index
      %323 = vector.load %arg3[%322, %c0_226] : memref<256x384xf32, #tpu.memory_space<vmem>>, vector<1x384xf32>
      %c44 = arith.constant 44 : index
      %c0_227 = arith.constant 0 : index
      %324 = vector.load %arg7[%c44, %c0_227] : memref<64x384xf32, #tpu.memory_space<vmem>>, vector<1x384xf32>
      tpu.vector_store %arg7[%c44, %c0_227], %323 {strides = array<i32>} : memref<64x384xf32, #tpu.memory_space<vmem>>, vector<1x384xf32>,
      %c8_i32_228 = arith.constant 8 : i32
      %325 = arith.muli %arg0, %c8_i32_228 : i32
      %c5_i32_229 = arith.constant 5 : i32
      %326 = arith.addi %325, %c5_i32_229 : i32
      %327 = arith.index_cast %326 : i32 to index
      %c5_230 = arith.constant 5 : index
      %328 = memref.load %arg2[%327, %c5_230] : memref<16x8xi32, #tpu.memory_space<smem>>
      %329 = arith.index_cast %328 : i32 to index
      %c0_231 = arith.constant 0 : index
      %330 = vector.load %arg3[%329, %c0_231] : memref<256x384xf32, #tpu.memory_space<vmem>>, vector<1x384xf32>
      %c45 = arith.constant 45 : index
      %c0_232 = arith.constant 0 : index
      %331 = vector.load %arg7[%c45, %c0_232] : memref<64x384xf32, #tpu.memory_space<vmem>>, vector<1x384xf32>
      tpu.vector_store %arg7[%c45, %c0_232], %330 {strides = array<i32>} : memref<64x384xf32, #tpu.memory_space<vmem>>, vector<1x384xf32>,
      %c8_i32_233 = arith.constant 8 : i32
      %332 = arith.muli %arg0, %c8_i32_233 : i32
      %c5_i32_234 = arith.constant 5 : i32
      %333 = arith.addi %332, %c5_i32_234 : i32
      %334 = arith.index_cast %333 : i32 to index
      %c6_235 = arith.constant 6 : index
      %335 = memref.load %arg2[%334, %c6_235] : memref<16x8xi32, #tpu.memory_space<smem>>
      %336 = arith.index_cast %335 : i32 to index
      %c0_236 = arith.constant 0 : index
      %337 = vector.load %arg3[%336, %c0_236] : memref<256x384xf32, #tpu.memory_space<vmem>>, vector<1x384xf32>
      %c46 = arith.constant 46 : index
      %c0_237 = arith.constant 0 : index
      %338 = vector.load %arg7[%c46, %c0_237] : memref<64x384xf32, #tpu.memory_space<vmem>>, vector<1x384xf32>
      tpu.vector_store %arg7[%c46, %c0_237], %337 {strides = array<i32>} : memref<64x384xf32, #tpu.memory_space<vmem>>, vector<1x384xf32>,
      %c8_i32_238 = arith.constant 8 : i32
      %339 = arith.muli %arg0, %c8_i32_238 : i32
      %c5_i32_239 = arith.constant 5 : i32
      %340 = arith.addi %339, %c5_i32_239 : i32
      %341 = arith.index_cast %340 : i32 to index
      %c7_240 = arith.constant 7 : index
      %342 = memref.load %arg2[%341, %c7_240] : memref<16x8xi32, #tpu.memory_space<smem>>
      %343 = arith.index_cast %342 : i32 to index
      %c0_241 = arith.constant 0 : index
      %344 = vector.load %arg3[%343, %c0_241] : memref<256x384xf32, #tpu.memory_space<vmem>>, vector<1x384xf32>
      %c47 = arith.constant 47 : index
      %c0_242 = arith.constant 0 : index
      %345 = vector.load %arg7[%c47, %c0_242] : memref<64x384xf32, #tpu.memory_space<vmem>>, vector<1x384xf32>
      tpu.vector_store %arg7[%c47, %c0_242], %344 {strides = array<i32>} : memref<64x384xf32, #tpu.memory_space<vmem>>, vector<1x384xf32>,
      %c8_i32_243 = arith.constant 8 : i32
      %346 = arith.muli %arg0, %c8_i32_243 : i32
      %c6_i32 = arith.constant 6 : i32
      %347 = arith.addi %346, %c6_i32 : i32
      %348 = arith.index_cast %347 : i32 to index
      %c0_244 = arith.constant 0 : index
      %349 = memref.load %arg2[%348, %c0_244] : memref<16x8xi32, #tpu.memory_space<smem>>
      %350 = arith.index_cast %349 : i32 to index
      %c0_245 = arith.constant 0 : index
      %351 = vector.load %arg3[%350, %c0_245] : memref<256x384xf32, #tpu.memory_space<vmem>>, vector<1x384xf32>
      %c48 = arith.constant 48 : index
      %c0_246 = arith.constant 0 : index
      %352 = vector.load %arg7[%c48, %c0_246] : memref<64x384xf32, #tpu.memory_space<vmem>>, vector<1x384xf32>
      tpu.vector_store %arg7[%c48, %c0_246], %351 {strides = array<i32>} : memref<64x384xf32, #tpu.memory_space<vmem>>, vector<1x384xf32>,
      %c8_i32_247 = arith.constant 8 : i32
      %353 = arith.muli %arg0, %c8_i32_247 : i32
      %c6_i32_248 = arith.constant 6 : i32
      %354 = arith.addi %353, %c6_i32_248 : i32
      %355 = arith.index_cast %354 : i32 to index
      %c1_249 = arith.constant 1 : index
      %356 = memref.load %arg2[%355, %c1_249] : memref<16x8xi32, #tpu.memory_space<smem>>
      %357 = arith.index_cast %356 : i32 to index
      %c0_250 = arith.constant 0 : index
      %358 = vector.load %arg3[%357, %c0_250] : memref<256x384xf32, #tpu.memory_space<vmem>>, vector<1x384xf32>
      %c49 = arith.constant 49 : index
      %c0_251 = arith.constant 0 : index
      %359 = vector.load %arg7[%c49, %c0_251] : memref<64x384xf32, #tpu.memory_space<vmem>>, vector<1x384xf32>
      tpu.vector_store %arg7[%c49, %c0_251], %358 {strides = array<i32>} : memref<64x384xf32, #tpu.memory_space<vmem>>, vector<1x384xf32>,
      %c8_i32_252 = arith.constant 8 : i32
      %360 = arith.muli %arg0, %c8_i32_252 : i32
      %c6_i32_253 = arith.constant 6 : i32
      %361 = arith.addi %360, %c6_i32_253 : i32
      %362 = arith.index_cast %361 : i32 to index
      %c2_254 = arith.constant 2 : index
      %363 = memref.load %arg2[%362, %c2_254] : memref<16x8xi32, #tpu.memory_space<smem>>
      %364 = arith.index_cast %363 : i32 to index
      %c0_255 = arith.constant 0 : index
      %365 = vector.load %arg3[%364, %c0_255] : memref<256x384xf32, #tpu.memory_space<vmem>>, vector<1x384xf32>
      %c50 = arith.constant 50 : index
      %c0_256 = arith.constant 0 : index
      %366 = vector.load %arg7[%c50, %c0_256] : memref<64x384xf32, #tpu.memory_space<vmem>>, vector<1x384xf32>
      tpu.vector_store %arg7[%c50, %c0_256], %365 {strides = array<i32>} : memref<64x384xf32, #tpu.memory_space<vmem>>, vector<1x384xf32>,
      %c8_i32_257 = arith.constant 8 : i32
      %367 = arith.muli %arg0, %c8_i32_257 : i32
      %c6_i32_258 = arith.constant 6 : i32
      %368 = arith.addi %367, %c6_i32_258 : i32
      %369 = arith.index_cast %368 : i32 to index
      %c3_259 = arith.constant 3 : index
      %370 = memref.load %arg2[%369, %c3_259] : memref<16x8xi32, #tpu.memory_space<smem>>
      %371 = arith.index_cast %370 : i32 to index
      %c0_260 = arith.constant 0 : index
      %372 = vector.load %arg3[%371, %c0_260] : memref<256x384xf32, #tpu.memory_space<vmem>>, vector<1x384xf32>
      %c51 = arith.constant 51 : index
      %c0_261 = arith.constant 0 : index
      %373 = vector.load %arg7[%c51, %c0_261] : memref<64x384xf32, #tpu.memory_space<vmem>>, vector<1x384xf32>
      tpu.vector_store %arg7[%c51, %c0_261], %372 {strides = array<i32>} : memref<64x384xf32, #tpu.memory_space<vmem>>, vector<1x384xf32>,
      %c8_i32_262 = arith.constant 8 : i32
      %374 = arith.muli %arg0, %c8_i32_262 : i32
      %c6_i32_263 = arith.constant 6 : i32
      %375 = arith.addi %374, %c6_i32_263 : i32
      %376 = arith.index_cast %375 : i32 to index
      %c4_264 = arith.constant 4 : index
      %377 = memref.load %arg2[%376, %c4_264] : memref<16x8xi32, #tpu.memory_space<smem>>
      %378 = arith.index_cast %377 : i32 to index
      %c0_265 = arith.constant 0 : index
      %379 = vector.load %arg3[%378, %c0_265] : memref<256x384xf32, #tpu.memory_space<vmem>>, vector<1x384xf32>
      %c52 = arith.constant 52 : index
      %c0_266 = arith.constant 0 : index
      %380 = vector.load %arg7[%c52, %c0_266] : memref<64x384xf32, #tpu.memory_space<vmem>>, vector<1x384xf32>
      tpu.vector_store %arg7[%c52, %c0_266], %379 {strides = array<i32>} : memref<64x384xf32, #tpu.memory_space<vmem>>, vector<1x384xf32>,
      %c8_i32_267 = arith.constant 8 : i32
      %381 = arith.muli %arg0, %c8_i32_267 : i32
      %c6_i32_268 = arith.constant 6 : i32
      %382 = arith.addi %381, %c6_i32_268 : i32
      %383 = arith.index_cast %382 : i32 to index
      %c5_269 = arith.constant 5 : index
      %384 = memref.load %arg2[%383, %c5_269] : memref<16x8xi32, #tpu.memory_space<smem>>
      %385 = arith.index_cast %384 : i32 to index
      %c0_270 = arith.constant 0 : index
      %386 = vector.load %arg3[%385, %c0_270] : memref<256x384xf32, #tpu.memory_space<vmem>>, vector<1x384xf32>
      %c53 = arith.constant 53 : index
      %c0_271 = arith.constant 0 : index
      %387 = vector.load %arg7[%c53, %c0_271] : memref<64x384xf32, #tpu.memory_space<vmem>>, vector<1x384xf32>
      tpu.vector_store %arg7[%c53, %c0_271], %386 {strides = array<i32>} : memref<64x384xf32, #tpu.memory_space<vmem>>, vector<1x384xf32>,
      %c8_i32_272 = arith.constant 8 : i32
      %388 = arith.muli %arg0, %c8_i32_272 : i32
      %c6_i32_273 = arith.constant 6 : i32
      %389 = arith.addi %388, %c6_i32_273 : i32
      %390 = arith.index_cast %389 : i32 to index
      %c6_274 = arith.constant 6 : index
      %391 = memref.load %arg2[%390, %c6_274] : memref<16x8xi32, #tpu.memory_space<smem>>
      %392 = arith.index_cast %391 : i32 to index
      %c0_275 = arith.constant 0 : index
      %393 = vector.load %arg3[%392, %c0_275] : memref<256x384xf32, #tpu.memory_space<vmem>>, vector<1x384xf32>
      %c54 = arith.constant 54 : index
      %c0_276 = arith.constant 0 : index
      %394 = vector.load %arg7[%c54, %c0_276] : memref<64x384xf32, #tpu.memory_space<vmem>>, vector<1x384xf32>
      tpu.vector_store %arg7[%c54, %c0_276], %393 {strides = array<i32>} : memref<64x384xf32, #tpu.memory_space<vmem>>, vector<1x384xf32>,
      %c8_i32_277 = arith.constant 8 : i32
      %395 = arith.muli %arg0, %c8_i32_277 : i32
      %c6_i32_278 = arith.constant 6 : i32
      %396 = arith.addi %395, %c6_i32_278 : i32
      %397 = arith.index_cast %396 : i32 to index
      %c7_279 = arith.constant 7 : index
      %398 = memref.load %arg2[%397, %c7_279] : memref<16x8xi32, #tpu.memory_space<smem>>
      %399 = arith.index_cast %398 : i32 to index
      %c0_280 = arith.constant 0 : index
      %400 = vector.load %arg3[%399, %c0_280] : memref<256x384xf32, #tpu.memory_space<vmem>>, vector<1x384xf32>
      %c55 = arith.constant 55 : index
      %c0_281 = arith.constant 0 : index
      %401 = vector.load %arg7[%c55, %c0_281] : memref<64x384xf32, #tpu.memory_space<vmem>>, vector<1x384xf32>
      tpu.vector_store %arg7[%c55, %c0_281], %400 {strides = array<i32>} : memref<64x384xf32, #tpu.memory_space<vmem>>, vector<1x384xf32>,
      %c8_i32_282 = arith.constant 8 : i32
      %402 = arith.muli %arg0, %c8_i32_282 : i32
      %c7_i32 = arith.constant 7 : i32
      %403 = arith.addi %402, %c7_i32 : i32
      %404 = arith.index_cast %403 : i32 to index
      %c0_283 = arith.constant 0 : index
      %405 = memref.load %arg2[%404, %c0_283] : memref<16x8xi32, #tpu.memory_space<smem>>
      %406 = arith.index_cast %405 : i32 to index
      %c0_284 = arith.constant 0 : index
      %407 = vector.load %arg3[%406, %c0_284] : memref<256x384xf32, #tpu.memory_space<vmem>>, vector<1x384xf32>
      %c56 = arith.constant 56 : index
      %c0_285 = arith.constant 0 : index
      %408 = vector.load %arg7[%c56, %c0_285] : memref<64x384xf32, #tpu.memory_space<vmem>>, vector<1x384xf32>
      tpu.vector_store %arg7[%c56, %c0_285], %407 {strides = array<i32>} : memref<64x384xf32, #tpu.memory_space<vmem>>, vector<1x384xf32>,
      %c8_i32_286 = arith.constant 8 : i32
      %409 = arith.muli %arg0, %c8_i32_286 : i32
      %c7_i32_287 = arith.constant 7 : i32
      %410 = arith.addi %409, %c7_i32_287 : i32
      %411 = arith.index_cast %410 : i32 to index
      %c1_288 = arith.constant 1 : index
      %412 = memref.load %arg2[%411, %c1_288] : memref<16x8xi32, #tpu.memory_space<smem>>
      %413 = arith.index_cast %412 : i32 to index
      %c0_289 = arith.constant 0 : index
      %414 = vector.load %arg3[%413, %c0_289] : memref<256x384xf32, #tpu.memory_space<vmem>>, vector<1x384xf32>
      %c57 = arith.constant 57 : index
      %c0_290 = arith.constant 0 : index
      %415 = vector.load %arg7[%c57, %c0_290] : memref<64x384xf32, #tpu.memory_space<vmem>>, vector<1x384xf32>
      tpu.vector_store %arg7[%c57, %c0_290], %414 {strides = array<i32>} : memref<64x384xf32, #tpu.memory_space<vmem>>, vector<1x384xf32>,
      %c8_i32_291 = arith.constant 8 : i32
      %416 = arith.muli %arg0, %c8_i32_291 : i32
      %c7_i32_292 = arith.constant 7 : i32
      %417 = arith.addi %416, %c7_i32_292 : i32
      %418 = arith.index_cast %417 : i32 to index
      %c2_293 = arith.constant 2 : index
      %419 = memref.load %arg2[%418, %c2_293] : memref<16x8xi32, #tpu.memory_space<smem>>
      %420 = arith.index_cast %419 : i32 to index
      %c0_294 = arith.constant 0 : index
      %421 = vector.load %arg3[%420, %c0_294] : memref<256x384xf32, #tpu.memory_space<vmem>>, vector<1x384xf32>
      %c58 = arith.constant 58 : index
      %c0_295 = arith.constant 0 : index
      %422 = vector.load %arg7[%c58, %c0_295] : memref<64x384xf32, #tpu.memory_space<vmem>>, vector<1x384xf32>
      tpu.vector_store %arg7[%c58, %c0_295], %421 {strides = array<i32>} : memref<64x384xf32, #tpu.memory_space<vmem>>, vector<1x384xf32>,
      %c8_i32_296 = arith.constant 8 : i32
      %423 = arith.muli %arg0, %c8_i32_296 : i32
      %c7_i32_297 = arith.constant 7 : i32
      %424 = arith.addi %423, %c7_i32_297 : i32
      %425 = arith.index_cast %424 : i32 to index
      %c3_298 = arith.constant 3 : index
      %426 = memref.load %arg2[%425, %c3_298] : memref<16x8xi32, #tpu.memory_space<smem>>
      %427 = arith.index_cast %426 : i32 to index
      %c0_299 = arith.constant 0 : index
      %428 = vector.load %arg3[%427, %c0_299] : memref<256x384xf32, #tpu.memory_space<vmem>>, vector<1x384xf32>
      %c59 = arith.constant 59 : index
      %c0_300 = arith.constant 0 : index
      %429 = vector.load %arg7[%c59, %c0_300] : memref<64x384xf32, #tpu.memory_space<vmem>>, vector<1x384xf32>
      tpu.vector_store %arg7[%c59, %c0_300], %428 {strides = array<i32>} : memref<64x384xf32, #tpu.memory_space<vmem>>, vector<1x384xf32>,
      %c8_i32_301 = arith.constant 8 : i32
      %430 = arith.muli %arg0, %c8_i32_301 : i32
      %c7_i32_302 = arith.constant 7 : i32
      %431 = arith.addi %430, %c7_i32_302 : i32
      %432 = arith.index_cast %431 : i32 to index
      %c4_303 = arith.constant 4 : index
      %433 = memref.load %arg2[%432, %c4_303] : memref<16x8xi32, #tpu.memory_space<smem>>
      %434 = arith.index_cast %433 : i32 to index
      %c0_304 = arith.constant 0 : index
      %435 = vector.load %arg3[%434, %c0_304] : memref<256x384xf32, #tpu.memory_space<vmem>>, vector<1x384xf32>
      %c60 = arith.constant 60 : index
      %c0_305 = arith.constant 0 : index
      %436 = vector.load %arg7[%c60, %c0_305] : memref<64x384xf32, #tpu.memory_space<vmem>>, vector<1x384xf32>
      tpu.vector_store %arg7[%c60, %c0_305], %435 {strides = array<i32>} : memref<64x384xf32, #tpu.memory_space<vmem>>, vector<1x384xf32>,
      %c8_i32_306 = arith.constant 8 : i32
      %437 = arith.muli %arg0, %c8_i32_306 : i32
      %c7_i32_307 = arith.constant 7 : i32
      %438 = arith.addi %437, %c7_i32_307 : i32
      %439 = arith.index_cast %438 : i32 to index
      %c5_308 = arith.constant 5 : index
      %440 = memref.load %arg2[%439, %c5_308] : memref<16x8xi32, #tpu.memory_space<smem>>
      %441 = arith.index_cast %440 : i32 to index
      %c0_309 = arith.constant 0 : index
      %442 = vector.load %arg3[%441, %c0_309] : memref<256x384xf32, #tpu.memory_space<vmem>>, vector<1x384xf32>
      %c61 = arith.constant 61 : index
      %c0_310 = arith.constant 0 : index
      %443 = vector.load %arg7[%c61, %c0_310] : memref<64x384xf32, #tpu.memory_space<vmem>>, vector<1x384xf32>
      tpu.vector_store %arg7[%c61, %c0_310], %442 {strides = array<i32>} : memref<64x384xf32, #tpu.memory_space<vmem>>, vector<1x384xf32>,
      %c8_i32_311 = arith.constant 8 : i32
      %444 = arith.muli %arg0, %c8_i32_311 : i32
      %c7_i32_312 = arith.constant 7 : i32
      %445 = arith.addi %444, %c7_i32_312 : i32
      %446 = arith.index_cast %445 : i32 to index
      %c6_313 = arith.constant 6 : index
      %447 = memref.load %arg2[%446, %c6_313] : memref<16x8xi32, #tpu.memory_space<smem>>
      %448 = arith.index_cast %447 : i32 to index
      %c0_314 = arith.constant 0 : index
      %449 = vector.load %arg3[%448, %c0_314] : memref<256x384xf32, #tpu.memory_space<vmem>>, vector<1x384xf32>
      %c62 = arith.constant 62 : index
      %c0_315 = arith.constant 0 : index
      %450 = vector.load %arg7[%c62, %c0_315] : memref<64x384xf32, #tpu.memory_space<vmem>>, vector<1x384xf32>
      tpu.vector_store %arg7[%c62, %c0_315], %449 {strides = array<i32>} : memref<64x384xf32, #tpu.memory_space<vmem>>, vector<1x384xf32>,
      %c8_i32_316 = arith.constant 8 : i32
      %451 = arith.muli %arg0, %c8_i32_316 : i32
      %c7_i32_317 = arith.constant 7 : i32
      %452 = arith.addi %451, %c7_i32_317 : i32
      %453 = arith.index_cast %452 : i32 to index
      %c7_318 = arith.constant 7 : index
      %454 = memref.load %arg2[%453, %c7_318] : memref<16x8xi32, #tpu.memory_space<smem>>
      %455 = arith.index_cast %454 : i32 to index
      %c0_319 = arith.constant 0 : index
      %456 = vector.load %arg3[%455, %c0_319] : memref<256x384xf32, #tpu.memory_space<vmem>>, vector<1x384xf32>
      %c63 = arith.constant 63 : index
      %c0_320 = arith.constant 0 : index
      %457 = vector.load %arg7[%c63, %c0_320] : memref<64x384xf32, #tpu.memory_space<vmem>>, vector<1x384xf32>
      tpu.vector_store %arg7[%c63, %c0_320], %456 {strides = array<i32>} : memref<64x384xf32, #tpu.memory_space<vmem>>, vector<1x384xf32>,
      %c0_321 = arith.constant 0 : index
      %c0_322 = arith.constant 0 : index
      %458 = vector.load %arg7[%c0_321, %c0_322] : memref<64x384xf32, #tpu.memory_space<vmem>>, vector<64x384xf32>
      %459 = arith.mulf %458, %458 : vector<64x384xf32>
      %cst_323 = arith.constant dense<0.000000e+00> : vector<64xf32>
      %460 = vector.multi_reduction <add>, %459, %cst_323 [1] : vector<64x384xf32> to vector<64xf32>
      %461 = vector.shape_cast %460 : vector<64xf32> to vector<64x1xf32>
      %cst_324 = arith.constant 1.000000e-30 : f32
      %462 = vector.broadcast %cst_324 : f32 to vector<64x1xf32>
      %463 = arith.maximumf %461, %462 : vector<64x1xf32>
      %464 = math.rsqrt %463 : vector<64x1xf32>
      %cst_325 = arith.constant 1.000000e+00 : f32
      %465 = vector.broadcast %cst_325 : f32 to vector<64x1xf32>
      %466 = arith.cmpf ogt, %461, %465 : vector<64x1xf32>
      %cst_326 = arith.constant 1.000000e+00 : f32
      %467 = vector.broadcast %cst_326 : f32 to vector<64x1xf32>
      %468 = arith.mulf %467, %464 : vector<64x1xf32>
      %cst_327 = arith.constant 1.000000e+00 : f32
      %469 = vector.broadcast %cst_327 : f32 to vector<64x1xf32>
      %470 = arith.select %466, %468, %469 : vector<64x1xi1>, vector<64x1xf32>
      %471 = vector.broadcast %470 : vector<64x1xf32> to vector<64x384xf32>
      %472 = arith.mulf %458, %471 : vector<64x384xf32>
      %473 = vector.extract_strided_slice %472 {offsets = [0, 0], sizes = [8, 384], strides = [1, 1]} : vector<64x384xf32> to vector<8x384xf32>
      %cst_328 = arith.constant dense<0.000000e+00> : vector<384xf32>
      %474 = vector.multi_reduction <add>, %473, %cst_328 [0] : vector<8x384xf32> to vector<384xf32>
      %475 = vector.shape_cast %474 : vector<384xf32> to vector<1x384xf32>
      %cst_329 = arith.constant 1.250000e-01 : f32
      %476 = vector.broadcast %cst_329 : f32 to vector<1x384xf32>
      %477 = arith.mulf %475, %476 : vector<1x384xf32>
      %c0_330 = arith.constant 0 : index
      %c0_331 = arith.constant 0 : index
      %478 = vector.load %arg8[%c0_330, %c0_331] : memref<8x384xf32, #tpu.memory_space<vmem>>, vector<1x384xf32>
      tpu.vector_store %arg8[%c0_330, %c0_331], %477 {strides = array<i32>} : memref<8x384xf32, #tpu.memory_space<vmem>>, vector<1x384xf32>,
      %479 = vector.extract_strided_slice %472 {offsets = [8, 0], sizes = [8, 384], strides = [1, 1]} : vector<64x384xf32> to vector<8x384xf32>
      %cst_332 = arith.constant dense<0.000000e+00> : vector<384xf32>
      %480 = vector.multi_reduction <add>, %479, %cst_332 [0] : vector<8x384xf32> to vector<384xf32>
      %481 = vector.shape_cast %480 : vector<384xf32> to vector<1x384xf32>
      %cst_333 = arith.constant 1.250000e-01 : f32
      %482 = vector.broadcast %cst_333 : f32 to vector<1x384xf32>
      %483 = arith.mulf %481, %482 : vector<1x384xf32>
      %c1_334 = arith.constant 1 : index
      %c0_335 = arith.constant 0 : index
      %484 = vector.load %arg8[%c1_334, %c0_335] : memref<8x384xf32, #tpu.memory_space<vmem>>, vector<1x384xf32>
      tpu.vector_store %arg8[%c1_334, %c0_335], %483 {strides = array<i32>} : memref<8x384xf32, #tpu.memory_space<vmem>>, vector<1x384xf32>,
      %485 = vector.extract_strided_slice %472 {offsets = [16, 0], sizes = [8, 384], strides = [1, 1]} : vector<64x384xf32> to vector<8x384xf32>
      %cst_336 = arith.constant dense<0.000000e+00> : vector<384xf32>
      %486 = vector.multi_reduction <add>, %485, %cst_336 [0] : vector<8x384xf32> to vector<384xf32>
      %487 = vector.shape_cast %486 : vector<384xf32> to vector<1x384xf32>
      %cst_337 = arith.constant 1.250000e-01 : f32
      %488 = vector.broadcast %cst_337 : f32 to vector<1x384xf32>
      %489 = arith.mulf %487, %488 : vector<1x384xf32>
      %c2_338 = arith.constant 2 : index
      %c0_339 = arith.constant 0 : index
      %490 = vector.load %arg8[%c2_338, %c0_339] : memref<8x384xf32, #tpu.memory_space<vmem>>, vector<1x384xf32>
      tpu.vector_store %arg8[%c2_338, %c0_339], %489 {strides = array<i32>} : memref<8x384xf32, #tpu.memory_space<vmem>>, vector<1x384xf32>,
      %491 = vector.extract_strided_slice %472 {offsets = [24, 0], sizes = [8, 384], strides = [1, 1]} : vector<64x384xf32> to vector<8x384xf32>
      %cst_340 = arith.constant dense<0.000000e+00> : vector<384xf32>
      %492 = vector.multi_reduction <add>, %491, %cst_340 [0] : vector<8x384xf32> to vector<384xf32>
      %493 = vector.shape_cast %492 : vector<384xf32> to vector<1x384xf32>
      %cst_341 = arith.constant 1.250000e-01 : f32
      %494 = vector.broadcast %cst_341 : f32 to vector<1x384xf32>
      %495 = arith.mulf %493, %494 : vector<1x384xf32>
      %c3_342 = arith.constant 3 : index
      %c0_343 = arith.constant 0 : index
      %496 = vector.load %arg8[%c3_342, %c0_343] : memref<8x384xf32, #tpu.memory_space<vmem>>, vector<1x384xf32>
      tpu.vector_store %arg8[%c3_342, %c0_343], %495 {strides = array<i32>} : memref<8x384xf32, #tpu.memory_space<vmem>>, vector<1x384xf32>,
      %497 = vector.extract_strided_slice %472 {offsets = [32, 0], sizes = [8, 384], strides = [1, 1]} : vector<64x384xf32> to vector<8x384xf32>
      %cst_344 = arith.constant dense<0.000000e+00> : vector<384xf32>
      %498 = vector.multi_reduction <add>, %497, %cst_344 [0] : vector<8x384xf32> to vector<384xf32>
      %499 = vector.shape_cast %498 : vector<384xf32> to vector<1x384xf32>
      %cst_345 = arith.constant 1.250000e-01 : f32
      %500 = vector.broadcast %cst_345 : f32 to vector<1x384xf32>
      %501 = arith.mulf %499, %500 : vector<1x384xf32>
      %c4_346 = arith.constant 4 : index
      %c0_347 = arith.constant 0 : index
      %502 = vector.load %arg8[%c4_346, %c0_347] : memref<8x384xf32, #tpu.memory_space<vmem>>, vector<1x384xf32>
      tpu.vector_store %arg8[%c4_346, %c0_347], %501 {strides = array<i32>} : memref<8x384xf32, #tpu.memory_space<vmem>>, vector<1x384xf32>,
      %503 = vector.extract_strided_slice %472 {offsets = [40, 0], sizes = [8, 384], strides = [1, 1]} : vector<64x384xf32> to vector<8x384xf32>
      %cst_348 = arith.constant dense<0.000000e+00> : vector<384xf32>
      %504 = vector.multi_reduction <add>, %503, %cst_348 [0] : vector<8x384xf32> to vector<384xf32>
      %505 = vector.shape_cast %504 : vector<384xf32> to vector<1x384xf32>
      %cst_349 = arith.constant 1.250000e-01 : f32
      %506 = vector.broadcast %cst_349 : f32 to vector<1x384xf32>
      %507 = arith.mulf %505, %506 : vector<1x384xf32>
      %c5_350 = arith.constant 5 : index
      %c0_351 = arith.constant 0 : index
      %508 = vector.load %arg8[%c5_350, %c0_351] : memref<8x384xf32, #tpu.memory_space<vmem>>, vector<1x384xf32>
      tpu.vector_store %arg8[%c5_350, %c0_351], %507 {strides = array<i32>} : memref<8x384xf32, #tpu.memory_space<vmem>>, vector<1x384xf32>,
      %509 = vector.extract_strided_slice %472 {offsets = [48, 0], sizes = [8, 384], strides = [1, 1]} : vector<64x384xf32> to vector<8x384xf32>
      %cst_352 = arith.constant dense<0.000000e+00> : vector<384xf32>
      %510 = vector.multi_reduction <add>, %509, %cst_352 [0] : vector<8x384xf32> to vector<384xf32>
      %511 = vector.shape_cast %510 : vector<384xf32> to vector<1x384xf32>
      %cst_353 = arith.constant 1.250000e-01 : f32
      %512 = vector.broadcast %cst_353 : f32 to vector<1x384xf32>
      %513 = arith.mulf %511, %512 : vector<1x384xf32>
      %c6_354 = arith.constant 6 : index
      %c0_355 = arith.constant 0 : index
      %514 = vector.load %arg8[%c6_354, %c0_355] : memref<8x384xf32, #tpu.memory_space<vmem>>, vector<1x384xf32>
      tpu.vector_store %arg8[%c6_354, %c0_355], %513 {strides = array<i32>} : memref<8x384xf32, #tpu.memory_space<vmem>>, vector<1x384xf32>,
      %515 = vector.extract_strided_slice %472 {offsets = [56, 0], sizes = [8, 384], strides = [1, 1]} : vector<64x384xf32> to vector<8x384xf32>
      %cst_356 = arith.constant dense<0.000000e+00> : vector<384xf32>
      %516 = vector.multi_reduction <add>, %515, %cst_356 [0] : vector<8x384xf32> to vector<384xf32>
      %517 = vector.shape_cast %516 : vector<384xf32> to vector<1x384xf32>
      %cst_357 = arith.constant 1.250000e-01 : f32
      %518 = vector.broadcast %cst_357 : f32 to vector<1x384xf32>
      %519 = arith.mulf %517, %518 : vector<1x384xf32>
      %c7_358 = arith.constant 7 : index
      %c0_359 = arith.constant 0 : index
      %520 = vector.load %arg8[%c7_358, %c0_359] : memref<8x384xf32, #tpu.memory_space<vmem>>, vector<1x384xf32>
      tpu.vector_store %arg8[%c7_358, %c0_359], %519 {strides = array<i32>} : memref<8x384xf32, #tpu.memory_space<vmem>>, vector<1x384xf32>,
    } else {
    }
    %c0 = arith.constant 0 : index
    %c0_1 = arith.constant 0 : index
    %3 = vector.load %arg8[%c0, %c0_1] : memref<8x384xf32, #tpu.memory_space<vmem>>, vector<8x384xf32>
    %c0_2 = arith.constant 0 : index
    %c0_3 = arith.constant 0 : index
    %4 = vector.load %arg4[%c0_2, %c0_3] : memref<384x128xf32, #tpu.memory_space<vmem>>, vector<384x128xf32>
    %cst = arith.constant dense<0.000000e+00> : vector<8x128xf32>
    %5 = tpu.matmul %3, %4, %cst {dimension_numbers = #tpu.dot_dimension_numbers<[1], [0], [0], [1], [0, 0, 1, 1], [], []>} : vector<8x384xf32>, vector<384x128xf32>, vector<8x128xf32> -> vector<8x128xf32>
    %c0_4 = arith.constant 0 : index
    %c0_5 = arith.constant 0 : index
    %6 = vector.load %arg5[%c0_4, %c0_5] : memref<1x128xf32, #tpu.memory_space<vmem>>, vector<1x128xf32>
    %7 = vector.broadcast %6 : vector<1x128xf32> to vector<8x128xf32>
    %8 = arith.addf %5, %7 : vector<8x128xf32>
    %c0_6 = arith.constant 0 : index
    %c0_7 = arith.constant 0 : index
    %9 = vector.load %arg6[%c0_6, %c0_7] : memref<8x128xf32, #tpu.memory_space<vmem>>, vector<8x128xf32>
    tpu.vector_store %arg6[%c0_6, %c0_7], %8 {strides = array<i32>} : memref<8x128xf32, #tpu.memory_space<vmem>>, vector<8x128xf32>,
    return
  }
  func.func @transform_0(%arg0: i32, %arg1: i32, %arg2: memref<16x8xi32, #tpu.memory_space<smem>>) -> (i32, i32) {
    %c0_i32 = arith.constant 0 : i32
    %c0_i32_0 = arith.constant 0 : i32
    %c0_i32_1 = arith.constant 0 : i32
    return %c0_i32, %c0_i32_0 : i32, i32
  }
  func.func @transform_1(%arg0: i32, %arg1: i32, %arg2: memref<16x8xi32, #tpu.memory_space<smem>>) -> (i32, i32) {
    %c0_i32 = arith.constant 0 : i32
    %c0_i32_0 = arith.constant 0 : i32
    return %c0_i32, %arg1 : i32, i32
  }
  func.func @transform_2(%arg0: i32, %arg1: i32, %arg2: memref<16x8xi32, #tpu.memory_space<smem>>) -> (i32, i32) {
    %c0_i32 = arith.constant 0 : i32
    %c0_i32_0 = arith.constant 0 : i32
    return %c0_i32, %arg1 : i32, i32
  }
  func.func @transform_3(%arg0: i32, %arg1: i32, %arg2: memref<16x8xi32, #tpu.memory_space<smem>>) -> (i32, i32) {
    %c0_i32 = arith.constant 0 : i32
    return %arg0, %arg1 : i32, i32
  }
}

</mosaic_0001>

<llo_original>
// kernel: tpu_custom_call.1
$region0: #{tpu_custom_call.1}
  #allocation0 [shape = 'u32[]', space=smem, size = 0x4, offset = 0x4, fixed_abs, tag = 'smem constant byte address 0x4 - core index']
  #allocation1 [shape = 'u32[72,128]{1,0:T(1,128)}', space=vmem, size = 0x9000, scoped, tag = 'internal scratch']
  #allocation2 [shape = 'f32[64,384]{1,0:T(8,128)}', space=vmem, size = 0x18000, scoped, tag = 'scratch operand']
  #allocation3 [shape = 'f32[8,384]{1,0:T(8,128)}', space=vmem, size = 0x3000, scoped, tag = 'scratch operand']
  #allocation4 [shape = 's32[1]{0}', space=sflag, size = 0x4, scoped, tag = 'scoped memory for tpu_custom_call.1']
  #allocation5 [shape = 'u8[8192]{0}', space=smem, size = 0x2000, scoped, tag = 'prefetched SMEM operand 0']
  %s0 = inlined_call_operand.vmem [shape: s32[16,8], index: 0, kind: input, shape index: {}]
  %s1 = inlined_call_operand.hbm [shape: f32[256,384], index: 1, kind: input, shape index: {}]
  %s2 = inlined_call_operand.hbm [shape: f32[384,256], index: 2, kind: input, shape index: {}]
  %s3 = inlined_call_operand.vmem [shape: f32[1,256], index: 3, kind: input, shape index: {}]
  %s4 = inlined_call_operand.hbm [shape: f32[16,256], index: 4, kind: output, shape index: {}]
  %s5 = sld [smem:[#allocation0]]
  $region57: #{tpu_custom_call.1} parent=0
    _
  %s7 = ssub.s32 1, %s5
  %s8 = scalar_select 0, %s7, %s5
  %s10 = sshll.u32 %s0, 4
  %s11 = int_to_ptr.vmem [resolvable:$true] %s10
  %13 = dma.vmem_to_smem %s11, 256, [#allocation5], [#allocation4]
  %15 = dma.done [#allocation4], 256
  %16 = sfence
  $region1: #{tpu_custom_call.1} parent=0
    #allocation6 [shape = 'u8[393216]{0}', space=vmem, size = 0x60000, scoped, tag = 'input window, operand 1, single buffered']
    #allocation7 [shape = 's32[2]{0}', space=sflag, size = 0x8, scoped, tag = 'scoped memory for tpu_custom_call.1']
    #allocation8 [shape = 's32[2]{0}', space=sflag, size = 0x8, scoped, tag = 'scoped memory for tpu_custom_call.1']
    #allocation9 [shape = 'u8[393216]{0}', space=vmem, size = 0x60000, scoped, tag = 'input window, operand 2']
    #allocation10 [shape = 's32[2]{0}', space=sflag, size = 0x8, scoped, tag = 'scoped memory for tpu_custom_call.1']
    #allocation11 [shape = 'u8[8192]{0}', space=vmem, size = 0x2000, scoped, tag = 'output window, operand 0']
    %17 = vsyncpa [#allocation7], 0
    %18 = vsyncpa [#allocation10], 0
    %s19 = scalar_lea.sflag [#allocation10], 1
    %20 = vsyncpa %s19, 0
    %21 = vsyncpa [#allocation8], 0
    %s22 = scalar_lea.sflag [#allocation8], 1
    %23 = vsyncpa %s22, 0
    loop: start=0, step=1, limit=6
    $region2: #{tpu_custom_call.1} parent=1 // loop_pre_header
      _
    $region3: #{tpu_custom_call.1} parent=1 // loop_header
      %s25 = sphi 0, %s29
      %p26 = scmp.ge.s32.totalorder %s25, 6
      %s32 = sphi 0, %s44
      %s33 = sphi 0, %s40
      %s34 = sphi 0, %s32
      %s35 = sphi 0, %s33
      %s36 = sphi 0, %s34
      %s37 = sphi 0, %s35
      %s45 = sphi 0, %s45
      %s47 = sphi 0, %s45
      %s48 = sphi 0, %s47
      %s62 = sphi 0, %s48
      %s68 = sphi 0, %s70
      %s71 = sphi 0, %s68
      %s72 = sphi 0, %s71
      %s88 = sphi 0, %s72
      %s94 = sphi 0, %s96
      %s97 = sphi 0, %s94
      %s98 = sphi 0, %s97
      %s114 = sphi 0, %s98
      %s122 = sphi 0, %s124
      %s125 = sphi 0, %s122
      %s126 = sphi 0, %s125
      %s142 = sphi 0, %s126
    $region4: #{tpu_custom_call.1} parent=1 // loop_header_branch
      %28 = sbr.rel (%p26) target = $region8
    $region5: #{tpu_custom_call.1} parent=1 // loop_body
      %s30 = ssub.s32 %s25, 1
      %s31 = ssub.s32 %s25, 2
      %s38 = sadd.s32 1, %s33
      %p39 = scmp.ge.s32.totalorder %s38, 2
      %s40 = scalar_select %p39, 0, %s38
      %s41 = sadd.s32 1, %s32
      %s42 = scalar_select %p39, %s41, %s32
      %p43 = scmp.ge.s32.totalorder %s42, 2
      %s44 = scalar_select %p43, 0, %s42
      %s46 = sadd.s32 %s45, 1
      %p49 = scmp.eq.s32.totalorder %s25, 3
      %p50 = scmp.ne.s32.totalorder %s45, %s47
      %p51 = scmp.eq.s32.totalorder %s25, 0
      %p52 = por %p50, %p51
      %p53 = scmp.ne.s32.totalorder %s45, %s47
      %p54 = scmp.eq.s32.totalorder %s30, 3
      %p55 = por %p53, %p54
      %p56 = scmp.ne.s32.totalorder %s47, %s48
      %p57 = scmp.eq.s32.totalorder %s30, 0
      %p58 = por %p56, %p57
      %p59 = scmp.ne.s32.totalorder %s47, %s48
      %p60 = scmp.eq.s32.totalorder %s31, 3
      %p61 = por %p59, %p60
      %p63 = scmp.ne.s32.totalorder %s48, %s62
      %p64 = scmp.eq.s32.totalorder %s31, 0
      %p65 = por %p63, %p64
      %s66 = ssub.s32 %s33, %s40
      %p67 = scmp.eq.s32.totalorder %s66, 0
      %s69 = sadd.s32 %s68, 1
      %s70 = scalar_select %p67, %s68, %s69
      %p73 = pneg %p67
      %p74 = scmp.eq.s32.totalorder %s25, 3
      %p75 = por %p73, %p74
      %p76 = scmp.ne.s32.totalorder %s68, %s71
      %p77 = scmp.eq.s32.totalorder %s25, 0
      %p78 = por %p76, %p77
      %p79 = scmp.ne.s32.totalorder %s68, %s71
      %p80 = scmp.eq.s32.totalorder %s30, 3
      %p81 = por %p79, %p80
      %p82 = scmp.ne.s32.totalorder %s71, %s72
      %p83 = scmp.eq.s32.totalorder %s30, 0
      %p84 = por %p82, %p83
      %p85 = scmp.ne.s32.totalorder %s71, %s72
      %p86 = scmp.eq.s32.totalorder %s31, 3
      %p87 = por %p85, %p86
      %p89 = scmp.ne.s32.totalorder %s72, %s88
      %p90 = scmp.eq.s32.totalorder %s31, 0
      %p91 = por %p89, %p90
      %s92 = ssub.s32 %s33, %s40
      %p93 = scmp.eq.s32.totalorder %s92, 0
      %s95 = sadd.s32 %s94, 1
      %s96 = scalar_select %p93, %s94, %s95
      %p99 = pneg %p93
      %p100 = scmp.eq.s32.totalorder %s25, 3
      %p101 = por %p99, %p100
      %p102 = scmp.ne.s32.totalorder %s94, %s97
      %p103 = scmp.eq.s32.totalorder %s25, 0
      %p104 = por %p102, %p103
      %p105 = scmp.ne.s32.totalorder %s94, %s97
      %p106 = scmp.eq.s32.totalorder %s30, 3
      %p107 = por %p105, %p106
      %p108 = scmp.ne.s32.totalorder %s97, %s98
      %p109 = scmp.eq.s32.totalorder %s30, 0
      %p110 = por %p108, %p109
      %p111 = scmp.ne.s32.totalorder %s97, %s98
      %p112 = scmp.eq.s32.totalorder %s31, 3
      %p113 = por %p111, %p112
      %p115 = scmp.ne.s32.totalorder %s98, %s114
      %p116 = scmp.eq.s32.totalorder %s31, 0
      %p117 = por %p115, %p116
      %s118 = ssub.s32 %s32, %s44
      %s119 = ssub.s32 %s33, %s40
      %s120 = sor.u32 %s118, %s119
      %p121 = scmp.eq.s32.totalorder %s120, 0
      %s123 = sadd.s32 %s122, 1
      %s124 = scalar_select %p121, %s122, %s123
      %p127 = pneg %p121
      %p128 = scmp.eq.s32.totalorder %s25, 3
      %p129 = por %p127, %p128
      %p130 = scmp.ne.s32.totalorder %s122, %s125
      %p131 = scmp.eq.s32.totalorder %s25, 0
      %p132 = por %p130, %p131
      %p133 = scmp.ne.s32.totalorder %s122, %s125
      %p134 = scmp.eq.s32.totalorder %s30, 3
      %p135 = por %p133, %p134
      %p136 = scmp.ne.s32.totalorder %s125, %s126
      %p137 = scmp.eq.s32.totalorder %s30, 0
      %p138 = por %p136, %p137
      %p139 = scmp.ne.s32.totalorder %s125, %s126
      %p140 = scmp.eq.s32.totalorder %s31, 3
      %p141 = por %p139, %p140
      %p143 = scmp.ne.s32.totalorder %s126, %s142
      %p144 = scmp.eq.s32.totalorder %s31, 0
      %p145 = por %p143, %p144
      %p146 = scmp.le.s32.totalorder 1, %s25
      %p147 = scmp.lt.s32.totalorder %s25, 5
      %p148 = pnand %p146, %p147
      %p149 = pneg %p148
      // Predicated region
      $region9: #{tpu_custom_call.1} parent=5 // pred_check
        _
      $region10: #{tpu_custom_call.1} parent=5 // pred_check_branch
        %151 = sbr.rel (%p148) target = $region12
      $region11: #{tpu_custom_call.1} parent=5 // pred_region
        %s152 = ssub.s32 %s25, 1
        // Predicated region
        $region13: #{tpu_custom_call.1} parent=11 // pred_check
          %p153 = pneg %p58
        $region14: #{tpu_custom_call.1} parent=11 // pred_check_branch
          %155 = sbr.rel (%p153) target = $region16
        $region15: #{tpu_custom_call.1} parent=11 // pred_region
          %157 = vsyncadd [#allocation7], 0
          %s158 = sshll.u32 %s1, 4
          %s159 = int_to_ptr.hbm [resolvable:$true] %s158
          %s160 = sshll.u32 [#allocation6], 4
          %s161 = int_to_ptr.vmem [resolvable:$true] %s160
          %166 = dma.hbm_to_vmem [thread:$0]  %s159, 12288, %s161, [#allocation7], 384, 384, 24
        $region16: #{tpu_custom_call.1} parent=11 // pred_fallthru
          _
      $region12: #{tpu_custom_call.1} parent=5 // pred_fallthru
        _
      %p167 = scmp.lt.s32.totalorder %s25, 4
      // Predicated region
      $region17: #{tpu_custom_call.1} parent=5 // pred_check
        %p168 = pneg %p167
      $region18: #{tpu_custom_call.1} parent=5 // pred_check_branch
        %170 = sbr.rel (%p168) target = $region20
      $region19: #{tpu_custom_call.1} parent=5 // pred_region
        // Predicated region
        $region21: #{tpu_custom_call.1} parent=19 // pred_check
          %p171 = pneg %p78
        $region22: #{tpu_custom_call.1} parent=19 // pred_check_branch
          %173 = sbr.rel (%p171) target = $region24
        $region23: #{tpu_custom_call.1} parent=19 // pred_region
          %s174 = sand.u32 %s68, 1
          %s175 = scalar_lea.sflag [#allocation10], %s174
          %s176 = sand.u32 %s68, 1
          %s177 = smul.addr %s176, 384
          %s178 = scalar_lea.vmem [#allocation9], %s177
          %180 = vsyncadd %s175, 0
          %s181 = smul.addr %s33, 8
          %s182 = scalar_lea.hbm %s2, %s181
          %s183 = sshll.u32 %s182, 4
          %s184 = int_to_ptr.hbm [resolvable:$true] %s183
          %s185 = sshll.u32 %s178, 4
          %s186 = int_to_ptr.vmem [resolvable:$true] %s185
          %191 = dma.hbm_to_vmem [thread:$0]  %s184, 6144, %s186, %s175, 256, 128, 8
        $region24: #{tpu_custom_call.1} parent=19 // pred_fallthru
          _
        // Predicated region
        $region25: #{tpu_custom_call.1} parent=19 // pred_check
          %p192 = pneg %p104
        $region26: #{tpu_custom_call.1} parent=19 // pred_check_branch
          %194 = sbr.rel (%p192) target = $region28
        $region27: #{tpu_custom_call.1} parent=19 // pred_region
          %p195 = scmp.lt.s32.totalorder %s33, 1
          %s196 = scalar_select %p195, %s33, 1
          %s197 = scalar_lea.vmem %s3, %s196
        $region28: #{tpu_custom_call.1} parent=19 // pred_fallthru
          _
      $region20: #{tpu_custom_call.1} parent=5 // pred_fallthru
        _
      %p198 = scmp.le.s32.totalorder 1, %s25
      %p199 = scmp.lt.s32.totalorder %s25, 5
      %p200 = pnand %p198, %p199
      %p201 = pneg %p200
      // Predicated region
      $region29: #{tpu_custom_call.1} parent=5 // pred_check
        _
      $region30: #{tpu_custom_call.1} parent=5 // pred_check_branch
        %203 = sbr.rel (%p200) target = $region32
      $region31: #{tpu_custom_call.1} parent=5 // pred_region
        %s204 = ssub.s32 %s25, 1
        // Predicated region
        $region33: #{tpu_custom_call.1} parent=31 // pred_check
          %p205 = pneg %p58
        $region34: #{tpu_custom_call.1} parent=31 // pred_check_branch
          %207 = sbr.rel (%p205) target = $region36
        $region35: #{tpu_custom_call.1} parent=31 // pred_region
          %209 = dma.done [#allocation7], 12288
        $region36: #{tpu_custom_call.1} parent=31 // pred_fallthru
          _
        %s210 = sand.u32 %s71, 1
        %s211 = scalar_lea.sflag [#allocation10], %s210
        %s212 = sand.u32 %s71, 1
        %s213 = smul.addr %s212, 384
        %s214 = scalar_lea.vmem [#allocation9], %s213
        // Predicated region
        $region37: #{tpu_custom_call.1} parent=31 // pred_check
          %p215 = pneg %p84
        $region38: #{tpu_custom_call.1} parent=31 // pred_check_branch
          %217 = sbr.rel (%p215) target = $region40
        $region39: #{tpu_custom_call.1} parent=31 // pred_region
          %219 = dma.done %s211, 6144
        $region40: #{tpu_custom_call.1} parent=31 // pred_fallthru
          _
        %p220 = pneg %p58
        %p221 = pneg %p55
        %s222 = sand.u32 %s71, 1
        %s223 = scalar_lea.sflag [#allocation10], %s222
        %s224 = sand.u32 %s71, 1
        %s225 = smul.addr %s224, 384
        %s226 = scalar_lea.vmem [#allocation9], %s225
        %p227 = pneg %p84
        %p228 = pneg %p81
        %p229 = scmp.lt.s32.totalorder %s35, 1
        %s230 = scalar_select %p229, %s35, 1
        %s231 = scalar_lea.vmem %s3, %s230
        %p232 = pneg %p110
        %p233 = pneg %p107
        %p234 = pneg %p138
        %p235 = pneg %p135
        %s236 = sand.u32 %s125, 1
        %s237 = scalar_lea.sflag [#allocation8], %s236
        %s238 = sand.u32 %s125, 1
        %s239 = smul.addr %s238, 8
        %s240 = scalar_lea.vmem [#allocation11], %s239
        %p241 = scmp.lt.s32.totalorder %s35, 1
        %s242 = scalar_select %p241, %s35, 1
        %s243 = scalar_lea.vmem %s3, %s242
        %p244 = scmp.eq.s32.totalorder %s35, 0
        // Predicated region
        $region41: #{tpu_custom_call.1} parent=31 // pred_check
          %p245 = pneg %p244
        $region42: #{tpu_custom_call.1} parent=31 // pred_check_branch
          %247 = sbr.rel (%p245) target = $region44
        $region43: #{tpu_custom_call.1} parent=31 // pred_region
          %s248 = smul.u32 %s34, 8
          %s249 = smul.u32 %s248, 128
          %s250 = sld [smem:[#allocation5 + %s249]]
          %s251 = sshra.s32 %s250, 3
          %s252 = sand.u32 %s250, 7
          %s253 = sshra.s32 %s250, 3
          %s254 = sand.u32 %s250, 7
          %s255 = smul.u32 %s251, 3
          %s256 = smul.u32 %s255, 8
          %s257 = sadd.s32 %s256, %s254
          %s258 = scalar_lea.vmem [#allocation6], %s257
          %v259 = vld [vmem:[%s258] ss:$8 sm:$0x7]
          %v260 = vlaneseq
          %vm261 = vcmp.ge.s32.totalorder %v260, 0
          %vm262 = vcmp.lt.s32.totalorder %v260, 384
          %vm263 = vmand %vm261, %vm262
          %264 = vst.msk [vmem:[#allocation2] ss:$8 sm:$0x7] %vm263, %v259
          %265 = vst.msk [vmem:[#allocation2] ss:$8 sm:$0x0] %vm263, %v259
          %s266 = sadd.s32 %s249, 1
          %s267 = sld [smem:[#allocation5 + %s266]]
          %s268 = sshra.s32 %s267, 3
          %s269 = sand.u32 %s267, 7
          %s270 = sshra.s32 %s267, 3
          %s271 = sand.u32 %s267, 7
          %s272 = smul.u32 %s268, 3
          %s273 = smul.u32 %s272, 8
          %s274 = sadd.s32 %s273, %s271
          %s275 = scalar_lea.vmem [#allocation6], %s274
          %v276 = vld [vmem:[%s275] ss:$8 sm:$0x7]
          %s277 = scalar_lea.vmem [#allocation2], 1
          %278 = vst.msk [vmem:[%s277] ss:$8 sm:$0x7] %vm263, %v276
          %279 = vst.msk [vmem:[%s277] ss:$8 sm:$0x0] %vm263, %v276
          %s280 = sadd.s32 %s249, 2
          %s281 = sld [smem:[#allocation5 + %s280]]
          %s282 = sshra.s32 %s281, 3
          %s283 = sand.u32 %s281, 7
          %s284 = sshra.s32 %s281, 3
          %s285 = sand.u32 %s281, 7
          %s286 = smul.u32 %s282, 3
          %s287 = smul.u32 %s286, 8
          %s288 = sadd.s32 %s287, %s285
          %s289 = scalar_lea.vmem [#allocation6], %s288
          %v290 = vld [vmem:[%s289] ss:$8 sm:$0x7]
          %s291 = scalar_lea.vmem [#allocation2], 2
          %292 = vst.msk [vmem:[%s291] ss:$8 sm:$0x7] %vm263, %v290
          %293 = vst.msk [vmem:[%s291] ss:$8 sm:$0x0] %vm263, %v290
          %s294 = sadd.s32 %s249, 3
          %s295 = sld [smem:[#allocation5 + %s294]]
          %s296 = sshra.s32 %s295, 3
          %s297 = sand.u32 %s295, 7
          %s298 = sshra.s32 %s295, 3
          %s299 = sand.u32 %s295, 7
          %s300 = smul.u32 %s296, 3
          %s301 = smul.u32 %s300, 8
          %s302 = sadd.s32 %s301, %s299
          %s303 = scalar_lea.vmem [#allocation6], %s302
          %v304 = vld [vmem:[%s303] ss:$8 sm:$0x7]
          %s305 = scalar_lea.vmem [#allocation2], 3
          %306 = vst.msk [vmem:[%s305] ss:$8 sm:$0x7] %vm263, %v304
          %307 = vst.msk [vmem:[%s305] ss:$8 sm:$0x0] %vm263, %v304
          %s308 = sadd.s32 %s249, 4
          %s309 = sld [smem:[#allocation5 + %s308]]
          %s310 = sshra.s32 %s309, 3
          %s311 = sand.u32 %s309, 7
          %s312 = sshra.s32 %s309, 3
          %s313 = sand.u32 %s309, 7
          %s314 = smul.u32 %s310, 3
          %s315 = smul.u32 %s314, 8
          %s316 = sadd.s32 %s315, %s313
          %s317 = scalar_lea.vmem [#allocation6], %s316
          %v318 = vld [vmem:[%s317] ss:$8 sm:$0x7]
          %s319 = scalar_lea.vmem [#allocation2], 4
          %320 = vst.msk [vmem:[%s319] ss:$8 sm:$0x7] %vm263, %v318
          %321 = vst.msk [vmem:[%s319] ss:$8 sm:$0x0] %vm263, %v318
          %s322 = sadd.s32 %s249, 5
          %s323 = sld [smem:[#allocation5 + %s322]]
          %s324 = sshra.s32 %s323, 3
          %s325 = sand.u32 %s323, 7
          %s326 = sshra.s32 %s323, 3
          %s327 = sand.u32 %s323, 7
          %s328 = smul.u32 %s324, 3
          %s329 = smul.u32 %s328, 8
          %s330 = sadd.s32 %s329, %s327
          %s331 = scalar_lea.vmem [#allocation6], %s330
          %v332 = vld [vmem:[%s331] ss:$8 sm:$0x7]
          %s333 = scalar_lea.vmem [#allocation2], 5
          %334 = vst.msk [vmem:[%s333] ss:$8 sm:$0x7] %vm263, %v332
          %335 = vst.msk [vmem:[%s333] ss:$8 sm:$0x0] %vm263, %v332
          %s336 = sadd.s32 %s249, 6
          %s337 = sld [smem:[#allocation5 + %s336]]
          %s338 = sshra.s32 %s337, 3
          %s339 = sand.u32 %s337, 7
          %s340 = sshra.s32 %s337, 3
          %s341 = sand.u32 %s337, 7
          %s342 = smul.u32 %s338, 3
          %s343 = smul.u32 %s342, 8
          %s344 = sadd.s32 %s343, %s341
          %s345 = scalar_lea.vmem [#allocation6], %s344
          %v346 = vld [vmem:[%s345] ss:$8 sm:$0x7]
          %s347 = scalar_lea.vmem [#allocation2], 6
          %348 = vst.msk [vmem:[%s347] ss:$8 sm:$0x7] %vm263, %v346
          %349 = vst.msk [vmem:[%s347] ss:$8 sm:$0x0] %vm263, %v346
          %s350 = sadd.s32 %s249, 7
          %s351 = sld [smem:[#allocation5 + %s350]]
          %s352 = sshra.s32 %s351, 3
          %s353 = sand.u32 %s351, 7
          %s354 = sshra.s32 %s351, 3
          %s355 = sand.u32 %s351, 7
          %s356 = smul.u32 %s352, 3
          %s357 = smul.u32 %s356, 8
          %s358 = sadd.s32 %s357, %s355
          %s359 = scalar_lea.vmem [#allocation6], %s358
          %v360 = vld [vmem:[%s359] ss:$8 sm:$0x7]
          %s361 = scalar_lea.vmem [#allocation2], 7
          %362 = vst.msk [vmem:[%s361] ss:$8 sm:$0x7] %vm263, %v360
          %363 = vst.msk [vmem:[%s361] ss:$8 sm:$0x0] %vm263, %v360
          %s364 = sadd.s32 %s248, 1
          %s365 = smul.u32 %s364, 128
          %s366 = sld [smem:[#allocation5 + %s365]]
          %s367 = sshra.s32 %s366, 3
          %s368 = sand.u32 %s366, 7
          %s369 = sshra.s32 %s366, 3
          %s370 = sand.u32 %s366, 7
          %s371 = smul.u32 %s367, 3
          %s372 = smul.u32 %s371, 8
          %s373 = sadd.s32 %s372, %s370
          %s374 = scalar_lea.vmem [#allocation6], %s373
          %v375 = vld [vmem:[%s374] ss:$8 sm:$0x7]
          %s376 = scalar_lea.vmem [#allocation2], 24
          %377 = vst.msk [vmem:[%s376] ss:$8 sm:$0x7] %vm263, %v375
          %378 = vst.msk [vmem:[%s376] ss:$8 sm:$0x0] %vm263, %v375
          %s379 = sadd.s32 %s365, 1
          %s380 = sld [smem:[#allocation5 + %s379]]
          %s381 = sshra.s32 %s380, 3
          %s382 = sand.u32 %s380, 7
          %s383 = sshra.s32 %s380, 3
          %s384 = sand.u32 %s380, 7
          %s385 = smul.u32 %s381, 3
          %s386 = smul.u32 %s385, 8
          %s387 = sadd.s32 %s386, %s384
          %s388 = scalar_lea.vmem [#allocation6], %s387
          %v389 = vld [vmem:[%s388] ss:$8 sm:$0x7]
          %s390 = scalar_lea.vmem [#allocation2], 25
          %391 = vst.msk [vmem:[%s390] ss:$8 sm:$0x7] %vm263, %v389
          %392 = vst.msk [vmem:[%s390] ss:$8 sm:$0x0] %vm263, %v389
          %s393 = sadd.s32 %s365, 2
          %s394 = sld [smem:[#allocation5 + %s393]]
          %s395 = sshra.s32 %s394, 3
          %s396 = sand.u32 %s394, 7
          %s397 = sshra.s32 %s394, 3
          %s398 = sand.u32 %s394, 7
          %s399 = smul.u32 %s395, 3
          %s400 = smul.u32 %s399, 8
          %s401 = sadd.s32 %s400, %s398
          %s402 = scalar_lea.vmem [#allocation6], %s401
          %v403 = vld [vmem:[%s402] ss:$8 sm:$0x7]
          %s404 = scalar_lea.vmem [#allocation2], 26
          %405 = vst.msk [vmem:[%s404] ss:$8 sm:$0x7] %vm263, %v403
          %406 = vst.msk [vmem:[%s404] ss:$8 sm:$0x0] %vm263, %v403
          %s407 = sadd.s32 %s365, 3
          %s408 = sld [smem:[#allocation5 + %s407]]
          %s409 = sshra.s32 %s408, 3
          %s410 = sand.u32 %s408, 7
          %s411 = sshra.s32 %s408, 3
          %s412 = sand.u32 %s408, 7
          %s413 = smul.u32 %s409, 3
          %s414 = smul.u32 %s413, 8
          %s415 = sadd.s32 %s414, %s412
          %s416 = scalar_lea.vmem [#allocation6], %s415
          %v417 = vld [vmem:[%s416] ss:$8 sm:$0x7]
          %s418 = scalar_lea.vmem [#allocation2], 27
          %419 = vst.msk [vmem:[%s418] ss:$8 sm:$0x7] %vm263, %v417
          %420 = vst.msk [vmem:[%s418] ss:$8 sm:$0x0] %vm263, %v417
          %s421 = sadd.s32 %s365, 4
          %s422 = sld [smem:[#allocation5 + %s421]]
          %s423 = sshra.s32 %s422, 3
          %s424 = sand.u32 %s422, 7
          %s425 = sshra.s32 %s422, 3
          %s426 = sand.u32 %s422, 7
          %s427 = smul.u32 %s423, 3
          %s428 = smul.u32 %s427, 8
          %s429 = sadd.s32 %s428, %s426
          %s430 = scalar_lea.vmem [#allocation6], %s429
          %v431 = vld [vmem:[%s430] ss:$8 sm:$0x7]
          %s432 = scalar_lea.vmem [#allocation2], 28
          %433 = vst.msk [vmem:[%s432] ss:$8 sm:$0x7] %vm263, %v431
          %434 = vst.msk [vmem:[%s432] ss:$8 sm:$0x0] %vm263, %v431
          %s435 = sadd.s32 %s365, 5
          %s436 = sld [smem:[#allocation5 + %s435]]
          %s437 = sshra.s32 %s436, 3
          %s438 = sand.u32 %s436, 7
          %s439 = sshra.s32 %s436, 3
          %s440 = sand.u32 %s436, 7
          %s441 = smul.u32 %s437, 3
          %s442 = smul.u32 %s441, 8
          %s443 = sadd.s32 %s442, %s440
          %s444 = scalar_lea.vmem [#allocation6], %s443
          %v445 = vld [vmem:[%s444] ss:$8 sm:$0x7]
          %s446 = scalar_lea.vmem [#allocation2], 29
          %447 = vst.msk [vmem:[%s446] ss:$8 sm:$0x7] %vm263, %v445
          %448 = vst.msk [vmem:[%s446] ss:$8 sm:$0x0] %vm263, %v445
          %s449 = sadd.s32 %s365, 6
          %s450 = sld [smem:[#allocation5 + %s449]]
          %s451 = sshra.s32 %s450, 3
          %s452 = sand.u32 %s450, 7
          %s453 = sshra.s32 %s450, 3
          %s454 = sand.u32 %s450, 7
          %s455 = smul.u32 %s451, 3
          %s456 = smul.u32 %s455, 8
          %s457 = sadd.s32 %s456, %s454
          %s458 = scalar_lea.vmem [#allocation6], %s457
          %v459 = vld [vmem:[%s458] ss:$8 sm:$0x7]
          %s460 = scalar_lea.vmem [#allocation2], 30
          %461 = vst.msk [vmem:[%s460] ss:$8 sm:$0x7] %vm263, %v459
          %462 = vst.msk [vmem:[%s460] ss:$8 sm:$0x0] %vm263, %v459
          %s463 = sadd.s32 %s365, 7
          %s464 = sld [smem:[#allocation5 + %s463]]
          %s465 = sshra.s32 %s464, 3
          %s466 = sand.u32 %s464, 7
          %s467 = sshra.s32 %s464, 3
          %s468 = sand.u32 %s464, 7
          %s469 = smul.u32 %s465, 3
          %s470 = smul.u32 %s469, 8
          %s471 = sadd.s32 %s470, %s468
          %s472 = scalar_lea.vmem [#allocation6], %s471
          %v473 = vld [vmem:[%s472] ss:$8 sm:$0x7]
          %s474 = scalar_lea.vmem [#allocation2], 31
          %475 = vst.msk [vmem:[%s474] ss:$8 sm:$0x7] %vm263, %v473
          %476 = vst.msk [vmem:[%s474] ss:$8 sm:$0x0] %vm263, %v473
          %s477 = sadd.s32 %s248, 2
          %s478 = smul.u32 %s477, 128
          %s479 = sld [smem:[#allocation5 + %s478]]
          %s480 = sshra.s32 %s479, 3
          %s481 = sand.u32 %s479, 7
          %s482 = sshra.s32 %s479, 3
          %s483 = sand.u32 %s479, 7
          %s484 = smul.u32 %s480, 3
          %s485 = smul.u32 %s484, 8
          %s486 = sadd.s32 %s485, %s483
          %s487 = scalar_lea.vmem [#allocation6], %s486
          %v488 = vld [vmem:[%s487] ss:$8 sm:$0x7]
          %s489 = scalar_lea.vmem [#allocation2], 48
          %490 = vst.msk [vmem:[%s489] ss:$8 sm:$0x7] %vm263, %v488
          %491 = vst.msk [vmem:[%s489] ss:$8 sm:$0x0] %vm263, %v488
          %s492 = sadd.s32 %s478, 1
          %s493 = sld [smem:[#allocation5 + %s492]]
          %s494 = sshra.s32 %s493, 3
          %s495 = sand.u32 %s493, 7
          %s496 = sshra.s32 %s493, 3
          %s497 = sand.u32 %s493, 7
          %s498 = smul.u32 %s494, 3
          %s499 = smul.u32 %s498, 8
          %s500 = sadd.s32 %s499, %s497
          %s501 = scalar_lea.vmem [#allocation6], %s500
          %v502 = vld [vmem:[%s501] ss:$8 sm:$0x7]
          %s503 = scalar_lea.vmem [#allocation2], 49
          %504 = vst.msk [vmem:[%s503] ss:$8 sm:$0x7] %vm263, %v502
          %505 = vst.msk [vmem:[%s503] ss:$8 sm:$0x0] %vm263, %v502
          %s506 = sadd.s32 %s478, 2
          %s507 = sld [smem:[#allocation5 + %s506]]
          %s508 = sshra.s32 %s507, 3
          %s509 = sand.u32 %s507, 7
          %s510 = sshra.s32 %s507, 3
          %s511 = sand.u32 %s507, 7
          %s512 = smul.u32 %s508, 3
          %s513 = smul.u32 %s512, 8
          %s514 = sadd.s32 %s513, %s511
          %s515 = scalar_lea.vmem [#allocation6], %s514
          %v516 = vld [vmem:[%s515] ss:$8 sm:$0x7]
          %s517 = scalar_lea.vmem [#allocation2], 50
          %518 = vst.msk [vmem:[%s517] ss:$8 sm:$0x7] %vm263, %v516
          %519 = vst.msk [vmem:[%s517] ss:$8 sm:$0x0] %vm263, %v516
          %s520 = sadd.s32 %s478, 3
          %s521 = sld [smem:[#allocation5 + %s520]]
          %s522 = sshra.s32 %s521, 3
          %s523 = sand.u32 %s521, 7
          %s524 = sshra.s32 %s521, 3
          %s525 = sand.u32 %s521, 7
          %s526 = smul.u32 %s522, 3
          %s527 = smul.u32 %s526, 8
          %s528 = sadd.s32 %s527, %s525
          %s529 = scalar_lea.vmem [#allocation6], %s528
          %v530 = vld [vmem:[%s529] ss:$8 sm:$0x7]
          %s531 = scalar_lea.vmem [#allocation2], 51
          %532 = vst.msk [vmem:[%s531] ss:$8 sm:$0x7] %vm263, %v530
          %533 = vst.msk [vmem:[%s531] ss:$8 sm:$0x0] %vm263, %v530
          %s534 = sadd.s32 %s478, 4
          %s535 = sld [smem:[#allocation5 + %s534]]
          %s536 = sshra.s32 %s535, 3
          %s537 = sand.u32 %s535, 7
          %s538 = sshra.s32 %s535, 3
          %s539 = sand.u32 %s535, 7
          %s540 = smul.u32 %s536, 3
          %s541 = smul.u32 %s540, 8
          %s542 = sadd.s32 %s541, %s539
          %s543 = scalar_lea.vmem [#allocation6], %s542
          %v544 = vld [vmem:[%s543] ss:$8 sm:$0x7]
          %s545 = scalar_lea.vmem [#allocation2], 52
          %546 = vst.msk [vmem:[%s545] ss:$8 sm:$0x7] %vm263, %v544
          %547 = vst.msk [vmem:[%s545] ss:$8 sm:$0x0] %vm263, %v544
          %s548 = sadd.s32 %s478, 5
          %s549 = sld [smem:[#allocation5 + %s548]]
          %s550 = sshra.s32 %s549, 3
          %s551 = sand.u32 %s549, 7
          %s552 = sshra.s32 %s549, 3
          %s553 = sand.u32 %s549, 7
          %s554 = smul.u32 %s550, 3
          %s555 = smul.u32 %s554, 8
          %s556 = sadd.s32 %s555, %s553
          %s557 = scalar_lea.vmem [#allocation6], %s556
          %v558 = vld [vmem:[%s557] ss:$8 sm:$0x7]
          %s559 = scalar_lea.vmem [#allocation2], 53
          %560 = vst.msk [vmem:[%s559] ss:$8 sm:$0x7] %vm263, %v558
          %561 = vst.msk [vmem:[%s559] ss:$8 sm:$0x0] %vm263, %v558
          %s562 = sadd.s32 %s478, 6
          %s563 = sld [smem:[#allocation5 + %s562]]
          %s564 = sshra.s32 %s563, 3
          %s565 = sand.u32 %s563, 7
          %s566 = sshra.s32 %s563, 3
          %s567 = sand.u32 %s563, 7
          %s568 = smul.u32 %s564, 3
          %s569 = smul.u32 %s568, 8
          %s570 = sadd.s32 %s569, %s567
          %s571 = scalar_lea.vmem [#allocation6], %s570
          %v572 = vld [vmem:[%s571] ss:$8 sm:$0x7]
          %s573 = scalar_lea.vmem [#allocation2], 54
          %574 = vst.msk [vmem:[%s573] ss:$8 sm:$0x7] %vm263, %v572
          %575 = vst.msk [vmem:[%s573] ss:$8 sm:$0x0] %vm263, %v572
          %s576 = sadd.s32 %s478, 7
          %s577 = sld [smem:[#allocation5 + %s576]]
          %s578 = sshra.s32 %s577, 3
          %s579 = sand.u32 %s577, 7
          %s580 = sshra.s32 %s577, 3
          %s581 = sand.u32 %s577, 7
          %s582 = smul.u32 %s578, 3
          %s583 = smul.u32 %s582, 8
          %s584 = sadd.s32 %s583, %s581
          %s585 = scalar_lea.vmem [#allocation6], %s584
          %v586 = vld [vmem:[%s585] ss:$8 sm:$0x7]
          %s587 = scalar_lea.vmem [#allocation2], 55
          %588 = vst.msk [vmem:[%s587] ss:$8 sm:$0x7] %vm263, %v586
          %589 = vst.msk [vmem:[%s587] ss:$8 sm:$0x0] %vm263, %v586
          %s590 = sadd.s32 %s248, 3
          %s591 = smul.u32 %s590, 128
          %s592 = sld [smem:[#allocation5 + %s591]]
          %s593 = sshra.s32 %s592, 3
          %s594 = sand.u32 %s592, 7
          %s595 = sshra.s32 %s592, 3
          %s596 = sand.u32 %s592, 7
          %s597 = smul.u32 %s593, 3
          %s598 = smul.u32 %s597, 8
          %s599 = sadd.s32 %s598, %s596
          %s600 = scalar_lea.vmem [#allocation6], %s599
          %v601 = vld [vmem:[%s600] ss:$8 sm:$0x7]
          %s602 = scalar_lea.vmem [#allocation2], 72
          %603 = vst.msk [vmem:[%s602] ss:$8 sm:$0x7] %vm263, %v601
          %604 = vst.msk [vmem:[%s602] ss:$8 sm:$0x0] %vm263, %v601
          %s605 = sadd.s32 %s591, 1
          %s606 = sld [smem:[#allocation5 + %s605]]
          %s607 = sshra.s32 %s606, 3
          %s608 = sand.u32 %s606, 7
          %s609 = sshra.s32 %s606, 3
          %s610 = sand.u32 %s606, 7
          %s611 = smul.u32 %s607, 3
          %s612 = smul.u32 %s611, 8
          %s613 = sadd.s32 %s612, %s610
          %s614 = scalar_lea.vmem [#allocation6], %s613
          %v615 = vld [vmem:[%s614] ss:$8 sm:$0x7]
          %s616 = scalar_lea.vmem [#allocation2], 73
          %617 = vst.msk [vmem:[%s616] ss:$8 sm:$0x7] %vm263, %v615
          %618 = vst.msk [vmem:[%s616] ss:$8 sm:$0x0] %vm263, %v615
          %s619 = sadd.s32 %s591, 2
          %s620 = sld [smem:[#allocation5 + %s619]]
          %s621 = sshra.s32 %s620, 3
          %s622 = sand.u32 %s620, 7
          %s623 = sshra.s32 %s620, 3
          %s624 = sand.u32 %s620, 7
          %s625 = smul.u32 %s621, 3
          %s626 = smul.u32 %s625, 8
          %s627 = sadd.s32 %s626, %s624
          %s628 = scalar_lea.vmem [#allocation6], %s627
          %v629 = vld [vmem:[%s628] ss:$8 sm:$0x7]
          %s630 = scalar_lea.vmem [#allocation2], 74
          %631 = vst.msk [vmem:[%s630] ss:$8 sm:$0x7] %vm263, %v629
          %632 = vst.msk [vmem:[%s630] ss:$8 sm:$0x0] %vm263, %v629
          %s633 = sadd.s32 %s591, 3
          %s634 = sld [smem:[#allocation5 + %s633]]
          %s635 = sshra.s32 %s634, 3
          %s636 = sand.u32 %s634, 7
          %s637 = sshra.s32 %s634, 3
          %s638 = sand.u32 %s634, 7
          %s639 = smul.u32 %s635, 3
          %s640 = smul.u32 %s639, 8
          %s641 = sadd.s32 %s640, %s638
          %s642 = scalar_lea.vmem [#allocation6], %s641
          %v643 = vld [vmem:[%s642] ss:$8 sm:$0x7]
          %s644 = scalar_lea.vmem [#allocation2], 75
          %645 = vst.msk [vmem:[%s644] ss:$8 sm:$0x7] %vm263, %v643
          %646 = vst.msk [vmem:[%s644] ss:$8 sm:$0x0] %vm263, %v643
          %s647 = sadd.s32 %s591, 4
          %s648 = sld [smem:[#allocation5 + %s647]]
          %s649 = sshra.s32 %s648, 3
          %s650 = sand.u32 %s648, 7
          %s651 = sshra.s32 %s648, 3
          %s652 = sand.u32 %s648, 7
          %s653 = smul.u32 %s649, 3
          %s654 = smul.u32 %s653, 8
          %s655 = sadd.s32 %s654, %s652
          %s656 = scalar_lea.vmem [#allocation6], %s655
          %v657 = vld [vmem:[%s656] ss:$8 sm:$0x7]
          %s658 = scalar_lea.vmem [#allocation2], 76
          %659 = vst.msk [vmem:[%s658] ss:$8 sm:$0x7] %vm263, %v657
          %660 = vst.msk [vmem:[%s658] ss:$8 sm:$0x0] %vm263, %v657
          %s661 = sadd.s32 %s591, 5
          %s662 = sld [smem:[#allocation5 + %s661]]
          %s663 = sshra.s32 %s662, 3
          %s664 = sand.u32 %s662, 7
          %s665 = sshra.s32 %s662, 3
          %s666 = sand.u32 %s662, 7
          %s667 = smul.u32 %s663, 3
          %s668 = smul.u32 %s667, 8
          %s669 = sadd.s32 %s668, %s666
          %s670 = scalar_lea.vmem [#allocation6], %s669
          %v671 = vld [vmem:[%s670] ss:$8 sm:$0x7]
          %s672 = scalar_lea.vmem [#allocation2], 77
          %673 = vst.msk [vmem:[%s672] ss:$8 sm:$0x7] %vm263, %v671
          %674 = vst.msk [vmem:[%s672] ss:$8 sm:$0x0] %vm263, %v671
          %s675 = sadd.s32 %s591, 6
          %s676 = sld [smem:[#allocation5 + %s675]]
          %s677 = sshra.s32 %s676, 3
          %s678 = sand.u32 %s676, 7
          %s679 = sshra.s32 %s676, 3
          %s680 = sand.u32 %s676, 7
          %s681 = smul.u32 %s677, 3
          %s682 = smul.u32 %s681, 8
          %s683 = sadd.s32 %s682, %s680
          %s684 = scalar_lea.vmem [#allocation6], %s683
          %v685 = vld [vmem:[%s684] ss:$8 sm:$0x7]
          %s686 = scalar_lea.vmem [#allocation2], 78
          %687 = vst.msk [vmem:[%s686] ss:$8 sm:$0x7] %vm263, %v685
          %688 = vst.msk [vmem:[%s686] ss:$8 sm:$0x0] %vm263, %v685
          %s689 = sadd.s32 %s591, 7
          %s690 = sld [smem:[#allocation5 + %s689]]
          %s691 = sshra.s32 %s690, 3
          %s692 = sand.u32 %s690, 7
          %s693 = sshra.s32 %s690, 3
          %s694 = sand.u32 %s690, 7
          %s695 = smul.u32 %s691, 3
          %s696 = smul.u32 %s695, 8
          %s697 = sadd.s32 %s696, %s694
          %s698 = scalar_lea.vmem [#allocation6], %s697
          %v699 = vld [vmem:[%s698] ss:$8 sm:$0x7]
          %s700 = scalar_lea.vmem [#allocation2], 79
          %701 = vst.msk [vmem:[%s700] ss:$8 sm:$0x7] %vm263, %v699
          %702 = vst.msk [vmem:[%s700] ss:$8 sm:$0x0] %vm263, %v699
          %s703 = sadd.s32 %s248, 4
          %s704 = smul.u32 %s703, 128
          %s705 = sld [smem:[#allocation5 + %s704]]
          %s706 = sshra.s32 %s705, 3
          %s707 = sand.u32 %s705, 7
          %s708 = sshra.s32 %s705, 3
          %s709 = sand.u32 %s705, 7
          %s710 = smul.u32 %s706, 3
          %s711 = smul.u32 %s710, 8
          %s712 = sadd.s32 %s711, %s709
          %s713 = scalar_lea.vmem [#allocation6], %s712
          %v714 = vld [vmem:[%s713] ss:$8 sm:$0x7]
          %s715 = scalar_lea.vmem [#allocation2], 96
          %716 = vst.msk [vmem:[%s715] ss:$8 sm:$0x7] %vm263, %v714
          %717 = vst.msk [vmem:[%s715] ss:$8 sm:$0x0] %vm263, %v714
          %s718 = sadd.s32 %s704, 1
          %s719 = sld [smem:[#allocation5 + %s718]]
          %s720 = sshra.s32 %s719, 3
          %s721 = sand.u32 %s719, 7
          %s722 = sshra.s32 %s719, 3
          %s723 = sand.u32 %s719, 7
          %s724 = smul.u32 %s720, 3
          %s725 = smul.u32 %s724, 8
          %s726 = sadd.s32 %s725, %s723
          %s727 = scalar_lea.vmem [#allocation6], %s726
          %v728 = vld [vmem:[%s727] ss:$8 sm:$0x7]
          %s729 = scalar_lea.vmem [#allocation2], 97
          %730 = vst.msk [vmem:[%s729] ss:$8 sm:$0x7] %vm263, %v728
          %731 = vst.msk [vmem:[%s729] ss:$8 sm:$0x0] %vm263, %v728
          %s732 = sadd.s32 %s704, 2
          %s733 = sld [smem:[#allocation5 + %s732]]
          %s734 = sshra.s32 %s733, 3
          %s735 = sand.u32 %s733, 7
          %s736 = sshra.s32 %s733, 3
          %s737 = sand.u32 %s733, 7
          %s738 = smul.u32 %s734, 3
          %s739 = smul.u32 %s738, 8
          %s740 = sadd.s32 %s739, %s737
          %s741 = scalar_lea.vmem [#allocation6], %s740
          %v742 = vld [vmem:[%s741] ss:$8 sm:$0x7]
          %s743 = scalar_lea.vmem [#allocation2], 98
          %744 = vst.msk [vmem:[%s743] ss:$8 sm:$0x7] %vm263, %v742
          %745 = vst.msk [vmem:[%s743] ss:$8 sm:$0x0] %vm263, %v742
          %s746 = sadd.s32 %s704, 3
          %s747 = sld [smem:[#allocation5 + %s746]]
          %s748 = sshra.s32 %s747, 3
          %s749 = sand.u32 %s747, 7
          %s750 = sshra.s32 %s747, 3
          %s751 = sand.u32 %s747, 7
          %s752 = smul.u32 %s748, 3
          %s753 = smul.u32 %s752, 8
          %s754 = sadd.s32 %s753, %s751
          %s755 = scalar_lea.vmem [#allocation6], %s754
          %v756 = vld [vmem:[%s755] ss:$8 sm:$0x7]
          %s757 = scalar_lea.vmem [#allocation2], 99
          %758 = vst.msk [vmem:[%s757] ss:$8 sm:$0x7] %vm263, %v756
          %759 = vst.msk [vmem:[%s757] ss:$8 sm:$0x0] %vm263, %v756
          %s760 = sadd.s32 %s704, 4
          %s761 = sld [smem:[#allocation5 + %s760]]
          %s762 = sshra.s32 %s761, 3
          %s763 = sand.u32 %s761, 7
          %s764 = sshra.s32 %s761, 3
          %s765 = sand.u32 %s761, 7
          %s766 = smul.u32 %s762, 3
          %s767 = smul.u32 %s766, 8
          %s768 = sadd.s32 %s767, %s765
          %s769 = scalar_lea.vmem [#allocation6], %s768
          %v770 = vld [vmem:[%s769] ss:$8 sm:$0x7]
          %s771 = scalar_lea.vmem [#allocation2], 100
          %772 = vst.msk [vmem:[%s771] ss:$8 sm:$0x7] %vm263, %v770
          %773 = vst.msk [vmem:[%s771] ss:$8 sm:$0x0] %vm263, %v770
          %s774 = sadd.s32 %s704, 5
          %s775 = sld [smem:[#allocation5 + %s774]]
          %s776 = sshra.s32 %s775, 3
          %s777 = sand.u32 %s775, 7
          %s778 = sshra.s32 %s775, 3
          %s779 = sand.u32 %s775, 7
          %s780 = smul.u32 %s776, 3
          %s781 = smul.u32 %s780, 8
          %s782 = sadd.s32 %s781, %s779
          %s783 = scalar_lea.vmem [#allocation6], %s782
          %v784 = vld [vmem:[%s783] ss:$8 sm:$0x7]
          %s785 = scalar_lea.vmem [#allocation2], 101
          %786 = vst.msk [vmem:[%s785] ss:$8 sm:$0x7] %vm263, %v784
          %787 = vst.msk [vmem:[%s785] ss:$8 sm:$0x0] %vm263, %v784
          %s788 = sadd.s32 %s704, 6
          %s789 = sld [smem:[#allocation5 + %s788]]
          %s790 = sshra.s32 %s789, 3
          %s791 = sand.u32 %s789, 7
          %s792 = sshra.s32 %s789, 3
          %s793 = sand.u32 %s789, 7
          %s794 = smul.u32 %s790, 3
          %s795 = smul.u32 %s794, 8
          %s796 = sadd.s32 %s795, %s793
          %s797 = scalar_lea.vmem [#allocation6], %s796
          %v798 = vld [vmem:[%s797] ss:$8 sm:$0x7]
          %s799 = scalar_lea.vmem [#allocation2], 102
          %800 = vst.msk [vmem:[%s799] ss:$8 sm:$0x7] %vm263, %v798
          %801 = vst.msk [vmem:[%s799] ss:$8 sm:$0x0] %vm263, %v798
          %s802 = sadd.s32 %s704, 7
          %s803 = sld [smem:[#allocation5 + %s802]]
          %s804 = sshra.s32 %s803, 3
          %s805 = sand.u32 %s803, 7
          %s806 = sshra.s32 %s803, 3
          %s807 = sand.u32 %s803, 7
          %s808 = smul.u32 %s804, 3
          %s809 = smul.u32 %s808, 8
          %s810 = sadd.s32 %s809, %s807
          %s811 = scalar_lea.vmem [#allocation6], %s810
          %v812 = vld [vmem:[%s811] ss:$8 sm:$0x7]
          %s813 = scalar_lea.vmem [#allocation2], 103
          %814 = vst.msk [vmem:[%s813] ss:$8 sm:$0x7] %vm263, %v812
          %815 = vst.msk [vmem:[%s813] ss:$8 sm:$0x0] %vm263, %v812
          %s816 = sadd.s32 %s248, 5
          %s817 = smul.u32 %s816, 128
          %s818 = sld [smem:[#allocation5 + %s817]]
          %s819 = sshra.s32 %s818, 3
          %s820 = sand.u32 %s818, 7
          %s821 = sshra.s32 %s818, 3
          %s822 = sand.u32 %s818, 7
          %s823 = smul.u32 %s819, 3
          %s824 = smul.u32 %s823, 8
          %s825 = sadd.s32 %s824, %s822
          %s826 = scalar_lea.vmem [#allocation6], %s825
          %v827 = vld [vmem:[%s826] ss:$8 sm:$0x7]
          %s828 = scalar_lea.vmem [#allocation2], 120
          %829 = vst.msk [vmem:[%s828] ss:$8 sm:$0x7] %vm263, %v827
          %830 = vst.msk [vmem:[%s828] ss:$8 sm:$0x0] %vm263, %v827
          %s831 = sadd.s32 %s817, 1
          %s832 = sld [smem:[#allocation5 + %s831]]
          %s833 = sshra.s32 %s832, 3
          %s834 = sand.u32 %s832, 7
          %s835 = sshra.s32 %s832, 3
          %s836 = sand.u32 %s832, 7
          %s837 = smul.u32 %s833, 3
          %s838 = smul.u32 %s837, 8
          %s839 = sadd.s32 %s838, %s836
          %s840 = scalar_lea.vmem [#allocation6], %s839
          %v841 = vld [vmem:[%s840] ss:$8 sm:$0x7]
          %s842 = scalar_lea.vmem [#allocation2], 121
          %843 = vst.msk [vmem:[%s842] ss:$8 sm:$0x7] %vm263, %v841
          %844 = vst.msk [vmem:[%s842] ss:$8 sm:$0x0] %vm263, %v841
          %s845 = sadd.s32 %s817, 2
          %s846 = sld [smem:[#allocation5 + %s845]]
          %s847 = sshra.s32 %s846, 3
          %s848 = sand.u32 %s846, 7
          %s849 = sshra.s32 %s846, 3
          %s850 = sand.u32 %s846, 7
          %s851 = smul.u32 %s847, 3
          %s852 = smul.u32 %s851, 8
          %s853 = sadd.s32 %s852, %s850
          %s854 = scalar_lea.vmem [#allocation6], %s853
          %v855 = vld [vmem:[%s854] ss:$8 sm:$0x7]
          %s856 = scalar_lea.vmem [#allocation2], 122
          %857 = vst.msk [vmem:[%s856] ss:$8 sm:$0x7] %vm263, %v855
          %858 = vst.msk [vmem:[%s856] ss:$8 sm:$0x0] %vm263, %v855
          %s859 = sadd.s32 %s817, 3
          %s860 = sld [smem:[#allocation5 + %s859]]
          %s861 = sshra.s32 %s860, 3
          %s862 = sand.u32 %s860, 7
          %s863 = sshra.s32 %s860, 3
          %s864 = sand.u32 %s860, 7
          %s865 = smul.u32 %s861, 3
          %s866 = smul.u32 %s865, 8
          %s867 = sadd.s32 %s866, %s864
          %s868 = scalar_lea.vmem [#allocation6], %s867
          %v869 = vld [vmem:[%s868] ss:$8 sm:$0x7]
          %s870 = scalar_lea.vmem [#allocation2], 123
          %871 = vst.msk [vmem:[%s870] ss:$8 sm:$0x7] %vm263, %v869
          %872 = vst.msk [vmem:[%s870] ss:$8 sm:$0x0] %vm263, %v869
          %s873 = sadd.s32 %s817, 4
          %s874 = sld [smem:[#allocation5 + %s873]]
          %s875 = sshra.s32 %s874, 3
          %s876 = sand.u32 %s874, 7
          %s877 = sshra.s32 %s874, 3
          %s878 = sand.u32 %s874, 7
          %s879 = smul.u32 %s875, 3
          %s880 = smul.u32 %s879, 8
          %s881 = sadd.s32 %s880, %s878
          %s882 = scalar_lea.vmem [#allocation6], %s881
          %v883 = vld [vmem:[%s882] ss:$8 sm:$0x7]
          %s884 = scalar_lea.vmem [#allocation2], 124
          %885 = vst.msk [vmem:[%s884] ss:$8 sm:$0x7] %vm263, %v883
          %886 = vst.msk [vmem:[%s884] ss:$8 sm:$0x0] %vm263, %v883
          %s887 = sadd.s32 %s817, 5
          %s888 = sld [smem:[#allocation5 + %s887]]
          %s889 = sshra.s32 %s888, 3
          %s890 = sand.u32 %s888, 7
          %s891 = sshra.s32 %s888, 3
          %s892 = sand.u32 %s888, 7
          %s893 = smul.u32 %s889, 3
          %s894 = smul.u32 %s893, 8
          %s895 = sadd.s32 %s894, %s892
          %s896 = scalar_lea.vmem [#allocation6], %s895
          %v897 = vld [vmem:[%s896] ss:$8 sm:$0x7]
          %s898 = scalar_lea.vmem [#allocation2], 125
          %899 = vst.msk [vmem:[%s898] ss:$8 sm:$0x7] %vm263, %v897
          %900 = vst.msk [vmem:[%s898] ss:$8 sm:$0x0] %vm263, %v897
          %s901 = sadd.s32 %s817, 6
          %s902 = sld [smem:[#allocation5 + %s901]]
          %s903 = sshra.s32 %s902, 3
          %s904 = sand.u32 %s902, 7
          %s905 = sshra.s32 %s902, 3
          %s906 = sand.u32 %s902, 7
          %s907 = smul.u32 %s903, 3
          %s908 = smul.u32 %s907, 8
          %s909 = sadd.s32 %s908, %s906
          %s910 = scalar_lea.vmem [#allocation6], %s909
          %v911 = vld [vmem:[%s910] ss:$8 sm:$0x7]
          %s912 = scalar_lea.vmem [#allocation2], 126
          %913 = vst.msk [vmem:[%s912] ss:$8 sm:$0x7] %vm263, %v911
          %914 = vst.msk [vmem:[%s912] ss:$8 sm:$0x0] %vm263, %v911
          %s915 = sadd.s32 %s817, 7
          %s916 = sld [smem:[#allocation5 + %s915]]
          %s917 = sshra.s32 %s916, 3
          %s918 = sand.u32 %s916, 7
          %s919 = sshra.s32 %s916, 3
          %s920 = sand.u32 %s916, 7
          %s921 = smul.u32 %s917, 3
          %s922 = smul.u32 %s921, 8
          %s923 = sadd.s32 %s922, %s920
          %s924 = scalar_lea.vmem [#allocation6], %s923
          %v925 = vld [vmem:[%s924] ss:$8 sm:$0x7]
          %s926 = scalar_lea.vmem [#allocation2], 127
          %927 = vst.msk [vmem:[%s926] ss:$8 sm:$0x7] %vm263, %v925
          %928 = vst.msk [vmem:[%s926] ss:$8 sm:$0x0] %vm263, %v925
          %s929 = sadd.s32 %s248, 6
          %s930 = smul.u32 %s929, 128
          %s931 = sld [smem:[#allocation5 + %s930]]
          %s932 = sshra.s32 %s931, 3
          %s933 = sand.u32 %s931, 7
          %s934 = sshra.s32 %s931, 3
          %s935 = sand.u32 %s931, 7
          %s936 = smul.u32 %s932, 3
          %s937 = smul.u32 %s936, 8
          %s938 = sadd.s32 %s937, %s935
          %s939 = scalar_lea.vmem [#allocation6], %s938
          %v940 = vld [vmem:[%s939] ss:$8 sm:$0x7]
          %s941 = scalar_lea.vmem [#allocation2], 144
          %942 = vst.msk [vmem:[%s941] ss:$8 sm:$0x7] %vm263, %v940
          %943 = vst.msk [vmem:[%s941] ss:$8 sm:$0x0] %vm263, %v940
          %s944 = sadd.s32 %s930, 1
          %s945 = sld [smem:[#allocation5 + %s944]]
          %s946 = sshra.s32 %s945, 3
          %s947 = sand.u32 %s945, 7
          %s948 = sshra.s32 %s945, 3
          %s949 = sand.u32 %s945, 7
          %s950 = smul.u32 %s946, 3
          %s951 = smul.u32 %s950, 8
          %s952 = sadd.s32 %s951, %s949
          %s953 = scalar_lea.vmem [#allocation6], %s952
          %v954 = vld [vmem:[%s953] ss:$8 sm:$0x7]
          %s955 = scalar_lea.vmem [#allocation2], 145
          %956 = vst.msk [vmem:[%s955] ss:$8 sm:$0x7] %vm263, %v954
          %957 = vst.msk [vmem:[%s955] ss:$8 sm:$0x0] %vm263, %v954
          %s958 = sadd.s32 %s930, 2
          %s959 = sld [smem:[#allocation5 + %s958]]
          %s960 = sshra.s32 %s959, 3
          %s961 = sand.u32 %s959, 7
          %s962 = sshra.s32 %s959, 3
          %s963 = sand.u32 %s959, 7
          %s964 = smul.u32 %s960, 3
          %s965 = smul.u32 %s964, 8
          %s966 = sadd.s32 %s965, %s963
          %s967 = scalar_lea.vmem [#allocation6], %s966
          %v968 = vld [vmem:[%s967] ss:$8 sm:$0x7]
          %s969 = scalar_lea.vmem [#allocation2], 146
          %970 = vst.msk [vmem:[%s969] ss:$8 sm:$0x7] %vm263, %v968
          %971 = vst.msk [vmem:[%s969] ss:$8 sm:$0x0] %vm263, %v968
          %s972 = sadd.s32 %s930, 3
          %s973 = sld [smem:[#allocation5 + %s972]]
          %s974 = sshra.s32 %s973, 3
          %s975 = sand.u32 %s973, 7
          %s976 = sshra.s32 %s973, 3
          %s977 = sand.u32 %s973, 7
          %s978 = smul.u32 %s974, 3
          %s979 = smul.u32 %s978, 8
          %s980 = sadd.s32 %s979, %s977
          %s981 = scalar_lea.vmem [#allocation6], %s980
          %v982 = vld [vmem:[%s981] ss:$8 sm:$0x7]
          %s983 = scalar_lea.vmem [#allocation2], 147
          %984 = vst.msk [vmem:[%s983] ss:$8 sm:$0x7] %vm263, %v982
          %985 = vst.msk [vmem:[%s983] ss:$8 sm:$0x0] %vm263, %v982
          %s986 = sadd.s32 %s930, 4
          %s987 = sld [smem:[#allocation5 + %s986]]
          %s988 = sshra.s32 %s987, 3
          %s989 = sand.u32 %s987, 7
          %s990 = sshra.s32 %s987, 3
          %s991 = sand.u32 %s987, 7
          %s992 = smul.u32 %s988, 3
          %s993 = smul.u32 %s992, 8
          %s994 = sadd.s32 %s993, %s991
          %s995 = scalar_lea.vmem [#allocation6], %s994
          %v996 = vld [vmem:[%s995] ss:$8 sm:$0x7]
          %s997 = scalar_lea.vmem [#allocation2], 148
          %998 = vst.msk [vmem:[%s997] ss:$8 sm:$0x7] %vm263, %v996
          %999 = vst.msk [vmem:[%s997] ss:$8 sm:$0x0] %vm263, %v996
          %s1000 = sadd.s32 %s930, 5
          %s1001 = sld [smem:[#allocation5 + %s1000]]
          %s1002 = sshra.s32 %s1001, 3
          %s1003 = sand.u32 %s1001, 7
          %s1004 = sshra.s32 %s1001, 3
          %s1005 = sand.u32 %s1001, 7
          %s1006 = smul.u32 %s1002, 3
          %s1007 = smul.u32 %s1006, 8
          %s1008 = sadd.s32 %s1007, %s1005
          %s1009 = scalar_lea.vmem [#allocation6], %s1008
          %v1010 = vld [vmem:[%s1009] ss:$8 sm:$0x7]
          %s1011 = scalar_lea.vmem [#allocation2], 149
          %1012 = vst.msk [vmem:[%s1011] ss:$8 sm:$0x7] %vm263, %v1010
          %1013 = vst.msk [vmem:[%s1011] ss:$8 sm:$0x0] %vm263, %v1010
          %s1014 = sadd.s32 %s930, 6
          %s1015 = sld [smem:[#allocation5 + %s1014]]
          %s1016 = sshra.s32 %s1015, 3
          %s1017 = sand.u32 %s1015, 7
          %s1018 = sshra.s32 %s1015, 3
          %s1019 = sand.u32 %s1015, 7
          %s1020 = smul.u32 %s1016, 3
          %s1021 = smul.u32 %s1020, 8
          %s1022 = sadd.s32 %s1021, %s1019
          %s1023 = scalar_lea.vmem [#allocation6], %s1022
          %v1024 = vld [vmem:[%s1023] ss:$8 sm:$0x7]
          %s1025 = scalar_lea.vmem [#allocation2], 150
          %1026 = vst.msk [vmem:[%s1025] ss:$8 sm:$0x7] %vm263, %v1024
          %1027 = vst.msk [vmem:[%s1025] ss:$8 sm:$0x0] %vm263, %v1024
          %s1028 = sadd.s32 %s930, 7
          %s1029 = sld [smem:[#allocation5 + %s1028]]
          %s1030 = sshra.s32 %s1029, 3
          %s1031 = sand.u32 %s1029, 7
          %s1032 = sshra.s32 %s1029, 3
          %s1033 = sand.u32 %s1029, 7
          %s1034 = smul.u32 %s1030, 3
          %s1035 = smul.u32 %s1034, 8
          %s1036 = sadd.s32 %s1035, %s1033
          %s1037 = scalar_lea.vmem [#allocation6], %s1036
          %v1038 = vld [vmem:[%s1037] ss:$8 sm:$0x7]
          %s1039 = scalar_lea.vmem [#allocation2], 151
          %1040 = vst.msk [vmem:[%s1039] ss:$8 sm:$0x7] %vm263, %v1038
          %1041 = vst.msk [vmem:[%s1039] ss:$8 sm:$0x0] %vm263, %v1038
          %s1042 = sadd.s32 %s248, 7
          %s1043 = smul.u32 %s1042, 128
          %s1044 = sld [smem:[#allocation5 + %s1043]]
          %s1045 = sshra.s32 %s1044, 3
          %s1046 = sand.u32 %s1044, 7
          %s1047 = sshra.s32 %s1044, 3
          %s1048 = sand.u32 %s1044, 7
          %s1049 = smul.u32 %s1045, 3
          %s1050 = smul.u32 %s1049, 8
          %s1051 = sadd.s32 %s1050, %s1048
          %s1052 = scalar_lea.vmem [#allocation6], %s1051
          %v1053 = vld [vmem:[%s1052] ss:$8 sm:$0x7]
          %s1054 = scalar_lea.vmem [#allocation2], 168
          %1055 = vst.msk [vmem:[%s1054] ss:$8 sm:$0x7] %vm263, %v1053
          %1056 = vst.msk [vmem:[%s1054] ss:$8 sm:$0x0] %vm263, %v1053
          %s1057 = sadd.s32 %s1043, 1
          %s1058 = sld [smem:[#allocation5 + %s1057]]
          %s1059 = sshra.s32 %s1058, 3
          %s1060 = sand.u32 %s1058, 7
          %s1061 = sshra.s32 %s1058, 3
          %s1062 = sand.u32 %s1058, 7
          %s1063 = smul.u32 %s1059, 3
          %s1064 = smul.u32 %s1063, 8
          %s1065 = sadd.s32 %s1064, %s1062
          %s1066 = scalar_lea.vmem [#allocation6], %s1065
          %v1067 = vld [vmem:[%s1066] ss:$8 sm:$0x7]
          %s1068 = scalar_lea.vmem [#allocation2], 169
          %1069 = vst.msk [vmem:[%s1068] ss:$8 sm:$0x7] %vm263, %v1067
          %1070 = vst.msk [vmem:[%s1068] ss:$8 sm:$0x0] %vm263, %v1067
          %s1071 = sadd.s32 %s1043, 2
          %s1072 = sld [smem:[#allocation5 + %s1071]]
          %s1073 = sshra.s32 %s1072, 3
          %s1074 = sand.u32 %s1072, 7
          %s1075 = sshra.s32 %s1072, 3
          %s1076 = sand.u32 %s1072, 7
          %s1077 = smul.u32 %s1073, 3
          %s1078 = smul.u32 %s1077, 8
          %s1079 = sadd.s32 %s1078, %s1076
          %s1080 = scalar_lea.vmem [#allocation6], %s1079
          %v1081 = vld [vmem:[%s1080] ss:$8 sm:$0x7]
          %s1082 = scalar_lea.vmem [#allocation2], 170
          %1083 = vst.msk [vmem:[%s1082] ss:$8 sm:$0x7] %vm263, %v1081
          %1084 = vst.msk [vmem:[%s1082] ss:$8 sm:$0x0] %vm263, %v1081
          %s1085 = sadd.s32 %s1043, 3
          %s1086 = sld [smem:[#allocation5 + %s1085]]
          %s1087 = sshra.s32 %s1086, 3
          %s1088 = sand.u32 %s1086, 7
          %s1089 = sshra.s32 %s1086, 3
          %s1090 = sand.u32 %s1086, 7
          %s1091 = smul.u32 %s1087, 3
          %s1092 = smul.u32 %s1091, 8
          %s1093 = sadd.s32 %s1092, %s1090
          %s1094 = scalar_lea.vmem [#allocation6], %s1093
          %v1095 = vld [vmem:[%s1094] ss:$8 sm:$0x7]
          %s1096 = scalar_lea.vmem [#allocation2], 171
          %1097 = vst.msk [vmem:[%s1096] ss:$8 sm:$0x7] %vm263, %v1095
          %1098 = vst.msk [vmem:[%s1096] ss:$8 sm:$0x0] %vm263, %v1095
          %s1099 = sadd.s32 %s1043, 4
          %s1100 = sld [smem:[#allocation5 + %s1099]]
          %s1101 = sshra.s32 %s1100, 3
          %s1102 = sand.u32 %s1100, 7
          %s1103 = sshra.s32 %s1100, 3
          %s1104 = sand.u32 %s1100, 7
          %s1105 = smul.u32 %s1101, 3
          %s1106 = smul.u32 %s1105, 8
          %s1107 = sadd.s32 %s1106, %s1104
          %s1108 = scalar_lea.vmem [#allocation6], %s1107
          %v1109 = vld [vmem:[%s1108] ss:$8 sm:$0x7]
          %s1110 = scalar_lea.vmem [#allocation2], 172
          %1111 = vst.msk [vmem:[%s1110] ss:$8 sm:$0x7] %vm263, %v1109
          %1112 = vst.msk [vmem:[%s1110] ss:$8 sm:$0x0] %vm263, %v1109
          %s1113 = sadd.s32 %s1043, 5
          %s1114 = sld [smem:[#allocation5 + %s1113]]
          %s1115 = sshra.s32 %s1114, 3
          %s1116 = sand.u32 %s1114, 7
          %s1117 = sshra.s32 %s1114, 3
          %s1118 = sand.u32 %s1114, 7
          %s1119 = smul.u32 %s1115, 3
          %s1120 = smul.u32 %s1119, 8
          %s1121 = sadd.s32 %s1120, %s1118
          %s1122 = scalar_lea.vmem [#allocation6], %s1121
          %v1123 = vld [vmem:[%s1122] ss:$8 sm:$0x7]
          %s1124 = scalar_lea.vmem [#allocation2], 173
          %1125 = vst.msk [vmem:[%s1124] ss:$8 sm:$0x7] %vm263, %v1123
          %1126 = vst.msk [vmem:[%s1124] ss:$8 sm:$0x0] %vm263, %v1123
          %s1127 = sadd.s32 %s1043, 6
          %s1128 = sld [smem:[#allocation5 + %s1127]]
          %s1129 = sshra.s32 %s1128, 3
          %s1130 = sand.u32 %s1128, 7
          %s1131 = sshra.s32 %s1128, 3
          %s1132 = sand.u32 %s1128, 7
          %s1133 = smul.u32 %s1129, 3
          %s1134 = smul.u32 %s1133, 8
          %s1135 = sadd.s32 %s1134, %s1132
          %s1136 = scalar_lea.vmem [#allocation6], %s1135
          %v1137 = vld [vmem:[%s1136] ss:$8 sm:$0x7]
          %s1138 = scalar_lea.vmem [#allocation2], 174
          %1139 = vst.msk [vmem:[%s1138] ss:$8 sm:$0x7] %vm263, %v1137
          %1140 = vst.msk [vmem:[%s1138] ss:$8 sm:$0x0] %vm263, %v1137
          %s1141 = sadd.s32 %s1043, 7
          %s1142 = sld [smem:[#allocation5 + %s1141]]
          %s1143 = sshra.s32 %s1142, 3
          %s1144 = sand.u32 %s1142, 7
          %s1145 = sshra.s32 %s1142, 3
          %s1146 = sand.u32 %s1142, 7
          %s1147 = smul.u32 %s1143, 3
          %s1148 = smul.u32 %s1147, 8
          %s1149 = sadd.s32 %s1148, %s1146
          %s1150 = scalar_lea.vmem [#allocation6], %s1149
          %v1151 = vld [vmem:[%s1150] ss:$8 sm:$0x7]
          %s1152 = scalar_lea.vmem [#allocation2], 175
          %1153 = vst.msk [vmem:[%s1152] ss:$8 sm:$0x7] %vm263, %v1151
          %1154 = vst.msk [vmem:[%s1152] ss:$8 sm:$0x0] %vm263, %v1151
          %v1155 = vld [vmem:[#allocation2] sm:$0xff]
          %v1156 = vld [vmem:[#allocation2 + $0x8] sm:$0xff]
          %v1157 = vld [vmem:[#allocation2 + $0x10] sm:$0xff]
          %v1158 = vld [vmem:[#allocation2 + $0x18] sm:$0xff]
          %v1159 = vld [vmem:[#allocation2 + $0x20] sm:$0xff]
          %v1160 = vld [vmem:[#allocation2 + $0x28] sm:$0xff]
          %v1161 = vld [vmem:[#allocation2 + $0x30] sm:$0xff]
          %v1162 = vld [vmem:[#allocation2 + $0x38] sm:$0xff]
          %v1163 = vld [vmem:[#allocation2 + $0x40] sm:$0xff]
          %v1164 = vld [vmem:[#allocation2 + $0x48] sm:$0xff]
          %v1165 = vld [vmem:[#allocation2 + $0x50] sm:$0xff]
          %v1166 = vld [vmem:[#allocation2 + $0x58] sm:$0xff]
          %v1167 = vld [vmem:[#allocation2 + $0x60] sm:$0xff]
          %v1168 = vld [vmem:[#allocation2 + $0x68] sm:$0xff]
          %v1169 = vld [vmem:[#allocation2 + $0x70] sm:$0xff]
          %v1170 = vld [vmem:[#allocation2 + $0x78] sm:$0xff]
          %v1171 = vld [vmem:[#allocation2 + $0x80] sm:$0xff]
          %v1172 = vld [vmem:[#allocation2 + $0x88] sm:$0xff]
          %v1173 = vld [vmem:[#allocation2 + $0x90] sm:$0xff]
          %v1174 = vld [vmem:[#allocation2 + $0x98] sm:$0xff]
          %v1175 = vld [vmem:[#allocation2 + $0xa0] sm:$0xff]
          %v1176 = vld [vmem:[#allocation2 + $0xa8] sm:$0xff]
          %v1177 = vld [vmem:[#allocation2 + $0xb0] sm:$0xff]
          %v1178 = vld [vmem:[#allocation2 + $0xb8] sm:$0xff]
          %v1179 = vmul.f32 %v1155, %v1155
          %v1180 = vmul.f32 %v1156, %v1156
          %v1181 = vmul.f32 %v1157, %v1157
          %v1182 = vmul.f32 %v1158, %v1158
          %v1183 = vmul.f32 %v1159, %v1159
          %v1184 = vmul.f32 %v1160, %v1160
          %v1185 = vmul.f32 %v1161, %v1161
          %v1186 = vmul.f32 %v1162, %v1162
          %v1187 = vmul.f32 %v1163, %v1163
          %v1188 = vmul.f32 %v1164, %v1164
          %v1189 = vmul.f32 %v1165, %v1165
          %v1190 = vmul.f32 %v1166, %v1166
          %v1191 = vmul.f32 %v1167, %v1167
          %v1192 = vmul.f32 %v1168, %v1168
          %v1193 = vmul.f32 %v1169, %v1169
          %v1194 = vmul.f32 %v1170, %v1170
          %v1195 = vmul.f32 %v1171, %v1171
          %v1196 = vmul.f32 %v1172, %v1172
          %v1197 = vmul.f32 %v1173, %v1173
          %v1198 = vmul.f32 %v1174, %v1174
          %v1199 = vmul.f32 %v1175, %v1175
          %v1200 = vmul.f32 %v1176, %v1176
          %v1201 = vmul.f32 %v1177, %v1177
          %v1202 = vmul.f32 %v1178, %v1178
          %v1203 = vadd.f32 %v1179, %v1180
          %v1204 = vadd.f32 %v1203, %v1181
          %1205 = vadd.xlane.f32.xlu0 %v1204
          %v1206 = vpop.xlane.xlu0 %1205
          %v1207 = vadd.f32 %v1182, %v1183
          %v1208 = vadd.f32 %v1207, %v1184
          %1209 = vadd.xlane.f32.xlu0 %v1208
          %v1210 = vpop.xlane.xlu0 %1209
          %v1211 = vadd.f32 %v1185, %v1186
          %v1212 = vadd.f32 %v1211, %v1187
          %1213 = vadd.xlane.f32.xlu0 %v1212
          %v1214 = vpop.xlane.xlu0 %1213
          %v1215 = vadd.f32 %v1188, %v1189
          %v1216 = vadd.f32 %v1215, %v1190
          %1217 = vadd.xlane.f32.xlu0 %v1216
          %v1218 = vpop.xlane.xlu0 %1217
          %v1219 = vadd.f32 %v1191, %v1192
          %v1220 = vadd.f32 %v1219, %v1193
          %1221 = vadd.xlane.f32.xlu0 %v1220
          %v1222 = vpop.xlane.xlu0 %1221
          %v1223 = vadd.f32 %v1194, %v1195
          %v1224 = vadd.f32 %v1223, %v1196
          %1225 = vadd.xlane.f32.xlu0 %v1224
          %v1226 = vpop.xlane.xlu0 %1225
          %v1227 = vadd.f32 %v1197, %v1198
          %v1228 = vadd.f32 %v1227, %v1199
          %1229 = vadd.xlane.f32.xlu0 %v1228
          %v1230 = vpop.xlane.xlu0 %1229
          %v1231 = vadd.f32 %v1200, %v1201
          %v1232 = vadd.f32 %v1231, %v1202
          %1233 = vadd.xlane.f32.xlu0 %v1232
          %v1234 = vpop.xlane.xlu0 %1233
          %v1235 = vmax.f32 %v1206, 1e-30
          %v1236 = vmax.f32 %v1210, 1e-30
          %v1237 = vmax.f32 %v1214, 1e-30
          %v1238 = vmax.f32 %v1218, 1e-30
          %v1239 = vmax.f32 %v1222, 1e-30
          %v1240 = vmax.f32 %v1226, 1e-30
          %v1241 = vmax.f32 %v1230, 1e-30
          %v1242 = vmax.f32 %v1234, 1e-30
          %v1243 = vrsqrt.pop %v1235
          %v1244 = vmul.f32 %v1243, %v1235
          %v1245 = vmul.f32 %v1244, %v1243
          %v1246 = vmul.f32 0.5, %v1245
          %v1247 = vsub.f32 1.5, %v1246
          %v1248 = vmul.f32 %v1243, %v1247
          %vm1249 = vweird.f32 %v1235
          %vm1250 = vweird.f32 %v1243
          %vm1251 = vmor %vm1249, %vm1250
          %v1252 = vsel %vm1251, %v1243, %v1248
          %v1253 = vrsqrt.pop %v1236
          %v1254 = vmul.f32 %v1253, %v1236
          %v1255 = vmul.f32 %v1254, %v1253
          %v1256 = vmul.f32 0.5, %v1255
          %v1257 = vsub.f32 1.5, %v1256
          %v1258 = vmul.f32 %v1253, %v1257
          %vm1259 = vweird.f32 %v1236
          %vm1260 = vweird.f32 %v1253
          %vm1261 = vmor %vm1259, %vm1260
          %v1262 = vsel %vm1261, %v1253, %v1258
          %v1263 = vrsqrt.pop %v1237
          %v1264 = vmul.f32 %v1263, %v1237
          %v1265 = vmul.f32 %v1264, %v1263
          %v1266 = vmul.f32 0.5, %v1265
          %v1267 = vsub.f32 1.5, %v1266
          %v1268 = vmul.f32 %v1263, %v1267
          %vm1269 = vweird.f32 %v1237
          %vm1270 = vweird.f32 %v1263
          %vm1271 = vmor %vm1269, %vm1270
          %v1272 = vsel %vm1271, %v1263, %v1268
          %v1273 = vrsqrt.pop %v1238
          %v1274 = vmul.f32 %v1273, %v1238
          %v1275 = vmul.f32 %v1274, %v1273
          %v1276 = vmul.f32 0.5, %v1275
          %v1277 = vsub.f32 1.5, %v1276
          %v1278 = vmul.f32 %v1273, %v1277
          %vm1279 = vweird.f32 %v1238
          %vm1280 = vweird.f32 %v1273
          %vm1281 = vmor %vm1279, %vm1280
          %v1282 = vsel %vm1281, %v1273, %v1278
          %v1283 = vrsqrt.pop %v1239
          %v1284 = vmul.f32 %v1283, %v1239
          %v1285 = vmul.f32 %v1284, %v1283
          %v1286 = vmul.f32 0.5, %v1285
          %v1287 = vsub.f32 1.5, %v1286
          %v1288 = vmul.f32 %v1283, %v1287
          %vm1289 = vweird.f32 %v1239
          %vm1290 = vweird.f32 %v1283
          %vm1291 = vmor %vm1289, %vm1290
          %v1292 = vsel %vm1291, %v1283, %v1288
          %v1293 = vrsqrt.pop %v1240
          %v1294 = vmul.f32 %v1293, %v1240
          %v1295 = vmul.f32 %v1294, %v1293
          %v1296 = vmul.f32 0.5, %v1295
          %v1297 = vsub.f32 1.5, %v1296
          %v1298 = vmul.f32 %v1293, %v1297
          %vm1299 = vweird.f32 %v1240
          %vm1300 = vweird.f32 %v1293
          %vm1301 = vmor %vm1299, %vm1300
          %v1302 = vsel %vm1301, %v1293, %v1298
          %v1303 = vrsqrt.pop %v1241
          %v1304 = vmul.f32 %v1303, %v1241
          %v1305 = vmul.f32 %v1304, %v1303
          %v1306 = vmul.f32 0.5, %v1305
          %v1307 = vsub.f32 1.5, %v1306
          %v1308 = vmul.f32 %v1303, %v1307
          %vm1309 = vweird.f32 %v1241
          %vm1310 = vweird.f32 %v1303
          %vm1311 = vmor %vm1309, %vm1310
          %v1312 = vsel %vm1311, %v1303, %v1308
          %v1313 = vrsqrt.pop %v1242
          %v1314 = vmul.f32 %v1313, %v1242
          %v1315 = vmul.f32 %v1314, %v1313
          %v1316 = vmul.f32 0.5, %v1315
          %v1317 = vsub.f32 1.5, %v1316
          %v1318 = vmul.f32 %v1313, %v1317
          %vm1319 = vweird.f32 %v1242
          %vm1320 = vweird.f32 %v1313
          %vm1321 = vmor %vm1319, %vm1320
          %v1322 = vsel %vm1321, %v1313, %v1318
          %vm1323 = vcmp.gt.f32.partialorder %v1206, 1.0
          %vm1324 = vcmp.gt.f32.partialorder %v1210, 1.0
          %vm1325 = vcmp.gt.f32.partialorder %v1214, 1.0
          %vm1326 = vcmp.gt.f32.partialorder %v1218, 1.0
          %vm1327 = vcmp.gt.f32.partialorder %v1222, 1.0
          %vm1328 = vcmp.gt.f32.partialorder %v1226, 1.0
          %vm1329 = vcmp.gt.f32.partialorder %v1230, 1.0
          %vm1330 = vcmp.gt.f32.partialorder %v1234, 1.0
          %v1331 = vsel %vm1323, %v1252, 1.0
          %v1332 = vsel %vm1324, %v1262, 1.0
          %v1333 = vsel %vm1325, %v1272, 1.0
          %v1334 = vsel %vm1326, %v1282, 1.0
          %v1335 = vsel %vm1327, %v1292, 1.0
          %v1336 = vsel %vm1328, %v1302, 1.0
          %v1337 = vsel %vm1329, %v1312, 1.0
          %v1338 = vsel %vm1330, %v1322, 1.0
          %v1339 = vmul.f32 %v1155, %v1331
          %v1340 = vmul.f32 %v1156, %v1331
          %v1341 = vmul.f32 %v1157, %v1331
          %v1342 = vmul.f32 %v1158, %v1332
          %v1343 = vmul.f32 %v1159, %v1332
          %v1344 = vmul.f32 %v1160, %v1332
          %v1345 = vmul.f32 %v1161, %v1333
          %v1346 = vmul.f32 %v1162, %v1333
          %v1347 = vmul.f32 %v1163, %v1333
          %v1348 = vmul.f32 %v1164, %v1334
          %v1349 = vmul.f32 %v1165, %v1334
          %v1350 = vmul.f32 %v1166, %v1334
          %v1351 = vmul.f32 %v1167, %v1335
          %v1352 = vmul.f32 %v1168, %v1335
          %v1353 = vmul.f32 %v1169, %v1335
          %v1354 = vmul.f32 %v1170, %v1336
          %v1355 = vmul.f32 %v1171, %v1336
          %v1356 = vmul.f32 %v1172, %v1336
          %v1357 = vmul.f32 %v1173, %v1337
          %v1358 = vmul.f32 %v1174, %v1337
          %v1359 = vmul.f32 %v1175, %v1337
          %v1360 = vmul.f32 %v1176, %v1338
          %v1361 = vmul.f32 %v1177, %v1338
          %v1362 = vmul.f32 %v1178, %v1338
          %v1363 = vrot.slane %v1339, 4
          %v1364 = vadd.f32 %v1339, %v1363
          %v1365 = vrot.slane %v1364, 2
          %v1366 = vadd.f32 %v1364, %v1365
          %v1367 = vrot.slane %v1366, 1
          %v1368 = vadd.f32 %v1366, %v1367
          %v1369 = vrot.slane %v1340, 4
          %v1370 = vadd.f32 %v1340, %v1369
          %v1371 = vrot.slane %v1370, 2
          %v1372 = vadd.f32 %v1370, %v1371
          %v1373 = vrot.slane %v1372, 1
          %v1374 = vadd.f32 %v1372, %v1373
          %v1375 = vrot.slane %v1341, 4
          %v1376 = vadd.f32 %v1341, %v1375
          %v1377 = vrot.slane %v1376, 2
          %v1378 = vadd.f32 %v1376, %v1377
          %v1379 = vrot.slane %v1378, 1
          %v1380 = vadd.f32 %v1378, %v1379
          %v1381 = vmul.f32 %v1368, 0.125
          %v1382 = vmul.f32 %v1374, 0.125
          %v1383 = vmul.f32 %v1380, 0.125
          %v1387 = vrot.slane %v1382, 7
          %v1388 = vrot.slane %v1383, 6
          %vm1389 = vcmask 1040384
          %v1390 = vsel %vm1389, %v1381, %v1387
          %vm1391 = vcmask 1041408
          %v1392 = vsel %vm1391, %v1390, %v1388
          %1394 = vst.msk [vmem:[#allocation3] ss:$8 sm:$0x7] %vm263, %v1392
          %1395 = vst.msk [vmem:[#allocation3] ss:$8 sm:$0x0] %vm263, %v1392
          %v1396 = vrot.slane %v1342, 4
          %v1397 = vadd.f32 %v1342, %v1396
          %v1398 = vrot.slane %v1397, 2
          %v1399 = vadd.f32 %v1397, %v1398
          %v1400 = vrot.slane %v1399, 1
          %v1401 = vadd.f32 %v1399, %v1400
          %v1402 = vrot.slane %v1343, 4
          %v1403 = vadd.f32 %v1343, %v1402
          %v1404 = vrot.slane %v1403, 2
          %v1405 = vadd.f32 %v1403, %v1404
          %v1406 = vrot.slane %v1405, 1
          %v1407 = vadd.f32 %v1405, %v1406
          %v1408 = vrot.slane %v1344, 4
          %v1409 = vadd.f32 %v1344, %v1408
          %v1410 = vrot.slane %v1409, 2
          %v1411 = vadd.f32 %v1409, %v1410
          %v1412 = vrot.slane %v1411, 1
          %v1413 = vadd.f32 %v1411, %v1412
          %v1414 = vmul.f32 %v1401, 0.125
          %v1415 = vmul.f32 %v1407, 0.125
          %v1416 = vmul.f32 %v1413, 0.125
          %v1420 = vrot.slane %v1415, 7
          %v1421 = vrot.slane %v1416, 6
          %v1422 = vsel %vm1389, %v1414, %v1420
          %v1423 = vsel %vm1391, %v1422, %v1421
          %s1425 = scalar_lea.vmem [#allocation3], 1
          %1426 = vst.msk [vmem:[%s1425] ss:$8 sm:$0x7] %vm263, %v1423
          %1427 = vst.msk [vmem:[%s1425] ss:$8 sm:$0x0] %vm263, %v1423
          %v1428 = vrot.slane %v1345, 4
          %v1429 = vadd.f32 %v1345, %v1428
          %v1430 = vrot.slane %v1429, 2
          %v1431 = vadd.f32 %v1429, %v1430
          %v1432 = vrot.slane %v1431, 1
          %v1433 = vadd.f32 %v1431, %v1432
          %v1434 = vrot.slane %v1346, 4
          %v1435 = vadd.f32 %v1346, %v1434
          %v1436 = vrot.slane %v1435, 2
          %v1437 = vadd.f32 %v1435, %v1436
          %v1438 = vrot.slane %v1437, 1
          %v1439 = vadd.f32 %v1437, %v1438
          %v1440 = vrot.slane %v1347, 4
          %v1441 = vadd.f32 %v1347, %v1440
          %v1442 = vrot.slane %v1441, 2
          %v1443 = vadd.f32 %v1441, %v1442
          %v1444 = vrot.slane %v1443, 1
          %v1445 = vadd.f32 %v1443, %v1444
          %v1446 = vmul.f32 %v1433, 0.125
          %v1447 = vmul.f32 %v1439, 0.125
          %v1448 = vmul.f32 %v1445, 0.125
          %v1452 = vrot.slane %v1447, 7
          %v1453 = vrot.slane %v1448, 6
          %v1454 = vsel %vm1389, %v1446, %v1452
          %v1455 = vsel %vm1391, %v1454, %v1453
          %s1457 = scalar_lea.vmem [#allocation3], 2
          %1458 = vst.msk [vmem:[%s1457] ss:$8 sm:$0x7] %vm263, %v1455
          %1459 = vst.msk [vmem:[%s1457] ss:$8 sm:$0x0] %vm263, %v1455
          %v1460 = vrot.slane %v1348, 4
          %v1461 = vadd.f32 %v1348, %v1460
          %v1462 = vrot.slane %v1461, 2
          %v1463 = vadd.f32 %v1461, %v1462
          %v1464 = vrot.slane %v1463, 1
          %v1465 = vadd.f32 %v1463, %v1464
          %v1466 = vrot.slane %v1349, 4
          %v1467 = vadd.f32 %v1349, %v1466
          %v1468 = vrot.slane %v1467, 2
          %v1469 = vadd.f32 %v1467, %v1468
          %v1470 = vrot.slane %v1469, 1
          %v1471 = vadd.f32 %v1469, %v1470
          %v1472 = vrot.slane %v1350, 4
          %v1473 = vadd.f32 %v1350, %v1472
          %v1474 = vrot.slane %v1473, 2
          %v1475 = vadd.f32 %v1473, %v1474
          %v1476 = vrot.slane %v1475, 1
          %v1477 = vadd.f32 %v1475, %v1476
          %v1478 = vmul.f32 %v1465, 0.125
          %v1479 = vmul.f32 %v1471, 0.125
          %v1480 = vmul.f32 %v1477, 0.125
          %v1484 = vrot.slane %v1479, 7
          %v1485 = vrot.slane %v1480, 6
          %v1486 = vsel %vm1389, %v1478, %v1484
          %v1487 = vsel %vm1391, %v1486, %v1485
          %s1489 = scalar_lea.vmem [#allocation3], 3
          %1490 = vst.msk [vmem:[%s1489] ss:$8 sm:$0x7] %vm263, %v1487
          %1491 = vst.msk [vmem:[%s1489] ss:$8 sm:$0x0] %vm263, %v1487
          %v1492 = vrot.slane %v1351, 4
          %v1493 = vadd.f32 %v1351, %v1492
          %v1494 = vrot.slane %v1493, 2
          %v1495 = vadd.f32 %v1493, %v1494
          %v1496 = vrot.slane %v1495, 1
          %v1497 = vadd.f32 %v1495, %v1496
          %v1498 = vrot.slane %v1352, 4
          %v1499 = vadd.f32 %v1352, %v1498
          %v1500 = vrot.slane %v1499, 2
          %v1501 = vadd.f32 %v1499, %v1500
          %v1502 = vrot.slane %v1501, 1
          %v1503 = vadd.f32 %v1501, %v1502
          %v1504 = vrot.slane %v1353, 4
          %v1505 = vadd.f32 %v1353, %v1504
          %v1506 = vrot.slane %v1505, 2
          %v1507 = vadd.f32 %v1505, %v1506
          %v1508 = vrot.slane %v1507, 1
          %v1509 = vadd.f32 %v1507, %v1508
          %v1510 = vmul.f32 %v1497, 0.125
          %v1511 = vmul.f32 %v1503, 0.125
          %v1512 = vmul.f32 %v1509, 0.125
          %v1516 = vrot.slane %v1511, 7
          %v1517 = vrot.slane %v1512, 6
          %v1518 = vsel %vm1389, %v1510, %v1516
          %v1519 = vsel %vm1391, %v1518, %v1517
          %s1521 = scalar_lea.vmem [#allocation3], 4
          %1522 = vst.msk [vmem:[%s1521] ss:$8 sm:$0x7] %vm263, %v1519
          %1523 = vst.msk [vmem:[%s1521] ss:$8 sm:$0x0] %vm263, %v1519
          %v1524 = vrot.slane %v1354, 4
          %v1525 = vadd.f32 %v1354, %v1524
          %v1526 = vrot.slane %v1525, 2
          %v1527 = vadd.f32 %v1525, %v1526
          %v1528 = vrot.slane %v1527, 1
          %v1529 = vadd.f32 %v1527, %v1528
          %v1530 = vrot.slane %v1355, 4
          %v1531 = vadd.f32 %v1355, %v1530
          %v1532 = vrot.slane %v1531, 2
          %v1533 = vadd.f32 %v1531, %v1532
          %v1534 = vrot.slane %v1533, 1
          %v1535 = vadd.f32 %v1533, %v1534
          %v1536 = vrot.slane %v1356, 4
          %v1537 = vadd.f32 %v1356, %v1536
          %v1538 = vrot.slane %v1537, 2
          %v1539 = vadd.f32 %v1537, %v1538
          %v1540 = vrot.slane %v1539, 1
          %v1541 = vadd.f32 %v1539, %v1540
          %v1542 = vmul.f32 %v1529, 0.125
          %v1543 = vmul.f32 %v1535, 0.125
          %v1544 = vmul.f32 %v1541, 0.125
          %v1548 = vrot.slane %v1543, 7
          %v1549 = vrot.slane %v1544, 6
          %v1550 = vsel %vm1389, %v1542, %v1548
          %v1551 = vsel %vm1391, %v1550, %v1549
          %s1553 = scalar_lea.vmem [#allocation3], 5
          %1554 = vst.msk [vmem:[%s1553] ss:$8 sm:$0x7] %vm263, %v1551
          %1555 = vst.msk [vmem:[%s1553] ss:$8 sm:$0x0] %vm263, %v1551
          %v1556 = vrot.slane %v1357, 4
          %v1557 = vadd.f32 %v1357, %v1556
          %v1558 = vrot.slane %v1557, 2
          %v1559 = vadd.f32 %v1557, %v1558
          %v1560 = vrot.slane %v1559, 1
          %v1561 = vadd.f32 %v1559, %v1560
          %v1562 = vrot.slane %v1358, 4
          %v1563 = vadd.f32 %v1358, %v1562
          %v1564 = vrot.slane %v1563, 2
          %v1565 = vadd.f32 %v1563, %v1564
          %v1566 = vrot.slane %v1565, 1
          %v1567 = vadd.f32 %v1565, %v1566
          %v1568 = vrot.slane %v1359, 4
          %v1569 = vadd.f32 %v1359, %v1568
          %v1570 = vrot.slane %v1569, 2
          %v1571 = vadd.f32 %v1569, %v1570
          %v1572 = vrot.slane %v1571, 1
          %v1573 = vadd.f32 %v1571, %v1572
          %v1574 = vmul.f32 %v1561, 0.125
          %v1575 = vmul.f32 %v1567, 0.125
          %v1576 = vmul.f32 %v1573, 0.125
          %v1580 = vrot.slane %v1575, 7
          %v1581 = vrot.slane %v1576, 6
          %v1582 = vsel %vm1389, %v1574, %v1580
          %v1583 = vsel %vm1391, %v1582, %v1581
          %s1585 = scalar_lea.vmem [#allocation3], 6
          %1586 = vst.msk [vmem:[%s1585] ss:$8 sm:$0x7] %vm263, %v1583
          %1587 = vst.msk [vmem:[%s1585] ss:$8 sm:$0x0] %vm263, %v1583
          %v1588 = vrot.slane %v1360, 4
          %v1589 = vadd.f32 %v1360, %v1588
          %v1590 = vrot.slane %v1589, 2
          %v1591 = vadd.f32 %v1589, %v1590
          %v1592 = vrot.slane %v1591, 1
          %v1593 = vadd.f32 %v1591, %v1592
          %v1594 = vrot.slane %v1361, 4
          %v1595 = vadd.f32 %v1361, %v1594
          %v1596 = vrot.slane %v1595, 2
          %v1597 = vadd.f32 %v1595, %v1596
          %v1598 = vrot.slane %v1597, 1
          %v1599 = vadd.f32 %v1597, %v1598
          %v1600 = vrot.slane %v1362, 4
          %v1601 = vadd.f32 %v1362, %v1600
          %v1602 = vrot.slane %v1601, 2
          %v1603 = vadd.f32 %v1601, %v1602
          %v1604 = vrot.slane %v1603, 1
          %v1605 = vadd.f32 %v1603, %v1604
          %v1606 = vmul.f32 %v1593, 0.125
          %v1607 = vmul.f32 %v1599, 0.125
          %v1608 = vmul.f32 %v1605, 0.125
          %v1612 = vrot.slane %v1607, 7
          %v1613 = vrot.slane %v1608, 6
          %v1614 = vsel %vm1389, %v1606, %v1612
          %v1615 = vsel %vm1391, %v1614, %v1613
          %s1617 = scalar_lea.vmem [#allocation3], 7
          %1618 = vst.msk [vmem:[%s1617] ss:$8 sm:$0x7] %vm263, %v1615
          %1619 = vst.msk [vmem:[%s1617] ss:$8 sm:$0x0] %vm263, %v1615
        $region44: #{tpu_custom_call.1} parent=31 // pred_fallthru
          _
        %v1620 = vld [vmem:[#allocation3] sm:$0xff]
        %v1621 = vld [vmem:[#allocation3 + $0x8] sm:$0xff]
        %v1622 = vld [vmem:[#allocation3 + $0x10] sm:$0xff]
        %v1623 = vld [vmem:[%s214] sm:$0xff]
        %v1624 = vld [vmem:[%s214 + $0x8] sm:$0xff]
        %v1625 = vld [vmem:[%s214 + $0x10] sm:$0xff]
        %v1626 = vld [vmem:[%s214 + $0x18] sm:$0xff]
        %v1627 = vld [vmem:[%s214 + $0x20] sm:$0xff]
        %v1628 = vld [vmem:[%s214 + $0x28] sm:$0xff]
        %v1629 = vld [vmem:[%s214 + $0x30] sm:$0xff]
        %v1630 = vld [vmem:[%s214 + $0x38] sm:$0xff]
        %v1631 = vld [vmem:[%s214 + $0x40] sm:$0xff]
        %v1632 = vld [vmem:[%s214 + $0x48] sm:$0xff]
        %v1633 = vld [vmem:[%s214 + $0x50] sm:$0xff]
        %v1634 = vld [vmem:[%s214 + $0x58] sm:$0xff]
        %v1635 = vld [vmem:[%s214 + $0x60] sm:$0xff]
        %v1636 = vld [vmem:[%s214 + $0x68] sm:$0xff]
        %v1637 = vld [vmem:[%s214 + $0x70] sm:$0xff]
        %v1638 = vld [vmem:[%s214 + $0x78] sm:$0xff]
        %v1639 = vld [vmem:[%s214 + $0x80] sm:$0xff]
        %v1640 = vld [vmem:[%s214 + $0x88] sm:$0xff]
        %v1641 = vld [vmem:[%s214 + $0x90] sm:$0xff]
        %v1642 = vld [vmem:[%s214 + $0x98] sm:$0xff]
        %v1643 = vld [vmem:[%s214 + $0xa0] sm:$0xff]
        %v1644 = vld [vmem:[%s214 + $0xa8] sm:$0xff]
        %v1645 = vld [vmem:[%s214 + $0xb0] sm:$0xff]
        %v1646 = vld [vmem:[%s214 + $0xb8] sm:$0xff]
        %v1647 = vld [vmem:[%s214 + $0xc0] sm:$0xff]
        %v1648 = vld [vmem:[%s214 + $0xc8] sm:$0xff]
        %v1649 = vld [vmem:[%s214 + $0xd0] sm:$0xff]
        %v1650 = vld [vmem:[%s214 + $0xd8] sm:$0xff]
        %v1651 = vld [vmem:[%s214 + $0xe0] sm:$0xff]
        %v1652 = vld [vmem:[%s214 + $0xe8] sm:$0xff]
        %v1653 = vld [vmem:[%s214 + $0xf0] sm:$0xff]
        %v1654 = vld [vmem:[%s214 + $0xf8] sm:$0xff]
        %v1655 = vld [vmem:[%s214 + $0x100] sm:$0xff]
        %v1656 = vld [vmem:[%s214 + $0x108] sm:$0xff]
        %v1657 = vld [vmem:[%s214 + $0x110] sm:$0xff]
        %v1658 = vld [vmem:[%s214 + $0x118] sm:$0xff]
        %v1659 = vld [vmem:[%s214 + $0x120] sm:$0xff]
        %v1660 = vld [vmem:[%s214 + $0x128] sm:$0xff]
        %v1661 = vld [vmem:[%s214 + $0x130] sm:$0xff]
        %v1662 = vld [vmem:[%s214 + $0x138] sm:$0xff]
        %v1663 = vld [vmem:[%s214 + $0x140] sm:$0xff]
        %v1664 = vld [vmem:[%s214 + $0x148] sm:$0xff]
        %v1665 = vld [vmem:[%s214 + $0x150] sm:$0xff]
        %v1666 = vld [vmem:[%s214 + $0x158] sm:$0xff]
        %v1667 = vld [vmem:[%s214 + $0x160] sm:$0xff]
        %v1668 = vld [vmem:[%s214 + $0x168] sm:$0xff]
        %v1669 = vld [vmem:[%s214 + $0x170] sm:$0xff]
        %v1670 = vld [vmem:[%s214 + $0x178] sm:$0xff]
        %v1671 = vld [vmem:[%s243] sm:$0x1]
        %v1673 = vperm.slane %v1671, 0
        %1675 = vmatpush.msra.mxu0 %v1638
        %1676 = vmatpush.msra.mxu0 %v1637
        %1677 = vmatpush.msra.mxu0 %v1636
        %1678 = vmatpush.msra.mxu0 %v1635
        %1679 = vmatpush.msra.mxu0 %v1634
        %1680 = vmatpush.msra.mxu0 %v1633
        %1681 = vmatpush.msra.mxu0 %v1632
        %1682 = vmatpush.msra.mxu0 %v1631
        %1683 = vmatpush.msra.mxu0 %v1630
        %1684 = vmatpush.msra.mxu0 %v1629
        %1685 = vmatpush.msra.mxu0 %v1628
        %1686 = vmatpush.msra.mxu0 %v1627
        %1687 = vmatpush.msra.mxu0 %v1626
        %1688 = vmatpush.msra.mxu0 %v1625
        %1689 = vmatpush.msra.mxu0 %v1624
        %1690 = vmatpush.msra.mxu0 %v1623
        %1691 = vmatmul.f32.gmra.mxu0 %v1620
        %v1692 = vpop.f32.mrf.mxu0
        %v1693 = vadd.f32 %v1673, %v1692
        %1694 = vdwg.mxu0
        %1695 = vmatpush.msra.mxu0 %v1654
        %1696 = vmatpush.msra.mxu0 %v1653
        %1697 = vmatpush.msra.mxu0 %v1652
        %1698 = vmatpush.msra.mxu0 %v1651
        %1699 = vmatpush.msra.mxu0 %v1650
        %1700 = vmatpush.msra.mxu0 %v1649
        %1701 = vmatpush.msra.mxu0 %v1648
        %1702 = vmatpush.msra.mxu0 %v1647
        %1703 = vmatpush.msra.mxu0 %v1646
        %1704 = vmatpush.msra.mxu0 %v1645
        %1705 = vmatpush.msra.mxu0 %v1644
        %1706 = vmatpush.msra.mxu0 %v1643
        %1707 = vmatpush.msra.mxu0 %v1642
        %1708 = vmatpush.msra.mxu0 %v1641
        %1709 = vmatpush.msra.mxu0 %v1640
        %1710 = vmatpush.msra.mxu0 %v1639
        %1711 = vmatmul.f32.gmra.mxu0 %v1621
        %v1712 = vpop.f32.mrf.mxu0
        %v1713 = vadd.f32 %v1693, %v1712
        %1714 = vdwg.mxu0
        %1715 = vmatpush.msra.mxu0 %v1670
        %1716 = vmatpush.msra.mxu0 %v1669
        %1717 = vmatpush.msra.mxu0 %v1668
        %1718 = vmatpush.msra.mxu0 %v1667
        %1719 = vmatpush.msra.mxu0 %v1666
        %1720 = vmatpush.msra.mxu0 %v1665
        %1721 = vmatpush.msra.mxu0 %v1664
        %1722 = vmatpush.msra.mxu0 %v1663
        %1723 = vmatpush.msra.mxu0 %v1662
        %1724 = vmatpush.msra.mxu0 %v1661
        %1725 = vmatpush.msra.mxu0 %v1660
        %1726 = vmatpush.msra.mxu0 %v1659
        %1727 = vmatpush.msra.mxu0 %v1658
        %1728 = vmatpush.msra.mxu0 %v1657
        %1729 = vmatpush.msra.mxu0 %v1656
        %1730 = vmatpush.msra.mxu0 %v1655
        %1731 = vmatmul.f32.gmra.mxu0 %v1622
        %v1732 = vpop.f32.mrf.mxu0
        %v1733 = vadd.f32 %v1713, %v1732
        %1734 = vdwg.mxu0
        %1735 = vst [vmem:[%s240] sm:$0xff] %v1733
        %s1736 = sand.u32 %s125, 1
        %s1737 = scalar_lea.sflag [#allocation8], %s1736
        %s1738 = sand.u32 %s125, 1
        %s1739 = smul.addr %s1738, 8
        %s1740 = scalar_lea.vmem [#allocation11], %s1739
        // Predicated region
        $region45: #{tpu_custom_call.1} parent=31 // pred_check
          %p1741 = pneg %p135
        $region46: #{tpu_custom_call.1} parent=31 // pred_check_branch
          %1743 = sbr.rel (%p1741) target = $region48
        $region47: #{tpu_custom_call.1} parent=31 // pred_region
          %1745 = vsyncadd %s1737, 0
          %s1746 = smul.addr %s34, 2
          %s1747 = sadd.s32 %s35, %s1746
          %s1748 = smul.addr %s1747, 8
          %s1749 = scalar_lea.hbm %s4, %s1748
          %s1751 = sshll.u32 %s1740, 4
          %s1752 = int_to_ptr.vmem [resolvable:$true] %s1751
          %s1753 = sshll.u32 %s1749, 4
          %s1754 = int_to_ptr.hbm [resolvable:$true] %s1753
          %1756 = dma.vmem_to_hbm [thread:$0]  %s1752, 128, %s1754, %s1737
        $region48: #{tpu_custom_call.1} parent=31 // pred_fallthru
          _
      $region32: #{tpu_custom_call.1} parent=5 // pred_fallthru
        _
      %p1757 = scmp.le.s32.totalorder 2, %s25
      // Predicated region
      $region49: #{tpu_custom_call.1} parent=5 // pred_check
        %p1758 = pneg %p1757
      $region50: #{tpu_custom_call.1} parent=5 // pred_check_branch
        %1760 = sbr.rel (%p1758) target = $region52
      $region51: #{tpu_custom_call.1} parent=5 // pred_region
        %s1761 = ssub.s32 %s25, 2
        // Predicated region
        $region53: #{tpu_custom_call.1} parent=51 // pred_check
          %p1762 = pneg %p141
        $region54: #{tpu_custom_call.1} parent=51 // pred_check_branch
          %1764 = sbr.rel (%p1762) target = $region56
        $region55: #{tpu_custom_call.1} parent=51 // pred_region
          %s1765 = sand.u32 %s126, 1
          %s1766 = scalar_lea.sflag [#allocation8], %s1765
          %s1767 = sand.u32 %s126, 1
          %s1768 = smul.addr %s1767, 8
          %s1769 = scalar_lea.vmem [#allocation11], %s1768
          %1771 = dma.done %s1766, 128
        $region56: #{tpu_custom_call.1} parent=51 // pred_fallthru
          _
      $region52: #{tpu_custom_call.1} parent=5 // pred_fallthru
        _
    $region6: #{tpu_custom_call.1} parent=1 // loop_footer
      %s29 = sadd.s32 1, %s25
    $region7: #{tpu_custom_call.1} parent=1 // loop_footer_branch
      %24 = sbr.rel target = $region3
    $region8: #{tpu_custom_call.1} parent=1 // loop_exit
      _
    %1772 = vsyncpa [#allocation7], 1
    %s1773 = scalar_lea.sflag [#allocation7], 1
    %1774 = vsyncpa %s1773, 1
    %1775 = vsyncpa [#allocation10], 1
    %s1776 = scalar_lea.sflag [#allocation10], 1
    %1777 = vsyncpa %s1776, 1
    %1778 = vsyncpa [#allocation8], 1
    %s1779 = scalar_lea.sflag [#allocation8], 1
    %1780 = vsyncpa %s1779, 1

</llo_original>
